<compile_context>
chip_gen: v6e
topology: v6e:2x2x1
jax: 0.10.0
libtpu: 0.0.40
codegen_flags: <defaults>
</compile_context>

<pallas_src>
import functools

import jax
import jax.numpy as jnp
from jax import lax
from jax.experimental import pallas as pl
from jax.experimental.pallas import tpu as pltpu

_TOPK_BISECT_ITERS = 24  # fixed-cost per-row k-th-value search (f32 range resolved well before 24)


def _const_spec(shape, index_map, single_buffer):
    """BlockSpec for an operand whose block index is constant over the inner grid axis:
    a single VMEM buffer is enough (the default second buffer is pure VMEM waste)."""
    if single_buffer:
        return pl.BlockSpec(shape, index_map, pipeline_mode=pl.Buffered(1))
    return pl.BlockSpec(shape, index_map)


def _qkv_proj_kernel(x_ref, w_ref, b_ref, q_ref, kt_ref, v_ref, *, num_heads, head_dim):
    """Fused QKV projection.

    Emits bf16 q (B,H,N,hd)  (softmax scale already folded into W_q / b_q on host),
          bf16 k (B,H,hd,N)  pre-transposed: N on lanes (no lane padding for hd<128,
                             score matmul consumes it without a transposed operand),
          bf16 v (B,H,N,hd)  MXU-ready orientation for the PV matmul.
    """
    C = num_heads * head_dim
    x = x_ref[0]                                                  # (tq, C)  bf16 (host cast)
    w = w_ref[...]                                                # (C, 3C)  bf16 (host cast)
    # bf16 x bf16 -> f32 accumulate: native MXU rate on v5e / v6e / v7x.
    y = jnp.dot(x, w, preferred_element_type=jnp.float32) + b_ref[...]        # (tq, 3C) f32

    yq = y[:, :C].astype(jnp.bfloat16)                            # (tq, C)  pre-scaled q slab
    kt = y[:, C:2 * C].T.astype(jnp.bfloat16)                     # (C, tq)  one transpose / tile
    yv = y[:, 2 * C:].astype(jnp.bfloat16)                        # (tq, C)
    for h in range(num_heads):
        hs = slice(h * head_dim, (h + 1) * head_dim)
        q_ref[0, h] = yq[:, hs]
        kt_ref[0, h] = kt[hs, :]                                  # sublane-aligned row slice
        v_ref[0, h] = yv[:, hs]


def _sparse_attn_kernel(q_ref, kt_ref, v_ref, wout_ref, bout_ref, o_ref, attn_ref, *,
                        num_heads, head_dim, k_sparse, seq_len):
    H, hd, N = num_heads, head_dim, seq_len

    q = q_ref[0]                                                  # (H, tq, hd) bf16, pre-scaled
    kt = kt_ref[0]                                                # (H, hd, N)  bf16
    v = v_ref[0]                                                  # (H, N,  hd) bf16

    # Batched-over-heads scores on the MXU; both operands in natural orientation.
    s = jnp.einsum('hqd,hdk->hqk', q, kt, preferred_element_type=jnp.float32)  # (H, tq, N) f32

    if 0 < k_sparse < N:
        # torch.topk + scatter mask == keep entries >= the k-th largest per row.
        # Fixed-cost threshold bisection on count(s >= t) per row + exact-min refinement.
        lo = jnp.min(s, axis=-1, keepdims=True)                   # (H, tq, 1)
        hi = jnp.max(s, axis=-1, keepdims=True)
        kf = jnp.float32(k_sparse)

        def body(_, carry):
            lo, hi = carry
            mid = 0.5 * (lo + hi)
            cnt = jnp.sum((s >= mid).astype(jnp.float32), axis=-1, keepdims=True)
            ge = cnt >= kf                                        # k-th largest >= mid
            return jnp.where(ge, mid, lo), jnp.where(ge, hi, mid)

        lo, _ = lax.fori_loop(0, _TOPK_BISECT_ITERS, body, (lo, hi))
        # Exact k-th-largest value = min over the survivors above lo.
        thresh = jnp.min(jnp.where(s >= lo, s, jnp.inf), axis=-1, keepdims=True)
        # TODO(synk): torch.topk keeps exactly k entries (index-order tie-break); this
        # keeps every entry tied with the k-th largest value.
        s = jnp.where(s >= thresh, s, jnp.float32(-1e9))

    # Numerically stable softmax with deferred normalization.
    m = jnp.max(s, axis=-1, keepdims=True)
    e = jnp.exp(s - m)                                            # (H, tq, N)
    denom = jnp.sum(e, axis=-1, keepdims=True)                    # (H, tq, 1)

    pv = jnp.einsum('hqk,hkd->hqd', e.astype(jnp.bfloat16), v,
                    preferred_element_type=jnp.float32)           # (H, tq, hd)
    pv = pv * pl.reciprocal(denom, approx=True)                   # EUP slot, ~free

    # Assemble heads into a lane-dense bf16 (tq, C) slab (no jnp.concatenate).
    for h in range(H):
        attn_ref[:, h * hd:(h + 1) * hd] = pv[h].astype(jnp.bfloat16)

    out = jnp.dot(attn_ref[...], wout_ref[...],
                  preferred_element_type=jnp.float32) + bout_ref[...]         # (tq, C)
    o_ref[0] = out.astype(o_ref.dtype)


def _pick_q_tile(seq_len):
    # 128 matches the v5e MXU width and keeps the (H, tq, N) f32 score slab small on
    # v7x's 64 MiB VMEM. The pre-transposed K output block needs tq % 128 == 0 (or tq == N).
    if seq_len % 128 == 0:
        return 128
    return seq_len


def _default_vmem_limit_bytes():
    # Generation-aware scoped-VMEM budget: ~80% of physical VMEM
    # (v5e/v6e: 128 MiB -> ~102 MiB, v7x: 64 MiB -> ~51 MiB), conservative fallback otherwise.
    try:
        cap = pltpu.get_tpu_info().vmem_capacity_bytes
    except Exception:
        cap = 64 * 1024 * 1024
    return min(cap * 4 // 5, 112 * 1024 * 1024)


def _prep_inputs(x, w_qkv_t, b_qkv, w_out_t, b_out, C, scale):
    """Host-side prep: fold the softmax scale into the query projection, cast the
    activations/weights to bf16 (MXU operand dtype); biases stay f32 (f32 accumulate)."""
    w_qkv = jnp.asarray(w_qkv_t, jnp.float32).at[:, :C].multiply(scale).astype(jnp.bfloat16)
    b_qkv_p = jnp.asarray(b_qkv, jnp.float32).at[:, :C].multiply(scale)
    return (x.astype(jnp.bfloat16), w_qkv, b_qkv_p,
            jnp.asarray(w_out_t, jnp.float32).astype(jnp.bfloat16),
            jnp.asarray(b_out, jnp.float32))


def _build_forward(B, N, C, H, hd, k_sparse, tq, vmem_limit_bytes, single_buffer, out_dtype):
    nq = N // tq
    compiler_params = pltpu.CompilerParams(
        # Both grid axes are independent -> megacore / 2-TC sharding.
        dimension_semantics=("parallel", "parallel"),
        vmem_limit_bytes=int(vmem_limit_bytes))

    # ---- Kernel A: fused QKV projection -> bf16 q (pre-scaled), k^T, v ---------------
    qkv_cost = pl.CostEstimate(
        flops=int(2 * B * N * C * 3 * C),
        transcendentals=0,
        bytes_accessed=int(2 * B * N * C + 2 * C * 3 * C + 4 * 3 * C + 2 * 3 * B * N * C))
    qkv_call = pl.pallas_call(
        functools.partial(_qkv_proj_kernel, num_heads=H, head_dim=hd),
        out_shape=(jax.ShapeDtypeStruct((B, H, N, hd), jnp.bfloat16),   # q
                   jax.ShapeDtypeStruct((B, H, hd, N), jnp.bfloat16),   # k^T (N on lanes)
                   jax.ShapeDtypeStruct((B, H, N, hd), jnp.bfloat16)),  # v
        grid_spec=pltpu.PrefetchScalarGridSpec(
            num_scalar_prefetch=0,
            grid=(B, nq),
            in_specs=[
                pl.BlockSpec((1, tq, C), lambda b, i: (b, i, 0)),                    # x tile (bf16)
                _const_spec((C, 3 * C), lambda b, i: (0, 0), single_buffer),         # W_qkv^T bf16
                _const_spec((1, 3 * C), lambda b, i: (0, 0), single_buffer),         # b_qkv f32
            ],
            out_specs=(
                pl.BlockSpec((1, H, tq, hd), lambda b, i: (b, 0, i, 0)),
                pl.BlockSpec((1, H, hd, tq), lambda b, i: (b, 0, 0, i)),
                pl.BlockSpec((1, H, tq, hd), lambda b, i: (b, 0, i, 0)),
            )),
        compiler_params=compiler_params,
        cost_estimate=qkv_cost)

    # ---- Kernel B: query-tiled sparse attention + output projection ------------------
    attn_cost = pl.CostEstimate(
        flops=int(4 * B * H * N * N * hd + 2 * B * N * C * C),
        transcendentals=int(B * H * N * N),
        bytes_accessed=int(2 * 3 * B * N * C + 2 * C * C + 4 * C + 4 * B * N * C))
    attn_call = pl.pallas_call(
        functools.partial(_sparse_attn_kernel, num_heads=H, head_dim=hd,
                          k_sparse=k_sparse, seq_len=N),
        out_shape=jax.ShapeDtypeStruct((B, N, C), out_dtype),
        grid_spec=pltpu.PrefetchScalarGridSpec(
            num_scalar_prefetch=0,
            grid=(B, nq),
            in_specs=[
                pl.BlockSpec((1, H, tq, hd), lambda b, i: (b, 0, i, 0)),             # q tile
                _const_spec((1, H, hd, N), lambda b, i: (b, 0, 0, 0), single_buffer),  # full K^T
                _const_spec((1, H, N, hd), lambda b, i: (b, 0, 0, 0), single_buffer),  # full V
                _const_spec((C, C), lambda b, i: (0, 0), single_buffer),             # W_out^T bf16
                _const_spec((1, C), lambda b, i: (0, 0), single_buffer),             # b_out f32
            ],
            out_specs=pl.BlockSpec((1, tq, C), lambda b, i: (b, i, 0)),              # lane-dense out
            scratch_shapes=[pltpu.VMEM((tq, C), jnp.bfloat16)]),                     # head-assembly slab
        compiler_params=compiler_params,
        cost_estimate=attn_cost)

    return qkv_call, attn_call


def sparse_attention_forward(x, w_qkv_t, b_qkv, w_out_t, b_out, *,
                             num_heads, sparsity_factor, q_tile=None,
                             vmem_limit_bytes=None):
    B, N, C = x.shape
    assert C % num_heads == 0
    hd = C // num_heads
    scale = hd ** (-0.5)
    k_sparse = int(sparsity_factor * N)  # k_sparse == 0 -> dense path (module skips masking too)

    tq = q_tile if q_tile is not None else _pick_q_tile(N)
    assert N % tq == 0 and (tq % 128 == 0 or tq == N), \
        "q_tile must divide N and be a multiple of 128 (or the full sequence)"
    if vmem_limit_bytes is None:
        vmem_limit_bytes = _default_vmem_limit_bytes()

    x_bf, w_qkv, b_qkv_p, w_out, b_out_p = _prep_inputs(x, w_qkv_t, b_qkv, w_out_t, b_out, C, scale)

    def run(single_buffer):
        qkv_call, attn_call = _build_forward(B, N, C, num_heads, hd, k_sparse, tq,
                                             vmem_limit_bytes, single_buffer, x.dtype)
        q, kt, v = qkv_call(x_bf, w_qkv, b_qkv_p)
        out = attn_call(q, kt, v, w_out, b_out_p)
        return jax.block_until_ready(out)

    try:
        # Prefer single-buffered constant blocks (halves VMEM for K/V/weights).
        return run(single_buffer=True)
    except Exception:
        # pipeline_mode=pl.Buffered(1) unsupported on this jax version -> default pipeline.
        return run(single_buffer=False)


def reference_forward(x, w_qkv_t, b_qkv, w_out_t, b_out, num_heads, sparsity_factor):
    """Pure-JAX reference of the (intended) PyTorch forward, mirroring the kernel's host
    weight prep and bf16-operand / f32-accumulate MXU precision for a tight comparison."""
    B, N, C = x.shape
    hd = C // num_heads
    scale = hd ** (-0.5)
    x_bf, w_qkv, b_qkv_p, w_out, b_out_p = _prep_inputs(x, w_qkv_t, b_qkv, w_out_t, b_out, C, scale)

    y = jnp.dot(x_bf, w_qkv, preferred_element_type=jnp.float32) + b_qkv_p     # (B, N, 3C) f32
    y = y.reshape(B, N, 3, num_heads, hd).transpose(2, 0, 3, 1, 4)             # (3, B, H, N, hd)
    q = y[0].astype(jnp.bfloat16)   # scale already folded into W_q / b_q
    k = y[1].astype(jnp.bfloat16)
    v = y[2].astype(jnp.bfloat16)
    s = jnp.einsum('bhnd,bhmd->bhnm', q, k, preferred_element_type=jnp.float32)
    ks = int(sparsity_factor * N)
    if 0 < ks < N:
        thresh = lax.top_k(s, ks)[0][..., -1:]
        s = jnp.where(s >= thresh, s, jnp.float32(-1e9))
    p = jax.nn.softmax(s, axis=-1)
    o = jnp.einsum('bhnm,bhmd->bhnd', p.astype(jnp.bfloat16), v,
                   preferred_element_type=jnp.float32)
    o = o.transpose(0, 2, 1, 3).reshape(B, N, C)
    return jnp.dot(o.astype(jnp.bfloat16), w_out,
                   preferred_element_type=jnp.float32) + b_out_p


if __name__ == "__main__":
    # Small, MXU/lane-aligned shapes: B=2, seq N=256, embed C=128, 4 heads (hd=32).
    # Default q_tile=128 -> nq=2 query tiles per batch (exercises the query tiling).
    B, N, C, num_heads = 2, 256, 128, 4
    sparsity_factor = 0.25            # k_sparse = 64 -> exercises the top-k masking path

    key = jax.random.PRNGKey(0)
    k1, k2, k3, k4, k5 = jax.random.split(key, 5)

    # Deterministic nn.Linear-style init: U(-1/sqrt(fan_in), 1/sqrt(fan_in)).
    bound = 1.0 / (C ** 0.5)
    w_qkv_t = jax.random.uniform(k1, (C, 3 * C), jnp.float32, -bound, bound)
    b_qkv = jax.random.uniform(k2, (1, 3 * C), jnp.float32, -bound, bound)
    w_out_t = jax.random.uniform(k3, (C, C), jnp.float32, -bound, bound)
    b_out = jax.random.uniform(k4, (1, C), jnp.float32, -bound, bound)
    x = jax.random.normal(k5, (B, N, C), jnp.float32)

    out = sparse_attention_forward(x, w_qkv_t, b_qkv, w_out_t, b_out,
                                   num_heads=num_heads,
                                   sparsity_factor=sparsity_factor)
    out = jax.block_until_ready(out)

    ref = reference_forward(x, w_qkv_t, b_qkv, w_out_t, b_out, num_heads, sparsity_factor)
    assert out.shape == (B, N, C) and out.dtype == jnp.float32
    max_err = float(jnp.max(jnp.abs(out - ref)))
    assert jnp.allclose(out, ref, atol=2e-2, rtol=2e-2), f"max abs err {max_err}"

    print("KERNEL_OK")
</pallas_src>

<mosaic_0001>
module attributes {stable_mosaic.version = 11 : i64} {
  func.func @_qkv_proj_kernel(%arg0: i32, %arg1: i32, %arg2: memref<1x128x128xbf16, #tpu.memory_space<vmem>>, %arg3: memref<128x384xbf16, #tpu.memory_space<vmem>>, %arg4: memref<1x384xf32, #tpu.memory_space<vmem>>, %arg5: memref<1x4x128x32xbf16, #tpu.memory_space<vmem>>, %arg6: memref<1x4x32x128xbf16, #tpu.memory_space<vmem>>, %arg7: memref<1x4x128x32xbf16, #tpu.memory_space<vmem>>) attributes {dimension_semantics = [#tpu.dimension_semantics<parallel>, #tpu.dimension_semantics<parallel>], iteration_bounds = array<i64: 2, 2>, scalar_prefetch = 0 : i64, scratch_operands = 0 : i64, tpu.core_type = #tpu.core_type<tc>, window_params = [{transform_indices = @transform_0, window_bounds = array<i64: 1, 128, 128>}, {pipeline_mode = #tpu.pipeline_mode<synchronous>, transform_indices = @transform_1, window_bounds = array<i64: 128, 384>}, {pipeline_mode = #tpu.pipeline_mode<synchronous>, transform_indices = @transform_2, window_bounds = array<i64: 1, 384>}, {transform_indices = @transform_3, window_bounds = array<i64: 1, 4, 128, 32>}, {transform_indices = @transform_4, window_bounds = array<i64: 1, 4, 32, 128>}, {transform_indices = @transform_5, window_bounds = array<i64: 1, 4, 128, 32>}]} {
    %c0 = arith.constant 0 : index
    %c0_0 = arith.constant 0 : index
    %c0_1 = arith.constant 0 : index
    %0 = vector.load %arg2[%c0, %c0_0, %c0_1] : memref<1x128x128xbf16, #tpu.memory_space<vmem>>, vector<1x128x128xbf16>
    %1 = vector.shape_cast %0 : vector<1x128x128xbf16> to vector<128x128xbf16>
    %c0_2 = arith.constant 0 : index
    %c0_3 = arith.constant 0 : index
    %2 = vector.load %arg3[%c0_2, %c0_3] : memref<128x384xbf16, #tpu.memory_space<vmem>>, vector<128x384xbf16>
    %cst = arith.constant dense<0.000000e+00> : vector<128x384xf32>
    %3 = tpu.matmul %1, %2, %cst {dimension_numbers = #tpu.dot_dimension_numbers<[1], [0], [0], [1], [0, 0, 1, 1], [], []>} : vector<128x128xbf16>, vector<128x384xbf16>, vector<128x384xf32> -> vector<128x384xf32>
    %c0_4 = arith.constant 0 : index
    %c0_5 = arith.constant 0 : index
    %4 = vector.load %arg4[%c0_4, %c0_5] : memref<1x384xf32, #tpu.memory_space<vmem>>, vector<1x384xf32>
    %5 = vector.broadcast %4 : vector<1x384xf32> to vector<128x384xf32>
    %6 = arith.addf %3, %5 : vector<128x384xf32>
    %7 = vector.extract_strided_slice %6 {offsets = [0, 0], sizes = [128, 128], strides = [1, 1]} : vector<128x384xf32> to vector<128x128xf32>
    %8 = arith.truncf %7 : vector<128x128xf32> to vector<128x128xbf16>
    %9 = vector.extract_strided_slice %6 {offsets = [0, 128], sizes = [128, 128], strides = [1, 1]} : vector<128x384xf32> to vector<128x128xf32>
    %10 = tpu.transpose %9, [1, 0] : vector<128x128xf32> -> vector<128x128xf32>
    %11 = arith.truncf %10 : vector<128x128xf32> to vector<128x128xbf16>
    %12 = vector.extract_strided_slice %6 {offsets = [0, 256], sizes = [128, 128], strides = [1, 1]} : vector<128x384xf32> to vector<128x128xf32>
    %13 = arith.truncf %12 : vector<128x128xf32> to vector<128x128xbf16>
    %14 = vector.extract_strided_slice %8 {offsets = [0, 0], sizes = [128, 32], strides = [1, 1]} : vector<128x128xbf16> to vector<128x32xbf16>
    %c0_6 = arith.constant 0 : index
    %c0_7 = arith.constant 0 : index
    %c0_8 = arith.constant 0 : index
    %c0_9 = arith.constant 0 : index
    %15 = vector.load %arg5[%c0_6, %c0_7, %c0_8, %c0_9] : memref<1x4x128x32xbf16, #tpu.memory_space<vmem>>, vector<1x1x128x32xbf16>
    %16 = vector.shape_cast %15 : vector<1x1x128x32xbf16> to vector<128x32xbf16>
    %17 = vector.shape_cast %14 : vector<128x32xbf16> to vector<1x1x128x32xbf16>
    tpu.vector_store %arg5[%c0_6, %c0_7, %c0_8, %c0_9], %17 {strides = array<i32>} : memref<1x4x128x32xbf16, #tpu.memory_space<vmem>>, vector<1x1x128x32xbf16>,
    %18 = vector.extract_strided_slice %11 {offsets = [0, 0], sizes = [32, 128], strides = [1, 1]} : vector<128x128xbf16> to vector<32x128xbf16>
    %c0_10 = arith.constant 0 : index
    %c0_11 = arith.constant 0 : index
    %c0_12 = arith.constant 0 : index
    %c0_13 = arith.constant 0 : index
    %19 = vector.load %arg6[%c0_10, %c0_11, %c0_12, %c0_13] : memref<1x4x32x128xbf16, #tpu.memory_space<vmem>>, vector<1x1x32x128xbf16>
    %20 = vector.shape_cast %19 : vector<1x1x32x128xbf16> to vector<32x128xbf16>
    %21 = vector.shape_cast %18 : vector<32x128xbf16> to vector<1x1x32x128xbf16>
    tpu.vector_store %arg6[%c0_10, %c0_11, %c0_12, %c0_13], %21 {strides = array<i32>} : memref<1x4x32x128xbf16, #tpu.memory_space<vmem>>, vector<1x1x32x128xbf16>,
    %22 = vector.extract_strided_slice %13 {offsets = [0, 0], sizes = [128, 32], strides = [1, 1]} : vector<128x128xbf16> to vector<128x32xbf16>
    %c0_14 = arith.constant 0 : index
    %c0_15 = arith.constant 0 : index
    %c0_16 = arith.constant 0 : index
    %c0_17 = arith.constant 0 : index
    %23 = vector.load %arg7[%c0_14, %c0_15, %c0_16, %c0_17] : memref<1x4x128x32xbf16, #tpu.memory_space<vmem>>, vector<1x1x128x32xbf16>
    %24 = vector.shape_cast %23 : vector<1x1x128x32xbf16> to vector<128x32xbf16>
    %25 = vector.shape_cast %22 : vector<128x32xbf16> to vector<1x1x128x32xbf16>
    tpu.vector_store %arg7[%c0_14, %c0_15, %c0_16, %c0_17], %25 {strides = array<i32>} : memref<1x4x128x32xbf16, #tpu.memory_space<vmem>>, vector<1x1x128x32xbf16>,
    %26 = vector.extract_strided_slice %8 {offsets = [0, 32], sizes = [128, 32], strides = [1, 1]} : vector<128x128xbf16> to vector<128x32xbf16>
    %c0_18 = arith.constant 0 : index
    %c1 = arith.constant 1 : index
    %c0_19 = arith.constant 0 : index
    %c0_20 = arith.constant 0 : index
    %27 = vector.load %arg5[%c0_18, %c1, %c0_19, %c0_20] : memref<1x4x128x32xbf16, #tpu.memory_space<vmem>>, vector<1x1x128x32xbf16>
    %28 = vector.shape_cast %27 : vector<1x1x128x32xbf16> to vector<128x32xbf16>
    %29 = vector.shape_cast %26 : vector<128x32xbf16> to vector<1x1x128x32xbf16>
    tpu.vector_store %arg5[%c0_18, %c1, %c0_19, %c0_20], %29 {strides = array<i32>} : memref<1x4x128x32xbf16, #tpu.memory_space<vmem>>, vector<1x1x128x32xbf16>,
    %30 = vector.extract_strided_slice %11 {offsets = [32, 0], sizes = [32, 128], strides = [1, 1]} : vector<128x128xbf16> to vector<32x128xbf16>
    %c0_21 = arith.constant 0 : index
    %c1_22 = arith.constant 1 : index
    %c0_23 = arith.constant 0 : index
    %c0_24 = arith.constant 0 : index
    %31 = vector.load %arg6[%c0_21, %c1_22, %c0_23, %c0_24] : memref<1x4x32x128xbf16, #tpu.memory_space<vmem>>, vector<1x1x32x128xbf16>
    %32 = vector.shape_cast %31 : vector<1x1x32x128xbf16> to vector<32x128xbf16>
    %33 = vector.shape_cast %30 : vector<32x128xbf16> to vector<1x1x32x128xbf16>
    tpu.vector_store %arg6[%c0_21, %c1_22, %c0_23, %c0_24], %33 {strides = array<i32>} : memref<1x4x32x128xbf16, #tpu.memory_space<vmem>>, vector<1x1x32x128xbf16>,
    %34 = vector.extract_strided_slice %13 {offsets = [0, 32], sizes = [128, 32], strides = [1, 1]} : vector<128x128xbf16> to vector<128x32xbf16>
    %c0_25 = arith.constant 0 : index
    %c1_26 = arith.constant 1 : index
    %c0_27 = arith.constant 0 : index
    %c0_28 = arith.constant 0 : index
    %35 = vector.load %arg7[%c0_25, %c1_26, %c0_27, %c0_28] : memref<1x4x128x32xbf16, #tpu.memory_space<vmem>>, vector<1x1x128x32xbf16>
    %36 = vector.shape_cast %35 : vector<1x1x128x32xbf16> to vector<128x32xbf16>
    %37 = vector.shape_cast %34 : vector<128x32xbf16> to vector<1x1x128x32xbf16>
    tpu.vector_store %arg7[%c0_25, %c1_26, %c0_27, %c0_28], %37 {strides = array<i32>} : memref<1x4x128x32xbf16, #tpu.memory_space<vmem>>, vector<1x1x128x32xbf16>,
    %38 = vector.extract_strided_slice %8 {offsets = [0, 64], sizes = [128, 32], strides = [1, 1]} : vector<128x128xbf16> to vector<128x32xbf16>
    %c0_29 = arith.constant 0 : index
    %c2 = arith.constant 2 : index
    %c0_30 = arith.constant 0 : index
    %c0_31 = arith.constant 0 : index
    %39 = vector.load %arg5[%c0_29, %c2, %c0_30, %c0_31] : memref<1x4x128x32xbf16, #tpu.memory_space<vmem>>, vector<1x1x128x32xbf16>
    %40 = vector.shape_cast %39 : vector<1x1x128x32xbf16> to vector<128x32xbf16>
    %41 = vector.shape_cast %38 : vector<128x32xbf16> to vector<1x1x128x32xbf16>
    tpu.vector_store %arg5[%c0_29, %c2, %c0_30, %c0_31], %41 {strides = array<i32>} : memref<1x4x128x32xbf16, #tpu.memory_space<vmem>>, vector<1x1x128x32xbf16>,
    %42 = vector.extract_strided_slice %11 {offsets = [64, 0], sizes = [32, 128], strides = [1, 1]} : vector<128x128xbf16> to vector<32x128xbf16>
    %c0_32 = arith.constant 0 : index
    %c2_33 = arith.constant 2 : index
    %c0_34 = arith.constant 0 : index
    %c0_35 = arith.constant 0 : index
    %43 = vector.load %arg6[%c0_32, %c2_33, %c0_34, %c0_35] : memref<1x4x32x128xbf16, #tpu.memory_space<vmem>>, vector<1x1x32x128xbf16>
    %44 = vector.shape_cast %43 : vector<1x1x32x128xbf16> to vector<32x128xbf16>
    %45 = vector.shape_cast %42 : vector<32x128xbf16> to vector<1x1x32x128xbf16>
    tpu.vector_store %arg6[%c0_32, %c2_33, %c0_34, %c0_35], %45 {strides = array<i32>} : memref<1x4x32x128xbf16, #tpu.memory_space<vmem>>, vector<1x1x32x128xbf16>,
    %46 = vector.extract_strided_slice %13 {offsets = [0, 64], sizes = [128, 32], strides = [1, 1]} : vector<128x128xbf16> to vector<128x32xbf16>
    %c0_36 = arith.constant 0 : index
    %c2_37 = arith.constant 2 : index
    %c0_38 = arith.constant 0 : index
    %c0_39 = arith.constant 0 : index
    %47 = vector.load %arg7[%c0_36, %c2_37, %c0_38, %c0_39] : memref<1x4x128x32xbf16, #tpu.memory_space<vmem>>, vector<1x1x128x32xbf16>
    %48 = vector.shape_cast %47 : vector<1x1x128x32xbf16> to vector<128x32xbf16>
    %49 = vector.shape_cast %46 : vector<128x32xbf16> to vector<1x1x128x32xbf16>
    tpu.vector_store %arg7[%c0_36, %c2_37, %c0_38, %c0_39], %49 {strides = array<i32>} : memref<1x4x128x32xbf16, #tpu.memory_space<vmem>>, vector<1x1x128x32xbf16>,
    %50 = vector.extract_strided_slice %8 {offsets = [0, 96], sizes = [128, 32], strides = [1, 1]} : vector<128x128xbf16> to vector<128x32xbf16>
    %c0_40 = arith.constant 0 : index
    %c3 = arith.constant 3 : index
    %c0_41 = arith.constant 0 : index
    %c0_42 = arith.constant 0 : index
    %51 = vector.load %arg5[%c0_40, %c3, %c0_41, %c0_42] : memref<1x4x128x32xbf16, #tpu.memory_space<vmem>>, vector<1x1x128x32xbf16>
    %52 = vector.shape_cast %51 : vector<1x1x128x32xbf16> to vector<128x32xbf16>
    %53 = vector.shape_cast %50 : vector<128x32xbf16> to vector<1x1x128x32xbf16>
    tpu.vector_store %arg5[%c0_40, %c3, %c0_41, %c0_42], %53 {strides = array<i32>} : memref<1x4x128x32xbf16, #tpu.memory_space<vmem>>, vector<1x1x128x32xbf16>,
    %54 = vector.extract_strided_slice %11 {offsets = [96, 0], sizes = [32, 128], strides = [1, 1]} : vector<128x128xbf16> to vector<32x128xbf16>
    %c0_43 = arith.constant 0 : index
    %c3_44 = arith.constant 3 : index
    %c0_45 = arith.constant 0 : index
    %c0_46 = arith.constant 0 : index
    %55 = vector.load %arg6[%c0_43, %c3_44, %c0_45, %c0_46] : memref<1x4x32x128xbf16, #tpu.memory_space<vmem>>, vector<1x1x32x128xbf16>
    %56 = vector.shape_cast %55 : vector<1x1x32x128xbf16> to vector<32x128xbf16>
    %57 = vector.shape_cast %54 : vector<32x128xbf16> to vector<1x1x32x128xbf16>
    tpu.vector_store %arg6[%c0_43, %c3_44, %c0_45, %c0_46], %57 {strides = array<i32>} : memref<1x4x32x128xbf16, #tpu.memory_space<vmem>>, vector<1x1x32x128xbf16>,
    %58 = vector.extract_strided_slice %13 {offsets = [0, 96], sizes = [128, 32], strides = [1, 1]} : vector<128x128xbf16> to vector<128x32xbf16>
    %c0_47 = arith.constant 0 : index
    %c3_48 = arith.constant 3 : index
    %c0_49 = arith.constant 0 : index
    %c0_50 = arith.constant 0 : index
    %59 = vector.load %arg7[%c0_47, %c3_48, %c0_49, %c0_50] : memref<1x4x128x32xbf16, #tpu.memory_space<vmem>>, vector<1x1x128x32xbf16>
    %60 = vector.shape_cast %59 : vector<1x1x128x32xbf16> to vector<128x32xbf16>
    %61 = vector.shape_cast %58 : vector<128x32xbf16> to vector<1x1x128x32xbf16>
    tpu.vector_store %arg7[%c0_47, %c3_48, %c0_49, %c0_50], %61 {strides = array<i32>} : memref<1x4x128x32xbf16, #tpu.memory_space<vmem>>, vector<1x1x128x32xbf16>,
    return
  }
  func.func @transform_0(%arg0: i32, %arg1: i32) -> (i32, i32, i32) {
    %c0_i32 = arith.constant 0 : i32
    %c0_i32_0 = arith.constant 0 : i32
    return %arg0, %arg1, %c0_i32 : i32, i32, i32
  }
  func.func @transform_1(%arg0: i32, %arg1: i32) -> (i32, i32) {
    %c0_i32 = arith.constant 0 : i32
    %c0_i32_0 = arith.constant 0 : i32
    %c0_i32_1 = arith.constant 0 : i32
    return %c0_i32, %c0_i32_0 : i32, i32
  }
  func.func @transform_2(%arg0: i32, %arg1: i32) -> (i32, i32) {
    %c0_i32 = arith.constant 0 : i32
    %c0_i32_0 = arith.constant 0 : i32
    %c0_i32_1 = arith.constant 0 : i32
    return %c0_i32, %c0_i32_0 : i32, i32
  }
  func.func @transform_3(%arg0: i32, %arg1: i32) -> (i32, i32, i32, i32) {
    %c0_i32 = arith.constant 0 : i32
    %c0_i32_0 = arith.constant 0 : i32
    %c0_i32_1 = arith.constant 0 : i32
    return %arg0, %c0_i32, %arg1, %c0_i32_0 : i32, i32, i32, i32
  }
  func.func @transform_4(%arg0: i32, %arg1: i32) -> (i32, i32, i32, i32) {
    %c0_i32 = arith.constant 0 : i32
    %c0_i32_0 = arith.constant 0 : i32
    %c0_i32_1 = arith.constant 0 : i32
    return %arg0, %c0_i32, %c0_i32_0, %arg1 : i32, i32, i32, i32
  }
  func.func @transform_5(%arg0: i32, %arg1: i32) -> (i32, i32, i32, i32) {
    %c0_i32 = arith.constant 0 : i32
    %c0_i32_0 = arith.constant 0 : i32
    %c0_i32_1 = arith.constant 0 : i32
    return %arg0, %c0_i32, %arg1, %c0_i32_0 : i32, i32, i32, i32
  }
}

module attributes {stable_mosaic.version = 11 : i64} {
  func.func @_qkv_proj_kernel(%arg0: i32, %arg1: i32, %arg2: memref<1x128x128xbf16, #tpu.memory_space<vmem>>, %arg3: memref<128x384xbf16, #tpu.memory_space<vmem>>, %arg4: memref<1x384xf32, #tpu.memory_space<vmem>>, %arg5: memref<1x4x128x32xbf16, #tpu.memory_space<vmem>>, %arg6: memref<1x4x32x128xbf16, #tpu.memory_space<vmem>>, %arg7: memref<1x4x128x32xbf16, #tpu.memory_space<vmem>>) attributes {dimension_semantics = [#tpu.dimension_semantics<parallel>, #tpu.dimension_semantics<parallel>], iteration_bounds = array<i64: 2, 2>, scalar_prefetch = 0 : i64, scratch_operands = 0 : i64, tpu.core_type = #tpu.core_type<tc>, window_params = [{transform_indices = @transform_0, window_bounds = array<i64: 1, 128, 128>}, {pipeline_mode = #tpu.pipeline_mode<synchronous>, transform_indices = @transform_1, window_bounds = array<i64: 128, 384>}, {pipeline_mode = #tpu.pipeline_mode<synchronous>, transform_indices = @transform_2, window_bounds = array<i64: 1, 384>}, {transform_indices = @transform_3, window_bounds = array<i64: 1, 4, 128, 32>}, {transform_indices = @transform_4, window_bounds = array<i64: 1, 4, 32, 128>}, {transform_indices = @transform_5, window_bounds = array<i64: 1, 4, 128, 32>}]} {
    %c0 = arith.constant 0 : index
    %c0_0 = arith.constant 0 : index
    %c0_1 = arith.constant 0 : index
    %0 = vector.load %arg2[%c0, %c0_0, %c0_1] : memref<1x128x128xbf16, #tpu.memory_space<vmem>>, vector<1x128x128xbf16>
    %1 = vector.shape_cast %0 : vector<1x128x128xbf16> to vector<128x128xbf16>
    %c0_2 = arith.constant 0 : index
    %c0_3 = arith.constant 0 : index
    %2 = vector.load %arg3[%c0_2, %c0_3] : memref<128x384xbf16, #tpu.memory_space<vmem>>, vector<128x384xbf16>
    %cst = arith.constant dense<0.000000e+00> : vector<128x384xf32>
    %3 = tpu.matmul %1, %2, %cst {dimension_numbers = #tpu.dot_dimension_numbers<[1], [0], [0], [1], [0, 0, 1, 1], [], []>} : vector<128x128xbf16>, vector<128x384xbf16>, vector<128x384xf32> -> vector<128x384xf32>
    %c0_4 = arith.constant 0 : index
    %c0_5 = arith.constant 0 : index
    %4 = vector.load %arg4[%c0_4, %c0_5] : memref<1x384xf32, #tpu.memory_space<vmem>>, vector<1x384xf32>
    %5 = vector.broadcast %4 : vector<1x384xf32> to vector<128x384xf32>
    %6 = arith.addf %3, %5 : vector<128x384xf32>
    %7 = vector.extract_strided_slice %6 {offsets = [0, 0], sizes = [128, 128], strides = [1, 1]} : vector<128x384xf32> to vector<128x128xf32>
    %8 = arith.truncf %7 : vector<128x128xf32> to vector<128x128xbf16>
    %9 = vector.extract_strided_slice %6 {offsets = [0, 128], sizes = [128, 128], strides = [1, 1]} : vector<128x384xf32> to vector<128x128xf32>
    %10 = tpu.transpose %9, [1, 0] : vector<128x128xf32> -> vector<128x128xf32>
    %11 = arith.truncf %10 : vector<128x128xf32> to vector<128x128xbf16>
    %12 = vector.extract_strided_slice %6 {offsets = [0, 256], sizes = [128, 128], strides = [1, 1]} : vector<128x384xf32> to vector<128x128xf32>
    %13 = arith.truncf %12 : vector<128x128xf32> to vector<128x128xbf16>
    %14 = vector.extract_strided_slice %8 {offsets = [0, 0], sizes = [128, 32], strides = [1, 1]} : vector<128x128xbf16> to vector<128x32xbf16>
    %c0_6 = arith.constant 0 : index
    %c0_7 = arith.constant 0 : index
    %c0_8 = arith.constant 0 : index
    %c0_9 = arith.constant 0 : index
    %15 = vector.load %arg5[%c0_6, %c0_7, %c0_8, %c0_9] : memref<1x4x128x32xbf16, #tpu.memory_space<vmem>>, vector<1x1x128x32xbf16>
    %16 = vector.shape_cast %15 : vector<1x1x128x32xbf16> to vector<128x32xbf16>
    %17 = vector.shape_cast %14 : vector<128x32xbf16> to vector<1x1x128x32xbf16>
    tpu.vector_store %arg5[%c0_6, %c0_7, %c0_8, %c0_9], %17 {strides = array<i32>} : memref<1x4x128x32xbf16, #tpu.memory_space<vmem>>, vector<1x1x128x32xbf16>,
    %18 = vector.extract_strided_slice %11 {offsets = [0, 0], sizes = [32, 128], strides = [1, 1]} : vector<128x128xbf16> to vector<32x128xbf16>
    %c0_10 = arith.constant 0 : index
    %c0_11 = arith.constant 0 : index
    %c0_12 = arith.constant 0 : index
    %c0_13 = arith.constant 0 : index
    %19 = vector.load %arg6[%c0_10, %c0_11, %c0_12, %c0_13] : memref<1x4x32x128xbf16, #tpu.memory_space<vmem>>, vector<1x1x32x128xbf16>
    %20 = vector.shape_cast %19 : vector<1x1x32x128xbf16> to vector<32x128xbf16>
    %21 = vector.shape_cast %18 : vector<32x128xbf16> to vector<1x1x32x128xbf16>
    tpu.vector_store %arg6[%c0_10, %c0_11, %c0_12, %c0_13], %21 {strides = array<i32>} : memref<1x4x32x128xbf16, #tpu.memory_space<vmem>>, vector<1x1x32x128xbf16>,
    %22 = vector.extract_strided_slice %13 {offsets = [0, 0], sizes = [128, 32], strides = [1, 1]} : vector<128x128xbf16> to vector<128x32xbf16>
    %c0_14 = arith.constant 0 : index
    %c0_15 = arith.constant 0 : index
    %c0_16 = arith.constant 0 : index
    %c0_17 = arith.constant 0 : index
    %23 = vector.load %arg7[%c0_14, %c0_15, %c0_16, %c0_17] : memref<1x4x128x32xbf16, #tpu.memory_space<vmem>>, vector<1x1x128x32xbf16>
    %24 = vector.shape_cast %23 : vector<1x1x128x32xbf16> to vector<128x32xbf16>
    %25 = vector.shape_cast %22 : vector<128x32xbf16> to vector<1x1x128x32xbf16>
    tpu.vector_store %arg7[%c0_14, %c0_15, %c0_16, %c0_17], %25 {strides = array<i32>} : memref<1x4x128x32xbf16, #tpu.memory_space<vmem>>, vector<1x1x128x32xbf16>,
    %26 = vector.extract_strided_slice %8 {offsets = [0, 32], sizes = [128, 32], strides = [1, 1]} : vector<128x128xbf16> to vector<128x32xbf16>
    %c0_18 = arith.constant 0 : index
    %c1 = arith.constant 1 : index
    %c0_19 = arith.constant 0 : index
    %c0_20 = arith.constant 0 : index
    %27 = vector.load %arg5[%c0_18, %c1, %c0_19, %c0_20] : memref<1x4x128x32xbf16, #tpu.memory_space<vmem>>, vector<1x1x128x32xbf16>
    %28 = vector.shape_cast %27 : vector<1x1x128x32xbf16> to vector<128x32xbf16>
    %29 = vector.shape_cast %26 : vector<128x32xbf16> to vector<1x1x128x32xbf16>
    tpu.vector_store %arg5[%c0_18, %c1, %c0_19, %c0_20], %29 {strides = array<i32>} : memref<1x4x128x32xbf16, #tpu.memory_space<vmem>>, vector<1x1x128x32xbf16>,
    %30 = vector.extract_strided_slice %11 {offsets = [32, 0], sizes = [32, 128], strides = [1, 1]} : vector<128x128xbf16> to vector<32x128xbf16>
    %c0_21 = arith.constant 0 : index
    %c1_22 = arith.constant 1 : index
    %c0_23 = arith.constant 0 : index
    %c0_24 = arith.constant 0 : index
    %31 = vector.load %arg6[%c0_21, %c1_22, %c0_23, %c0_24] : memref<1x4x32x128xbf16, #tpu.memory_space<vmem>>, vector<1x1x32x128xbf16>
    %32 = vector.shape_cast %31 : vector<1x1x32x128xbf16> to vector<32x128xbf16>
    %33 = vector.shape_cast %30 : vector<32x128xbf16> to vector<1x1x32x128xbf16>
    tpu.vector_store %arg6[%c0_21, %c1_22, %c0_23, %c0_24], %33 {strides = array<i32>} : memref<1x4x32x128xbf16, #tpu.memory_space<vmem>>, vector<1x1x32x128xbf16>,
    %34 = vector.extract_strided_slice %13 {offsets = [0, 32], sizes = [128, 32], strides = [1, 1]} : vector<128x128xbf16> to vector<128x32xbf16>
    %c0_25 = arith.constant 0 : index
    %c1_26 = arith.constant 1 : index
    %c0_27 = arith.constant 0 : index
    %c0_28 = arith.constant 0 : index
    %35 = vector.load %arg7[%c0_25, %c1_26, %c0_27, %c0_28] : memref<1x4x128x32xbf16, #tpu.memory_space<vmem>>, vector<1x1x128x32xbf16>
    %36 = vector.shape_cast %35 : vector<1x1x128x32xbf16> to vector<128x32xbf16>
    %37 = vector.shape_cast %34 : vector<128x32xbf16> to vector<1x1x128x32xbf16>
    tpu.vector_store %arg7[%c0_25, %c1_26, %c0_27, %c0_28], %37 {strides = array<i32>} : memref<1x4x128x32xbf16, #tpu.memory_space<vmem>>, vector<1x1x128x32xbf16>,
    %38 = vector.extract_strided_slice %8 {offsets = [0, 64], sizes = [128, 32], strides = [1, 1]} : vector<128x128xbf16> to vector<128x32xbf16>
    %c0_29 = arith.constant 0 : index
    %c2 = arith.constant 2 : index
    %c0_30 = arith.constant 0 : index
    %c0_31 = arith.constant 0 : index
    %39 = vector.load %arg5[%c0_29, %c2, %c0_30, %c0_31] : memref<1x4x128x32xbf16, #tpu.memory_space<vmem>>, vector<1x1x128x32xbf16>
    %40 = vector.shape_cast %39 : vector<1x1x128x32xbf16> to vector<128x32xbf16>
    %41 = vector.shape_cast %38 : vector<128x32xbf16> to vector<1x1x128x32xbf16>
    tpu.vector_store %arg5[%c0_29, %c2, %c0_30, %c0_31], %41 {strides = array<i32>} : memref<1x4x128x32xbf16, #tpu.memory_space<vmem>>, vector<1x1x128x32xbf16>,
    %42 = vector.extract_strided_slice %11 {offsets = [64, 0], sizes = [32, 128], strides = [1, 1]} : vector<128x128xbf16> to vector<32x128xbf16>
    %c0_32 = arith.constant 0 : index
    %c2_33 = arith.constant 2 : index
    %c0_34 = arith.constant 0 : index
    %c0_35 = arith.constant 0 : index
    %43 = vector.load %arg6[%c0_32, %c2_33, %c0_34, %c0_35] : memref<1x4x32x128xbf16, #tpu.memory_space<vmem>>, vector<1x1x32x128xbf16>
    %44 = vector.shape_cast %43 : vector<1x1x32x128xbf16> to vector<32x128xbf16>
    %45 = vector.shape_cast %42 : vector<32x128xbf16> to vector<1x1x32x128xbf16>
    tpu.vector_store %arg6[%c0_32, %c2_33, %c0_34, %c0_35], %45 {strides = array<i32>} : memref<1x4x32x128xbf16, #tpu.memory_space<vmem>>, vector<1x1x32x128xbf16>,
    %46 = vector.extract_strided_slice %13 {offsets = [0, 64], sizes = [128, 32], strides = [1, 1]} : vector<128x128xbf16> to vector<128x32xbf16>
    %c0_36 = arith.constant 0 : index
    %c2_37 = arith.constant 2 : index
    %c0_38 = arith.constant 0 : index
    %c0_39 = arith.constant 0 : index
    %47 = vector.load %arg7[%c0_36, %c2_37, %c0_38, %c0_39] : memref<1x4x128x32xbf16, #tpu.memory_space<vmem>>, vector<1x1x128x32xbf16>
    %48 = vector.shape_cast %47 : vector<1x1x128x32xbf16> to vector<128x32xbf16>
    %49 = vector.shape_cast %46 : vector<128x32xbf16> to vector<1x1x128x32xbf16>
    tpu.vector_store %arg7[%c0_36, %c2_37, %c0_38, %c0_39], %49 {strides = array<i32>} : memref<1x4x128x32xbf16, #tpu.memory_space<vmem>>, vector<1x1x128x32xbf16>,
    %50 = vector.extract_strided_slice %8 {offsets = [0, 96], sizes = [128, 32], strides = [1, 1]} : vector<128x128xbf16> to vector<128x32xbf16>
    %c0_40 = arith.constant 0 : index
    %c3 = arith.constant 3 : index
    %c0_41 = arith.constant 0 : index
    %c0_42 = arith.constant 0 : index
    %51 = vector.load %arg5[%c0_40, %c3, %c0_41, %c0_42] : memref<1x4x128x32xbf16, #tpu.memory_space<vmem>>, vector<1x1x128x32xbf16>
    %52 = vector.shape_cast %51 : vector<1x1x128x32xbf16> to vector<128x32xbf16>
    %53 = vector.shape_cast %50 : vector<128x32xbf16> to vector<1x1x128x32xbf16>
    tpu.vector_store %arg5[%c0_40, %c3, %c0_41, %c0_42], %53 {strides = array<i32>} : memref<1x4x128x32xbf16, #tpu.memory_space<vmem>>, vector<1x1x128x32xbf16>,
    %54 = vector.extract_strided_slice %11 {offsets = [96, 0], sizes = [32, 128], strides = [1, 1]} : vector<128x128xbf16> to vector<32x128xbf16>
    %c0_43 = arith.constant 0 : index
    %c3_44 = arith.constant 3 : index
    %c0_45 = arith.constant 0 : index
    %c0_46 = arith.constant 0 : index
    %55 = vector.load %arg6[%c0_43, %c3_44, %c0_45, %c0_46] : memref<1x4x32x128xbf16, #tpu.memory_space<vmem>>, vector<1x1x32x128xbf16>
    %56 = vector.shape_cast %55 : vector<1x1x32x128xbf16> to vector<32x128xbf16>
    %57 = vector.shape_cast %54 : vector<32x128xbf16> to vector<1x1x32x128xbf16>
    tpu.vector_store %arg6[%c0_43, %c3_44, %c0_45, %c0_46], %57 {strides = array<i32>} : memref<1x4x32x128xbf16, #tpu.memory_space<vmem>>, vector<1x1x32x128xbf16>,
    %58 = vector.extract_strided_slice %13 {offsets = [0, 96], sizes = [128, 32], strides = [1, 1]} : vector<128x128xbf16> to vector<128x32xbf16>
    %c0_47 = arith.constant 0 : index
    %c3_48 = arith.constant 3 : index
    %c0_49 = arith.constant 0 : index
    %c0_50 = arith.constant 0 : index
    %59 = vector.load %arg7[%c0_47, %c3_48, %c0_49, %c0_50] : memref<1x4x128x32xbf16, #tpu.memory_space<vmem>>, vector<1x1x128x32xbf16>
    %60 = vector.shape_cast %59 : vector<1x1x128x32xbf16> to vector<128x32xbf16>
    %61 = vector.shape_cast %58 : vector<128x32xbf16> to vector<1x1x128x32xbf16>
    tpu.vector_store %arg7[%c0_47, %c3_48, %c0_49, %c0_50], %61 {strides = array<i32>} : memref<1x4x128x32xbf16, #tpu.memory_space<vmem>>, vector<1x1x128x32xbf16>,
    return
  }
  func.func @transform_0(%arg0: i32, %arg1: i32) -> (i32, i32, i32) {
    %c0_i32 = arith.constant 0 : i32
    %c0_i32_0 = arith.constant 0 : i32
    return %arg0, %arg1, %c0_i32 : i32, i32, i32
  }
  func.func @transform_1(%arg0: i32, %arg1: i32) -> (i32, i32) {
    %c0_i32 = arith.constant 0 : i32
    %c0_i32_0 = arith.constant 0 : i32
    %c0_i32_1 = arith.constant 0 : i32
    return %c0_i32, %c0_i32_0 : i32, i32
  }
  func.func @transform_2(%arg0: i32, %arg1: i32) -> (i32, i32) {
    %c0_i32 = arith.constant 0 : i32
    %c0_i32_0 = arith.constant 0 : i32
    %c0_i32_1 = arith.constant 0 : i32
    return %c0_i32, %c0_i32_0 : i32, i32
  }
  func.func @transform_3(%arg0: i32, %arg1: i32) -> (i32, i32, i32, i32) {
    %c0_i32 = arith.constant 0 : i32
    %c0_i32_0 = arith.constant 0 : i32
    %c0_i32_1 = arith.constant 0 : i32
    return %arg0, %c0_i32, %arg1, %c0_i32_0 : i32, i32, i32, i32
  }
  func.func @transform_4(%arg0: i32, %arg1: i32) -> (i32, i32, i32, i32) {
    %c0_i32 = arith.constant 0 : i32
    %c0_i32_0 = arith.constant 0 : i32
    %c0_i32_1 = arith.constant 0 : i32
    return %arg0, %c0_i32, %c0_i32_0, %arg1 : i32, i32, i32, i32
  }
  func.func @transform_5(%arg0: i32, %arg1: i32) -> (i32, i32, i32, i32) {
    %c0_i32 = arith.constant 0 : i32
    %c0_i32_0 = arith.constant 0 : i32
    %c0_i32_1 = arith.constant 0 : i32
    return %arg0, %c0_i32, %arg1, %c0_i32_0 : i32, i32, i32, i32
  }
}

</mosaic_0001>

<llo_original>
// kernel: tpu_custom_call.1
$region0: #{tpu_custom_call.1}
  #allocation0 [shape = 'u32[]', space=smem, size = 0x4, offset = 0x4, fixed_abs, tag = 'smem constant byte address 0x4 - core index']
  #allocation1 [shape = 'u32[144,128]{1,0:T(1,128)}', space=vmem, size = 0x12000, scoped, tag = 'internal scratch']
  %s0 = inlined_call_operand.hbm [shape: bf16[2,256,128], index: 0, kind: input, shape index: {}]
  %s1 = inlined_call_operand.hbm [shape: bf16[128,384], index: 1, kind: input, shape index: {}]
  %s2 = inlined_call_operand.vmem [shape: f32[1,384], index: 2, kind: input, shape index: {}]
  %s3 = inlined_call_operand.vmem [shape: bf16[2,4,256,32], index: 3, kind: output, shape index: {0}]
  %s4 = inlined_call_operand.hbm [shape: bf16[2,4,32,256], index: 4, kind: output, shape index: {1}]
  %s5 = inlined_call_operand.vmem [shape: bf16[2,4,256,32], index: 5, kind: output, shape index: {2}]
  %6 = xla_tuple %s3, %s4, %s5
  %s7 = sld [smem:[#allocation0]]
  $region143: #{tpu_custom_call.1} parent=0
    _
  %s9 = ssub.s32 1, %s7
  %s10 = scalar_select 0, %s9, %s7
  $region1: #{tpu_custom_call.1} parent=0
    #allocation2 [shape = 'u8[65536]{0}', space=vmem, size = 0x10000, scoped, tag = 'input window, operand 0']
    #allocation3 [shape = 's32[2]{0}', space=sflag, size = 0x8, scoped, tag = 'scoped memory for tpu_custom_call.1']
    #allocation4 [shape = 's32[2]{0}', space=sflag, size = 0x8, scoped, tag = 'scoped memory for tpu_custom_call.1']
    #allocation5 [shape = 'u8[98304]{0}', space=vmem, size = 0x18000, scoped, tag = 'input window, operand 1, single buffered']
    #allocation6 [shape = 's32[1]{0}', space=sflag, size = 0x4, scoped, tag = 'scoped memory for tpu_custom_call.1']
    #allocation7 [shape = 'u8[262144]{0}', space=vmem, size = 0x40000, scoped, tag = 'output window, operand 0']
    #allocation8 [shape = 'u8[65536]{0}', space=vmem, size = 0x10000, scoped, tag = 'output window, operand 1']
    #allocation9 [shape = 'u8[262144]{0}', space=vmem, size = 0x40000, scoped, tag = 'output window, operand 2']
    %11 = vsyncpa [#allocation3], 0
    %s12 = scalar_lea.sflag [#allocation3], 1
    %13 = vsyncpa %s12, 0
    %14 = vsyncpa [#allocation6], 0
    %15 = vsyncpa [#allocation4], 0
    %s16 = scalar_lea.sflag [#allocation4], 1
    %17 = vsyncpa %s16, 0
    loop: start=0, step=1, limit=6
    $region2: #{tpu_custom_call.1} parent=1 // loop_pre_header
      _
    $region3: #{tpu_custom_call.1} parent=1 // loop_header
      %s19 = sphi 0, %s23
      %p20 = scmp.ge.s32.totalorder %s19, 6
      %s26 = sphi 0, %s38
      %s27 = sphi 0, %s34
      %s28 = sphi 0, %s26
      %s29 = sphi 0, %s27
      %s30 = sphi 0, %s28
      %s31 = sphi 0, %s29
      %s43 = sphi 0, %s45
      %s46 = sphi 0, %s43
      %s47 = sphi 0, %s46
      %s63 = sphi 0, %s47
      %s67 = sphi 0, %s67
      %s69 = sphi 0, %s67
      %s70 = sphi 0, %s69
      %s84 = sphi 0, %s70
      %s88 = sphi 0, %s88
      %s90 = sphi 0, %s88
      %s91 = sphi 0, %s90
      %s105 = sphi 0, %s91
      %s113 = sphi 0, %s115
      %s116 = sphi 0, %s113
      %s117 = sphi 0, %s116
      %s133 = sphi 0, %s117
      %s141 = sphi 0, %s143
      %s144 = sphi 0, %s141
      %s145 = sphi 0, %s144
      %s161 = sphi 0, %s145
      %s169 = sphi 0, %s171
      %s172 = sphi 0, %s169
      %s173 = sphi 0, %s172
      %s189 = sphi 0, %s173
    $region4: #{tpu_custom_call.1} parent=1 // loop_header_branch
      %22 = sbr.rel (%p20) target = $region8
    $region5: #{tpu_custom_call.1} parent=1 // loop_body
      %s24 = ssub.s32 %s19, 1
      %s25 = ssub.s32 %s19, 2
      %s32 = sadd.s32 1, %s27
      %p33 = scmp.ge.s32.totalorder %s32, 2
      %s34 = scalar_select %p33, 0, %s32
      %s35 = sadd.s32 1, %s26
      %s36 = scalar_select %p33, %s35, %s26
      %p37 = scmp.ge.s32.totalorder %s36, 2
      %s38 = scalar_select %p37, 0, %s36
      %s39 = ssub.s32 %s26, %s38
      %s40 = ssub.s32 %s27, %s34
      %s41 = sor.u32 %s39, %s40
      %p42 = scmp.eq.s32.totalorder %s41, 0
      %s44 = sadd.s32 %s43, 1
      %s45 = scalar_select %p42, %s43, %s44
      %p48 = pneg %p42
      %p49 = scmp.eq.s32.totalorder %s19, 3
      %p50 = por %p48, %p49
      %p51 = scmp.ne.s32.totalorder %s43, %s46
      %p52 = scmp.eq.s32.totalorder %s19, 0
      %p53 = por %p51, %p52
      %p54 = scmp.ne.s32.totalorder %s43, %s46
      %p55 = scmp.eq.s32.totalorder %s24, 3
      %p56 = por %p54, %p55
      %p57 = scmp.ne.s32.totalorder %s46, %s47
      %p58 = scmp.eq.s32.totalorder %s24, 0
      %p59 = por %p57, %p58
      %p60 = scmp.ne.s32.totalorder %s46, %s47
      %p61 = scmp.eq.s32.totalorder %s25, 3
      %p62 = por %p60, %p61
      %p64 = scmp.ne.s32.totalorder %s47, %s63
      %p65 = scmp.eq.s32.totalorder %s25, 0
      %p66 = por %p64, %p65
      %s68 = sadd.s32 %s67, 1
      %p71 = scmp.eq.s32.totalorder %s19, 3
      %p72 = scmp.ne.s32.totalorder %s67, %s69
      %p73 = scmp.eq.s32.totalorder %s19, 0
      %p74 = por %p72, %p73
      %p75 = scmp.ne.s32.totalorder %s67, %s69
      %p76 = scmp.eq.s32.totalorder %s24, 3
      %p77 = por %p75, %p76
      %p78 = scmp.ne.s32.totalorder %s69, %s70
      %p79 = scmp.eq.s32.totalorder %s24, 0
      %p80 = por %p78, %p79
      %p81 = scmp.ne.s32.totalorder %s69, %s70
      %p82 = scmp.eq.s32.totalorder %s25, 3
      %p83 = por %p81, %p82
      %p85 = scmp.ne.s32.totalorder %s70, %s84
      %p86 = scmp.eq.s32.totalorder %s25, 0
      %p87 = por %p85, %p86
      %s89 = sadd.s32 %s88, 1
      %p92 = scmp.eq.s32.totalorder %s19, 3
      %p93 = scmp.ne.s32.totalorder %s88, %s90
      %p94 = scmp.eq.s32.totalorder %s19, 0
      %p95 = por %p93, %p94
      %p96 = scmp.ne.s32.totalorder %s88, %s90
      %p97 = scmp.eq.s32.totalorder %s24, 3
      %p98 = por %p96, %p97
      %p99 = scmp.ne.s32.totalorder %s90, %s91
      %p100 = scmp.eq.s32.totalorder %s24, 0
      %p101 = por %p99, %p100
      %p102 = scmp.ne.s32.totalorder %s90, %s91
      %p103 = scmp.eq.s32.totalorder %s25, 3
      %p104 = por %p102, %p103
      %p106 = scmp.ne.s32.totalorder %s91, %s105
      %p107 = scmp.eq.s32.totalorder %s25, 0
      %p108 = por %p106, %p107
      %s109 = ssub.s32 %s26, %s38
      %s110 = ssub.s32 %s27, %s34
      %s111 = sor.u32 %s109, %s110
      %p112 = scmp.eq.s32.totalorder %s111, 0
      %s114 = sadd.s32 %s113, 1
      %s115 = scalar_select %p112, %s113, %s114
      %p118 = pneg %p112
      %p119 = scmp.eq.s32.totalorder %s19, 3
      %p120 = por %p118, %p119
      %p121 = scmp.ne.s32.totalorder %s113, %s116
      %p122 = scmp.eq.s32.totalorder %s19, 0
      %p123 = por %p121, %p122
      %p124 = scmp.ne.s32.totalorder %s113, %s116
      %p125 = scmp.eq.s32.totalorder %s24, 3
      %p126 = por %p124, %p125
      %p127 = scmp.ne.s32.totalorder %s116, %s117
      %p128 = scmp.eq.s32.totalorder %s24, 0
      %p129 = por %p127, %p128
      %p130 = scmp.ne.s32.totalorder %s116, %s117
      %p131 = scmp.eq.s32.totalorder %s25, 3
      %p132 = por %p130, %p131
      %p134 = scmp.ne.s32.totalorder %s117, %s133
      %p135 = scmp.eq.s32.totalorder %s25, 0
      %p136 = por %p134, %p135
      %s137 = ssub.s32 %s26, %s38
      %s138 = ssub.s32 %s27, %s34
      %s139 = sor.u32 %s137, %s138
      %p140 = scmp.eq.s32.totalorder %s139, 0
      %s142 = sadd.s32 %s141, 1
      %s143 = scalar_select %p140, %s141, %s142
      %p146 = pneg %p140
      %p147 = scmp.eq.s32.totalorder %s19, 3
      %p148 = por %p146, %p147
      %p149 = scmp.ne.s32.totalorder %s141, %s144
      %p150 = scmp.eq.s32.totalorder %s19, 0
      %p151 = por %p149, %p150
      %p152 = scmp.ne.s32.totalorder %s141, %s144
      %p153 = scmp.eq.s32.totalorder %s24, 3
      %p154 = por %p152, %p153
      %p155 = scmp.ne.s32.totalorder %s144, %s145
      %p156 = scmp.eq.s32.totalorder %s24, 0
      %p157 = por %p155, %p156
      %p158 = scmp.ne.s32.totalorder %s144, %s145
      %p159 = scmp.eq.s32.totalorder %s25, 3
      %p160 = por %p158, %p159
      %p162 = scmp.ne.s32.totalorder %s145, %s161
      %p163 = scmp.eq.s32.totalorder %s25, 0
      %p164 = por %p162, %p163
      %s165 = ssub.s32 %s26, %s38
      %s166 = ssub.s32 %s27, %s34
      %s167 = sor.u32 %s165, %s166
      %p168 = scmp.eq.s32.totalorder %s167, 0
      %s170 = sadd.s32 %s169, 1
      %s171 = scalar_select %p168, %s169, %s170
      %p174 = pneg %p168
      %p175 = scmp.eq.s32.totalorder %s19, 3
      %p176 = por %p174, %p175
      %p177 = scmp.ne.s32.totalorder %s169, %s172
      %p178 = scmp.eq.s32.totalorder %s19, 0
      %p179 = por %p177, %p178
      %p180 = scmp.ne.s32.totalorder %s169, %s172
      %p181 = scmp.eq.s32.totalorder %s24, 3
      %p182 = por %p180, %p181
      %p183 = scmp.ne.s32.totalorder %s172, %s173
      %p184 = scmp.eq.s32.totalorder %s24, 0
      %p185 = por %p183, %p184
      %p186 = scmp.ne.s32.totalorder %s172, %s173
      %p187 = scmp.eq.s32.totalorder %s25, 3
      %p188 = por %p186, %p187
      %p190 = scmp.ne.s32.totalorder %s173, %s189
      %p191 = scmp.eq.s32.totalorder %s25, 0
      %p192 = por %p190, %p191
      %p193 = scmp.le.s32.totalorder 1, %s19
      %p194 = scmp.lt.s32.totalorder %s19, 5
      %p195 = pnand %p193, %p194
      %p196 = pneg %p195
      // Predicated region
      $region9: #{tpu_custom_call.1} parent=5 // pred_check
        _
      $region10: #{tpu_custom_call.1} parent=5 // pred_check_branch
        %198 = sbr.rel (%p195) target = $region12
      $region11: #{tpu_custom_call.1} parent=5 // pred_region
        %s199 = ssub.s32 %s19, 1
        // Predicated region
        $region13: #{tpu_custom_call.1} parent=11 // pred_check
          %p200 = pneg %p80
        $region14: #{tpu_custom_call.1} parent=11 // pred_check_branch
          %202 = sbr.rel (%p200) target = $region16
        $region15: #{tpu_custom_call.1} parent=11 // pred_region
          %s204 = ssub.s32 3072, 3072
          %205 = vsyncadd [#allocation6], %s204
          %s206 = sshll.u32 [#allocation5], 4
          %s207 = int_to_ptr.vmem [resolvable:$true] %s206
          %212 = dma.hbm_to_vmem [thread:$0]  %s1, 3072, %s207, [#allocation6], 192, 192, 12
        $region16: #{tpu_custom_call.1} parent=11 // pred_fallthru
          _
        // Predicated region
        $region17: #{tpu_custom_call.1} parent=11 // pred_check
          %p213 = pneg %p101
        $region18: #{tpu_custom_call.1} parent=11 // pred_check_branch
          %215 = sbr.rel (%p213) target = $region20
        $region19: #{tpu_custom_call.1} parent=11 // pred_region
          _
        $region20: #{tpu_custom_call.1} parent=11 // pred_fallthru
          _
      $region12: #{tpu_custom_call.1} parent=5 // pred_fallthru
        _
      %p216 = scmp.lt.s32.totalorder %s19, 4
      // Predicated region
      $region21: #{tpu_custom_call.1} parent=5 // pred_check
        %p217 = pneg %p216
      $region22: #{tpu_custom_call.1} parent=5 // pred_check_branch
        %219 = sbr.rel (%p217) target = $region24
      $region23: #{tpu_custom_call.1} parent=5 // pred_region
        // Predicated region
        $region25: #{tpu_custom_call.1} parent=23 // pred_check
          %p220 = pneg %p53
        $region26: #{tpu_custom_call.1} parent=23 // pred_check_branch
          %222 = sbr.rel (%p220) target = $region28
        $region27: #{tpu_custom_call.1} parent=23 // pred_region
          %s223 = sand.u32 %s43, 1
          %s224 = scalar_lea.sflag [#allocation3], %s223
          %s225 = sand.u32 %s43, 1
          %s226 = smul.addr %s225, 64
          %s227 = scalar_lea.vmem [#allocation2], %s226
          %s228 = smul.u32 16, %s27
          %s230 = ssub.s32 1024, 1024
          %231 = vsyncadd %s224, %s230
          %s232 = smul.addr %s26, 32
          %s233 = sadd.s32 %s228, %s232
          %s234 = smul.addr %s233, 64
          %s235 = scalar_lea.hbm %s0, %s234
          %s236 = sshll.u32 %s227, 4
          %s237 = int_to_ptr.vmem [resolvable:$true] %s236
          %242 = dma.hbm_to_vmem [thread:$0]  %s235, 1024, %s237, %s224, 64, 64, 4
        $region28: #{tpu_custom_call.1} parent=23 // pred_fallthru
          _
      $region24: #{tpu_custom_call.1} parent=5 // pred_fallthru
        _
      %p243 = scmp.le.s32.totalorder 1, %s19
      %p244 = scmp.lt.s32.totalorder %s19, 5
      %p245 = pnand %p243, %p244
      %p246 = pneg %p245
      // Predicated region
      $region29: #{tpu_custom_call.1} parent=5 // pred_check
        _
      $region30: #{tpu_custom_call.1} parent=5 // pred_check_branch
        %248 = sbr.rel (%p245) target = $region32
      $region31: #{tpu_custom_call.1} parent=5 // pred_region
        %s249 = ssub.s32 %s19, 1
        %s250 = sand.u32 %s46, 1
        %s251 = scalar_lea.sflag [#allocation3], %s250
        %s252 = sand.u32 %s46, 1
        %s253 = smul.addr %s252, 64
        %s254 = scalar_lea.vmem [#allocation2], %s253
        // Predicated region
        $region33: #{tpu_custom_call.1} parent=31 // pred_check
          %p255 = pneg %p59
        $region34: #{tpu_custom_call.1} parent=31 // pred_check_branch
          %257 = sbr.rel (%p255) target = $region36
        $region35: #{tpu_custom_call.1} parent=31 // pred_region
          %258 = dma.done %s251, 1024
        $region36: #{tpu_custom_call.1} parent=31 // pred_fallthru
          _
        // Predicated region
        $region37: #{tpu_custom_call.1} parent=31 // pred_check
          %p259 = pneg %p80
        $region38: #{tpu_custom_call.1} parent=31 // pred_check_branch
          %261 = sbr.rel (%p259) target = $region40
        $region39: #{tpu_custom_call.1} parent=31 // pred_region
          %262 = dma.done [#allocation6], 3072
        $region40: #{tpu_custom_call.1} parent=31 // pred_fallthru
          _
        %s263 = sand.u32 %s46, 1
        %s264 = scalar_lea.sflag [#allocation3], %s263
        %s265 = sand.u32 %s46, 1
        %s266 = smul.addr %s265, 64
        %s267 = scalar_lea.vmem [#allocation2], %s266
        %p268 = pneg %p59
        %p269 = pneg %p56
        %p270 = pneg %p80
        %p271 = pneg %p77
        %p272 = pneg %p101
        %p273 = pneg %p98
        %p274 = pneg %p129
        %p275 = pneg %p126
        %s276 = sand.u32 %s116, 1
        %s277 = sand.u32 %s116, 1
        %s278 = smul.addr %s277, 256
        %s279 = scalar_lea.vmem [#allocation7], %s278
        %p280 = pneg %p157
        %p281 = pneg %p154
        %s282 = sand.u32 %s144, 1
        %s283 = scalar_lea.sflag [#allocation4], %s282
        %s284 = sand.u32 %s144, 1
        %s285 = smul.addr %s284, 64
        %s286 = scalar_lea.vmem [#allocation8], %s285
        %p287 = pneg %p185
        %p288 = pneg %p182
        %s289 = sand.u32 %s172, 1
        %s290 = sand.u32 %s172, 1
        %s291 = smul.addr %s290, 256
        %s292 = scalar_lea.vmem [#allocation9], %s291
        %s293 = smul.u32 16, %s29
        %s294 = smul.u32 16, %s29
        %s295 = smul.u32 16, %s29
        %v297 = vld [vmem:[%s254] sm:$0xf]
        %v298 = vld [vmem:[%s254 + $0x4] sm:$0xf]
        %v299 = vld [vmem:[%s254 + $0x8] sm:$0xf]
        %v300 = vld [vmem:[%s254 + $0xc] sm:$0xf]
        %v301 = vld [vmem:[%s254 + $0x10] sm:$0xf]
        %v302 = vld [vmem:[%s254 + $0x14] sm:$0xf]
        %v303 = vld [vmem:[%s254 + $0x18] sm:$0xf]
        %v304 = vld [vmem:[%s254 + $0x1c] sm:$0xf]
        %v305 = vld [vmem:[%s254 + $0x20] sm:$0xf]
        %v306 = vld [vmem:[%s254 + $0x24] sm:$0xf]
        %v307 = vld [vmem:[%s254 + $0x28] sm:$0xf]
        %v308 = vld [vmem:[%s254 + $0x2c] sm:$0xf]
        %v309 = vld [vmem:[%s254 + $0x30] sm:$0xf]
        %v310 = vld [vmem:[%s254 + $0x34] sm:$0xf]
        %v311 = vld [vmem:[%s254 + $0x38] sm:$0xf]
        %v312 = vld [vmem:[%s254 + $0x3c] sm:$0xf]
        %v313 = vld [vmem:[#allocation5] sm:$0xff]
        %v314 = vld [vmem:[#allocation5 + $0x8] sm:$0xf]
        %v315 = vld [vmem:[#allocation5 + $0xc] sm:$0xff]
        %v316 = vld [vmem:[#allocation5 + $0x14] sm:$0xf]
        %v317 = vld [vmem:[#allocation5 + $0x18] sm:$0xff]
        %v318 = vld [vmem:[#allocation5 + $0x20] sm:$0xf]
        %v319 = vld [vmem:[#allocation5 + $0x24] sm:$0xff]
        %v320 = vld [vmem:[#allocation5 + $0x2c] sm:$0xf]
        %v321 = vld [vmem:[#allocation5 + $0x30] sm:$0xff]
        %v322 = vld [vmem:[#allocation5 + $0x38] sm:$0xf]
        %v323 = vld [vmem:[#allocation5 + $0x3c] sm:$0xff]
        %v324 = vld [vmem:[#allocation5 + $0x44] sm:$0xf]
        %v325 = vld [vmem:[#allocation5 + $0x48] sm:$0xff]
        %v326 = vld [vmem:[#allocation5 + $0x50] sm:$0xf]
        %v327 = vld [vmem:[#allocation5 + $0x54] sm:$0xff]
        %v328 = vld [vmem:[#allocation5 + $0x5c] sm:$0xf]
        %v329 = vld [vmem:[#allocation5 + $0x60] sm:$0xff]
        %v330 = vld [vmem:[#allocation5 + $0x68] sm:$0xf]
        %v331 = vld [vmem:[#allocation5 + $0x6c] sm:$0xff]
        %v332 = vld [vmem:[#allocation5 + $0x74] sm:$0xf]
        %v333 = vld [vmem:[#allocation5 + $0x78] sm:$0xff]
        %v334 = vld [vmem:[#allocation5 + $0x80] sm:$0xf]
        %v335 = vld [vmem:[#allocation5 + $0x84] sm:$0xff]
        %v336 = vld [vmem:[#allocation5 + $0x8c] sm:$0xf]
        %v337 = vld [vmem:[#allocation5 + $0x90] sm:$0xff]
        %v338 = vld [vmem:[#allocation5 + $0x98] sm:$0xf]
        %v339 = vld [vmem:[#allocation5 + $0x9c] sm:$0xff]
        %v340 = vld [vmem:[#allocation5 + $0xa4] sm:$0xf]
        %v341 = vld [vmem:[#allocation5 + $0xa8] sm:$0xff]
        %v342 = vld [vmem:[#allocation5 + $0xb0] sm:$0xf]
        %v343 = vld [vmem:[#allocation5 + $0xb4] sm:$0xff]
        %v344 = vld [vmem:[#allocation5 + $0xbc] sm:$0xf]
        %v345 = vld [vmem:[%s2] sm:$0x7]
        %v347 = vlaneseq
        %v348 = vshrl.u32 %v347, 7
        %v349 = vsub.s32 0, %v348
        %v350 = vrot.slane %v345, %v349
        %v351 = vlaneseq
        %v352 = vshrl.u32 %v351, 7
        %v353 = vsub.s32 1, %v352
        %v354 = vrot.slane %v345, %v353
        %v355 = vlaneseq
        %v356 = vshrl.u32 %v355, 7
        %v357 = vsub.s32 2, %v356
        %v358 = vrot.slane %v345, %v357
        %v378 = vunpack.c.l.b16 %v297
        %v379 = vunpack.c.l.b16 %v298
        %v380 = vunpack.c.l.b16 %v299
        %v381 = vunpack.c.l.b16 %v300
        %v382 = vunpack.c.l.b16 %v301
        %v383 = vunpack.c.l.b16 %v302
        %v384 = vunpack.c.l.b16 %v303
        %v385 = vunpack.c.l.b16 %v304
        %v386 = vunpack.c.l.b16 %v305
        %v387 = vunpack.c.l.b16 %v306
        %v388 = vunpack.c.l.b16 %v307
        %v389 = vunpack.c.l.b16 %v308
        %v390 = vunpack.c.l.b16 %v309
        %v391 = vunpack.c.l.b16 %v310
        %v392 = vunpack.c.l.b16 %v311
        %v393 = vunpack.c.l.b16 %v312
        %v394 = vpack.c.b16 %v379, %v378
        %v395 = vpack.c.b16 %v381, %v380
        %v396 = vpack.c.b16 %v383, %v382
        %v397 = vpack.c.b16 %v385, %v384
        %v398 = vpack.c.b16 %v387, %v386
        %v399 = vpack.c.b16 %v389, %v388
        %v400 = vpack.c.b16 %v391, %v390
        %v401 = vpack.c.b16 %v393, %v392
        %v442 = vunpack.c.l.b16 %v313
        %v443 = vunpack.c.h.b16 %v313
        %v444 = vunpack.c.l.b16 %v314
        %v445 = vunpack.c.l.b16 %v315
        %v446 = vunpack.c.h.b16 %v315
        %v447 = vunpack.c.l.b16 %v316
        %v448 = vunpack.c.l.b16 %v317
        %v449 = vunpack.c.h.b16 %v317
        %v450 = vunpack.c.l.b16 %v318
        %v451 = vunpack.c.l.b16 %v319
        %v452 = vunpack.c.h.b16 %v319
        %v453 = vunpack.c.l.b16 %v320
        %v454 = vunpack.c.l.b16 %v321
        %v455 = vunpack.c.h.b16 %v321
        %v456 = vunpack.c.l.b16 %v322
        %v457 = vunpack.c.l.b16 %v323
        %v458 = vunpack.c.h.b16 %v323
        %v459 = vunpack.c.l.b16 %v324
        %v460 = vunpack.c.l.b16 %v325
        %v461 = vunpack.c.h.b16 %v325
        %v462 = vunpack.c.l.b16 %v326
        %v463 = vunpack.c.l.b16 %v327
        %v464 = vunpack.c.h.b16 %v327
        %v465 = vunpack.c.l.b16 %v328
        %v466 = vunpack.c.l.b16 %v329
        %v467 = vunpack.c.h.b16 %v329
        %v468 = vunpack.c.l.b16 %v330
        %v469 = vunpack.c.l.b16 %v331
        %v470 = vunpack.c.h.b16 %v331
        %v471 = vunpack.c.l.b16 %v332
        %v472 = vunpack.c.l.b16 %v333
        %v473 = vunpack.c.h.b16 %v333
        %v474 = vunpack.c.l.b16 %v334
        %v475 = vunpack.c.l.b16 %v335
        %v476 = vunpack.c.h.b16 %v335
        %v477 = vunpack.c.l.b16 %v336
        %v478 = vunpack.c.l.b16 %v337
        %v479 = vunpack.c.h.b16 %v337
        %v480 = vunpack.c.l.b16 %v338
        %v481 = vunpack.c.l.b16 %v339
        %v482 = vunpack.c.h.b16 %v339
        %v483 = vunpack.c.l.b16 %v340
        %v484 = vunpack.c.l.b16 %v341
        %v485 = vunpack.c.h.b16 %v341
        %v486 = vunpack.c.l.b16 %v342
        %v487 = vunpack.c.l.b16 %v343
        %v488 = vunpack.c.h.b16 %v343
        %v489 = vunpack.c.l.b16 %v344
        %v490 = vpack.c.b16 %v445, %v442
        %v491 = vpack.c.b16 %v446, %v443
        %v492 = vpack.c.b16 %v447, %v444
        %v493 = vpack.c.b16 %v451, %v448
        %v494 = vpack.c.b16 %v452, %v449
        %v495 = vpack.c.b16 %v453, %v450
        %v496 = vpack.c.b16 %v457, %v454
        %v497 = vpack.c.b16 %v458, %v455
        %v498 = vpack.c.b16 %v459, %v456
        %v499 = vpack.c.b16 %v463, %v460
        %v500 = vpack.c.b16 %v464, %v461
        %v501 = vpack.c.b16 %v465, %v462
        %v502 = vpack.c.b16 %v469, %v466
        %v503 = vpack.c.b16 %v470, %v467
        %v504 = vpack.c.b16 %v471, %v468
        %v505 = vpack.c.b16 %v475, %v472
        %v506 = vpack.c.b16 %v476, %v473
        %v507 = vpack.c.b16 %v477, %v474
        %v508 = vpack.c.b16 %v481, %v478
        %v509 = vpack.c.b16 %v482, %v479
        %v510 = vpack.c.b16 %v483, %v480
        %v511 = vpack.c.b16 %v487, %v484
        %v512 = vpack.c.b16 %v488, %v485
        %v513 = vpack.c.b16 %v489, %v486
        %538 = vmatprep.subr.bf16.mxu0 %v512
        %539 = vmatpush1.bf16.msra.mxu0 %v511
        %540 = vmatprep.subr.bf16.mxu0 %v509
        %541 = vmatpush1.bf16.msra.mxu0 %v508
        %542 = vmatprep.subr.bf16.mxu0 %v506
        %543 = vmatpush1.bf16.msra.mxu0 %v505
        %544 = vmatprep.subr.bf16.mxu0 %v503
        %545 = vmatpush1.bf16.msra.mxu0 %v502
        %546 = vmatprep.subr.bf16.mxu0 %v500
        %547 = vmatpush1.bf16.msra.mxu0 %v499
        %548 = vmatprep.subr.bf16.mxu0 %v497
        %549 = vmatpush1.bf16.msra.mxu0 %v496
        %550 = vmatprep.subr.bf16.mxu0 %v494
        %551 = vmatpush1.bf16.msra.mxu0 %v493
        %552 = vmatprep.subr.bf16.mxu0 %v491
        %553 = vmatpush1.bf16.msra.mxu0 %v490
        %554 = vmatprep.subr.bf16.mxu0 0
        %555 = vmatpush2.bf16.msra.mxu0 0
        %556 = vmatprep.subr.bf16.mxu0 0
        %557 = vmatpush2.bf16.msra.mxu0 0
        %558 = vmatprep.subr.bf16.mxu0 0
        %559 = vmatpush2.bf16.msra.mxu0 0
        %560 = vmatprep.subr.bf16.mxu0 0
        %561 = vmatpush2.bf16.msra.mxu0 0
        %562 = vmatprep.subr.bf16.mxu0 0
        %563 = vmatpush2.bf16.msra.mxu0 0
        %564 = vmatprep.subr.bf16.mxu0 0
        %565 = vmatpush2.bf16.msra.mxu0 0
        %566 = vmatprep.subr.bf16.mxu0 0
        %567 = vmatpush2.bf16.msra.mxu0 0
        %568 = vmatprep.subr.bf16.mxu0 0
        %569 = vmatpush2.bf16.msra.mxu0 0
        %570 = vmatprep.mubr.bf16.mxu0 0
        %571 = vmatmul.mubr.bf16.gmra.mxu0 %v394
        %v572 = vpop.f32.mrf.mxu0
        %v573 = vadd.f32 %v350, %v572
        %v574 = vpop.f32.mrf.mxu0
        %v575 = vadd.f32 %v354, %v574
        %v576 = vpop.f32.mrf.mxu0
        %v577 = vadd.f32 %v350, %v576
        %v578 = vpop.f32.mrf.mxu0
        %v579 = vadd.f32 %v354, %v578
        %580 = vmatprep.mubr.bf16.mxu0 0
        %581 = vmatmul.mubr.bf16.gmra.mxu0 %v395
        %v582 = vpop.f32.mrf.mxu0
        %v583 = vadd.f32 %v350, %v582
        %v584 = vpop.f32.mrf.mxu0
        %v585 = vadd.f32 %v354, %v584
        %v586 = vpop.f32.mrf.mxu0
        %v587 = vadd.f32 %v350, %v586
        %v588 = vpop.f32.mrf.mxu0
        %v589 = vadd.f32 %v354, %v588
        %590 = vmatprep.mubr.bf16.mxu0 0
        %591 = vmatmul.mubr.bf16.gmra.mxu0 %v396
        %v592 = vpop.f32.mrf.mxu0
        %v593 = vadd.f32 %v350, %v592
        %v594 = vpop.f32.mrf.mxu0
        %v595 = vadd.f32 %v354, %v594
        %v596 = vpop.f32.mrf.mxu0
        %v597 = vadd.f32 %v350, %v596
        %v598 = vpop.f32.mrf.mxu0
        %v599 = vadd.f32 %v354, %v598
        %600 = vmatprep.mubr.bf16.mxu0 0
        %601 = vmatmul.mubr.bf16.gmra.mxu0 %v397
        %v602 = vpop.f32.mrf.mxu0
        %v603 = vadd.f32 %v350, %v602
        %v604 = vpop.f32.mrf.mxu0
        %v605 = vadd.f32 %v354, %v604
        %v606 = vpop.f32.mrf.mxu0
        %v607 = vadd.f32 %v350, %v606
        %v608 = vpop.f32.mrf.mxu0
        %v609 = vadd.f32 %v354, %v608
        %610 = vmatprep.mubr.bf16.mxu0 0
        %611 = vmatmul.mubr.bf16.gmra.mxu0 %v398
        %v612 = vpop.f32.mrf.mxu0
        %v613 = vadd.f32 %v350, %v612
        %v614 = vpop.f32.mrf.mxu0
        %v615 = vadd.f32 %v354, %v614
        %v616 = vpop.f32.mrf.mxu0
        %v617 = vadd.f32 %v350, %v616
        %v618 = vpop.f32.mrf.mxu0
        %v619 = vadd.f32 %v354, %v618
        %620 = vmatprep.mubr.bf16.mxu0 0
        %621 = vmatmul.mubr.bf16.gmra.mxu0 %v399
        %v622 = vpop.f32.mrf.mxu0
        %v623 = vadd.f32 %v350, %v622
        %v624 = vpop.f32.mrf.mxu0
        %v625 = vadd.f32 %v354, %v624
        %v626 = vpop.f32.mrf.mxu0
        %v627 = vadd.f32 %v350, %v626
        %v628 = vpop.f32.mrf.mxu0
        %v629 = vadd.f32 %v354, %v628
        %630 = vmatprep.mubr.bf16.mxu0 0
        %631 = vmatmul.mubr.bf16.gmra.mxu0 %v400
        %v632 = vpop.f32.mrf.mxu0
        %v633 = vadd.f32 %v350, %v632
        %v634 = vpop.f32.mrf.mxu0
        %v635 = vadd.f32 %v354, %v634
        %v636 = vpop.f32.mrf.mxu0
        %v637 = vadd.f32 %v350, %v636
        %v638 = vpop.f32.mrf.mxu0
        %v639 = vadd.f32 %v354, %v638
        %640 = vmatprep.mubr.bf16.mxu0 0
        %641 = vmatmul.mubr.bf16.gmra.mxu0 %v401
        %v642 = vpop.f32.mrf.mxu0
        %v643 = vadd.f32 %v350, %v642
        %v644 = vpop.f32.mrf.mxu0
        %v645 = vadd.f32 %v354, %v644
        %v646 = vpop.f32.mrf.mxu0
        %v647 = vadd.f32 %v350, %v646
        %v648 = vpop.f32.mrf.mxu0
        %v649 = vadd.f32 %v354, %v648
        %650 = vdwg.mxu0
        %651 = vmatprep.subr.bf16.mxu0 0
        %652 = vmatpush1.bf16.msra.mxu0 %v513
        %653 = vmatprep.subr.bf16.mxu0 0
        %654 = vmatpush1.bf16.msra.mxu0 %v510
        %655 = vmatprep.subr.bf16.mxu0 0
        %656 = vmatpush1.bf16.msra.mxu0 %v507
        %657 = vmatprep.subr.bf16.mxu0 0
        %658 = vmatpush1.bf16.msra.mxu0 %v504
        %659 = vmatprep.subr.bf16.mxu0 0
        %660 = vmatpush1.bf16.msra.mxu0 %v501
        %661 = vmatprep.subr.bf16.mxu0 0
        %662 = vmatpush1.bf16.msra.mxu0 %v498
        %663 = vmatprep.subr.bf16.mxu0 0
        %664 = vmatpush1.bf16.msra.mxu0 %v495
        %665 = vmatprep.subr.bf16.mxu0 0
        %666 = vmatpush1.bf16.msra.mxu0 %v492
        %667 = vmatprep.subr.bf16.mxu0 0
        %668 = vmatpush2.bf16.msra.mxu0 0
        %669 = vmatprep.subr.bf16.mxu0 0
        %670 = vmatpush2.bf16.msra.mxu0 0
        %671 = vmatprep.subr.bf16.mxu0 0
        %672 = vmatpush2.bf16.msra.mxu0 0
        %673 = vmatprep.subr.bf16.mxu0 0
        %674 = vmatpush2.bf16.msra.mxu0 0
        %675 = vmatprep.subr.bf16.mxu0 0
        %676 = vmatpush2.bf16.msra.mxu0 0
        %677 = vmatprep.subr.bf16.mxu0 0
        %678 = vmatpush2.bf16.msra.mxu0 0
        %679 = vmatprep.subr.bf16.mxu0 0
        %680 = vmatpush2.bf16.msra.mxu0 0
        %681 = vmatprep.subr.bf16.mxu0 0
        %682 = vmatpush2.bf16.msra.mxu0 0
        %683 = vmatprep.mubr.bf16.mxu0 0
        %684 = vmatmul.mubr.bf16.gmra.mxu0 %v394
        %v685 = vpop.f32.mrf.mxu0
        %v686 = vadd.f32 %v358, %v685
        %v687 = vpop.f32.mrf.mxu0
        %v688 = vpop.f32.mrf.mxu0
        %v689 = vadd.f32 %v358, %v688
        %v690 = vpop.f32.mrf.mxu0
        %691 = vmatprep.mubr.bf16.mxu0 0
        %692 = vmatmul.mubr.bf16.gmra.mxu0 %v395
        %v693 = vpop.f32.mrf.mxu0
        %v694 = vadd.f32 %v358, %v693
        %v695 = vpop.f32.mrf.mxu0
        %v696 = vpop.f32.mrf.mxu0
        %v697 = vadd.f32 %v358, %v696
        %v698 = vpop.f32.mrf.mxu0
        %699 = vmatprep.mubr.bf16.mxu0 0
        %700 = vmatmul.mubr.bf16.gmra.mxu0 %v396
        %v701 = vpop.f32.mrf.mxu0
        %v702 = vadd.f32 %v358, %v701
        %v703 = vpop.f32.mrf.mxu0
        %v704 = vpop.f32.mrf.mxu0
        %v705 = vadd.f32 %v358, %v704
        %v706 = vpop.f32.mrf.mxu0
        %707 = vmatprep.mubr.bf16.mxu0 0
        %708 = vmatmul.mubr.bf16.gmra.mxu0 %v397
        %v709 = vpop.f32.mrf.mxu0
        %v710 = vadd.f32 %v358, %v709
        %v711 = vpop.f32.mrf.mxu0
        %v712 = vpop.f32.mrf.mxu0
        %v713 = vadd.f32 %v358, %v712
        %v714 = vpop.f32.mrf.mxu0
        %715 = vmatprep.mubr.bf16.mxu0 0
        %716 = vmatmul.mubr.bf16.gmra.mxu0 %v398
        %v717 = vpop.f32.mrf.mxu0
        %v718 = vadd.f32 %v358, %v717
        %v719 = vpop.f32.mrf.mxu0
        %v720 = vpop.f32.mrf.mxu0
        %v721 = vadd.f32 %v358, %v720
        %v722 = vpop.f32.mrf.mxu0
        %723 = vmatprep.mubr.bf16.mxu0 0
        %724 = vmatmul.mubr.bf16.gmra.mxu0 %v399
        %v725 = vpop.f32.mrf.mxu0
        %v726 = vadd.f32 %v358, %v725
        %v727 = vpop.f32.mrf.mxu0
        %v728 = vpop.f32.mrf.mxu0
        %v729 = vadd.f32 %v358, %v728
        %v730 = vpop.f32.mrf.mxu0
        %731 = vmatprep.mubr.bf16.mxu0 0
        %732 = vmatmul.mubr.bf16.gmra.mxu0 %v400
        %v733 = vpop.f32.mrf.mxu0
        %v734 = vadd.f32 %v358, %v733
        %v735 = vpop.f32.mrf.mxu0
        %v736 = vpop.f32.mrf.mxu0
        %v737 = vadd.f32 %v358, %v736
        %v738 = vpop.f32.mrf.mxu0
        %739 = vmatprep.mubr.bf16.mxu0 0
        %740 = vmatmul.mubr.bf16.gmra.mxu0 %v401
        %v741 = vpop.f32.mrf.mxu0
        %v742 = vadd.f32 %v358, %v741
        %v743 = vpop.f32.mrf.mxu0
        %v744 = vpop.f32.mrf.mxu0
        %v745 = vadd.f32 %v358, %v744
        %v746 = vpop.f32.mrf.mxu0
        %747 = vdwg.mxu0
        %v748 = vpack.c.bf16 %v577, %v573
        %v749 = vpack.c.bf16 %v587, %v583
        %v750 = vpack.c.bf16 %v597, %v593
        %v751 = vpack.c.bf16 %v607, %v603
        %v752 = vpack.c.bf16 %v617, %v613
        %v753 = vpack.c.bf16 %v627, %v623
        %v754 = vpack.c.bf16 %v637, %v633
        %v755 = vpack.c.bf16 %v647, %v643
        %756 = vxpose.xlu0.b32.start [1/16] %v575, 128
        %757 = vxpose.xlu0.b32.cont [2/16] %v579, 128
        %758 = vxpose.xlu0.b32.cont [3/16] %v585, 128
        %759 = vxpose.xlu0.b32.cont [4/16] %v589, 128
        %760 = vxpose.xlu0.b32.cont [5/16] %v595, 128
        %761 = vxpose.xlu0.b32.cont [6/16] %v599, 128
        %762 = vxpose.xlu0.b32.cont [7/16] %v605, 128
        %763 = vxpose.xlu0.b32.cont [8/16] %v609, 128
        %764 = vxpose.xlu0.b32.cont [9/16] %v615, 128
        %765 = vxpose.xlu0.b32.cont [10/16] %v619, 128
        %766 = vxpose.xlu0.b32.cont [11/16] %v625, 128
        %767 = vxpose.xlu0.b32.cont [12/16] %v629, 128
        %768 = vxpose.xlu0.b32.cont [13/16] %v635, 128
        %769 = vxpose.xlu0.b32.cont [14/16] %v639, 128
        %770 = vxpose.xlu0.b32.cont [15/16] %v645, 128
        %771 = vxpose.xlu0.b32.end [16/16] %v649, 128
        %v772 = vpop.trf.xlu0
        %v773 = vpop.trf.xlu0
        %v774 = vpop.trf.xlu0
        %v775 = vpop.trf.xlu0
        %v776 = vpop.trf.xlu0
        %v777 = vpop.trf.xlu0
        %v778 = vpop.trf.xlu0
        %v779 = vpop.trf.xlu0
        %v780 = vpop.trf.xlu0
        %v781 = vpop.trf.xlu0
        %v782 = vpop.trf.xlu0
        %v783 = vpop.trf.xlu0
        %v784 = vpop.trf.xlu0
        %v785 = vpop.trf.xlu0
        %v786 = vpop.trf.xlu0
        %v787 = vpop.trf.xlu0
        %v788 = vpack.c.bf16 %v773, %v772
        %v789 = vpack.c.bf16 %v775, %v774
        %v790 = vpack.c.bf16 %v777, %v776
        %v791 = vpack.c.bf16 %v779, %v778
        %v792 = vpack.c.bf16 %v781, %v780
        %v793 = vpack.c.bf16 %v783, %v782
        %v794 = vpack.c.bf16 %v785, %v784
        %v795 = vpack.c.bf16 %v787, %v786
        %v796 = vpack.c.bf16 %v689, %v686
        %v797 = vpack.c.bf16 %v697, %v694
        %v798 = vpack.c.bf16 %v705, %v702
        %v799 = vpack.c.bf16 %v713, %v710
        %v800 = vpack.c.bf16 %v721, %v718
        %v801 = vpack.c.bf16 %v729, %v726
        %v802 = vpack.c.bf16 %v737, %v734
        %v803 = vpack.c.bf16 %v745, %v742
        %v812 = vunpack.c.l.b16 %v748
        %v813 = vunpack.c.h.b16 %v748
        %v814 = vunpack.c.l.b16 %v749
        %v815 = vunpack.c.h.b16 %v749
        %v816 = vunpack.c.l.b16 %v750
        %v817 = vunpack.c.h.b16 %v750
        %v818 = vunpack.c.l.b16 %v751
        %v819 = vunpack.c.h.b16 %v751
        %v820 = vunpack.c.l.b16 %v752
        %v821 = vunpack.c.h.b16 %v752
        %v822 = vunpack.c.l.b16 %v753
        %v823 = vunpack.c.h.b16 %v753
        %v824 = vunpack.c.l.b16 %v754
        %v825 = vunpack.c.h.b16 %v754
        %v826 = vunpack.c.l.b16 %v755
        %v827 = vunpack.c.h.b16 %v755
        %v828 = vpack.c.b16 %v812, %v812
        %v829 = vpack.c.b16 %v813, %v813
        %v830 = vpack.c.b16 %v814, %v814
        %v831 = vpack.c.b16 %v815, %v815
        %v832 = vpack.c.b16 %v816, %v816
        %v833 = vpack.c.b16 %v817, %v817
        %v834 = vpack.c.b16 %v818, %v818
        %v835 = vpack.c.b16 %v819, %v819
        %v836 = vpack.c.b16 %v820, %v820
        %v837 = vpack.c.b16 %v821, %v821
        %v838 = vpack.c.b16 %v822, %v822
        %v839 = vpack.c.b16 %v823, %v823
        %v840 = vpack.c.b16 %v824, %v824
        %v841 = vpack.c.b16 %v825, %v825
        %v842 = vpack.c.b16 %v826, %v826
        %v843 = vpack.c.b16 %v827, %v827
        %vm860 = vcmask 257024
        %861 = vst.msk [vmem:[%s279] sm:$0xf] %vm860, %v828
        %862 = vst.msk [vmem:[%s279 + $0x4] sm:$0xf] %vm860, %v829
        %863 = vst.msk [vmem:[%s279 + $0x8] sm:$0xf] %vm860, %v830
        %864 = vst.msk [vmem:[%s279 + $0xc] sm:$0xf] %vm860, %v831
        %865 = vst.msk [vmem:[%s279 + $0x10] sm:$0xf] %vm860, %v832
        %866 = vst.msk [vmem:[%s279 + $0x14] sm:$0xf] %vm860, %v833
        %867 = vst.msk [vmem:[%s279 + $0x18] sm:$0xf] %vm860, %v834
        %868 = vst.msk [vmem:[%s279 + $0x1c] sm:$0xf] %vm860, %v835
        %869 = vst.msk [vmem:[%s279 + $0x20] sm:$0xf] %vm860, %v836
        %870 = vst.msk [vmem:[%s279 + $0x24] sm:$0xf] %vm860, %v837
        %871 = vst.msk [vmem:[%s279 + $0x28] sm:$0xf] %vm860, %v838
        %872 = vst.msk [vmem:[%s279 + $0x2c] sm:$0xf] %vm860, %v839
        %873 = vst.msk [vmem:[%s279 + $0x30] sm:$0xf] %vm860, %v840
        %874 = vst.msk [vmem:[%s279 + $0x34] sm:$0xf] %vm860, %v841
        %875 = vst.msk [vmem:[%s279 + $0x38] sm:$0xf] %vm860, %v842
        %876 = vst.msk [vmem:[%s279 + $0x3c] sm:$0xf] %vm860, %v843
        %v879 = vunpack.c.l.b16 %v788
        %v880 = vunpack.c.h.b16 %v788
        %v881 = vunpack.c.l.b16 %v789
        %v882 = vunpack.c.h.b16 %v789
        %v883 = vpack.c.b16 %v879, %v879
        %v884 = vpack.c.b16 %v880, %v880
        %v885 = vpack.c.b16 %v881, %v881
        %v886 = vpack.c.b16 %v882, %v882
        %891 = vst [vmem:[%s286] sm:$0xf] %v883
        %892 = vst [vmem:[%s286 + $0x4] sm:$0xf] %v884
        %893 = vst [vmem:[%s286 + $0x8] sm:$0xf] %v885
        %894 = vst [vmem:[%s286 + $0xc] sm:$0xf] %v886
        %v903 = vunpack.c.l.b16 %v796
        %v904 = vunpack.c.h.b16 %v796
        %v905 = vunpack.c.l.b16 %v797
        %v906 = vunpack.c.h.b16 %v797
        %v907 = vunpack.c.l.b16 %v798
        %v908 = vunpack.c.h.b16 %v798
        %v909 = vunpack.c.l.b16 %v799
        %v910 = vunpack.c.h.b16 %v799
        %v911 = vunpack.c.l.b16 %v800
        %v912 = vunpack.c.h.b16 %v800
        %v913 = vunpack.c.l.b16 %v801
        %v914 = vunpack.c.h.b16 %v801
        %v915 = vunpack.c.l.b16 %v802
        %v916 = vunpack.c.h.b16 %v802
        %v917 = vunpack.c.l.b16 %v803
        %v918 = vunpack.c.h.b16 %v803
        %v919 = vpack.c.b16 %v903, %v903
        %v920 = vpack.c.b16 %v904, %v904
        %v921 = vpack.c.b16 %v905, %v905
        %v922 = vpack.c.b16 %v906, %v906
        %v923 = vpack.c.b16 %v907, %v907
        %v924 = vpack.c.b16 %v908, %v908
        %v925 = vpack.c.b16 %v909, %v909
        %v926 = vpack.c.b16 %v910, %v910
        %v927 = vpack.c.b16 %v911, %v911
        %v928 = vpack.c.b16 %v912, %v912
        %v929 = vpack.c.b16 %v913, %v913
        %v930 = vpack.c.b16 %v914, %v914
        %v931 = vpack.c.b16 %v915, %v915
        %v932 = vpack.c.b16 %v916, %v916
        %v933 = vpack.c.b16 %v917, %v917
        %v934 = vpack.c.b16 %v918, %v918
        %951 = vst.msk [vmem:[%s292] sm:$0xf] %vm860, %v919
        %952 = vst.msk [vmem:[%s292 + $0x4] sm:$0xf] %vm860, %v920
        %953 = vst.msk [vmem:[%s292 + $0x8] sm:$0xf] %vm860, %v921
        %954 = vst.msk [vmem:[%s292 + $0xc] sm:$0xf] %vm860, %v922
        %955 = vst.msk [vmem:[%s292 + $0x10] sm:$0xf] %vm860, %v923
        %956 = vst.msk [vmem:[%s292 + $0x14] sm:$0xf] %vm860, %v924
        %957 = vst.msk [vmem:[%s292 + $0x18] sm:$0xf] %vm860, %v925
        %958 = vst.msk [vmem:[%s292 + $0x1c] sm:$0xf] %vm860, %v926
        %959 = vst.msk [vmem:[%s292 + $0x20] sm:$0xf] %vm860, %v927
        %960 = vst.msk [vmem:[%s292 + $0x24] sm:$0xf] %vm860, %v928
        %961 = vst.msk [vmem:[%s292 + $0x28] sm:$0xf] %vm860, %v929
        %962 = vst.msk [vmem:[%s292 + $0x2c] sm:$0xf] %vm860, %v930
        %963 = vst.msk [vmem:[%s292 + $0x30] sm:$0xf] %vm860, %v931
        %964 = vst.msk [vmem:[%s292 + $0x34] sm:$0xf] %vm860, %v932
        %965 = vst.msk [vmem:[%s292 + $0x38] sm:$0xf] %vm860, %v933
        %966 = vst.msk [vmem:[%s292 + $0x3c] sm:$0xf] %vm860, %v934
        %967 = vrot.lane.b32.xlu0 %v828, 96
        %v968 = vpop.permute.xlu0 %967
        %969 = vrot.lane.b32.xlu0 %v829, 96
        %v970 = vpop.permute.xlu0 %969
        %971 = vrot.lane.b32.xlu0 %v830, 96
        %v972 = vpop.permute.xlu0 %971
        %973 = vrot.lane.b32.xlu0 %v831, 96
        %v974 = vpop.permute.xlu0 %973
        %975 = vrot.lane.b32.xlu0 %v832, 96
        %v976 = vpop.permute.xlu0 %975
        %977 = vrot.lane.b32.xlu0 %v833, 96
        %v978 = vpop.permute.xlu0 %977
        %979 = vrot.lane.b32.xlu0 %v834, 96
        %v980 = vpop.permute.xlu0 %979
        %981 = vrot.lane.b32.xlu0 %v835, 96
        %v982 = vpop.permute.xlu0 %981
        %983 = vrot.lane.b32.xlu0 %v836, 96
        %v984 = vpop.permute.xlu0 %983
        %985 = vrot.lane.b32.xlu0 %v837, 96
        %v986 = vpop.permute.xlu0 %985
        %987 = vrot.lane.b32.xlu0 %v838, 96
        %v988 = vpop.permute.xlu0 %987
        %989 = vrot.lane.b32.xlu0 %v839, 96
        %v990 = vpop.permute.xlu0 %989
        %991 = vrot.lane.b32.xlu0 %v840, 96
        %v992 = vpop.permute.xlu0 %991
        %993 = vrot.lane.b32.xlu0 %v841, 96
        %v994 = vpop.permute.xlu0 %993
        %995 = vrot.lane.b32.xlu0 %v842, 96
        %v996 = vpop.permute.xlu0 %995
        %997 = vrot.lane.b32.xlu0 %v843, 96
        %v998 = vpop.permute.xlu0 %997
        %s1015 = scalar_lea.vmem %s279, 64 [#allocation7]
        %1016 = vst.msk [vmem:[%s1015] sm:$0xf] %vm860, %v968
        %1017 = vst.msk [vmem:[%s1015 + $0x4] sm:$0xf] %vm860, %v970
        %1018 = vst.msk [vmem:[%s1015 + $0x8] sm:$0xf] %vm860, %v972
        %1019 = vst.msk [vmem:[%s1015 + $0xc] sm:$0xf] %vm860, %v974
        %1020 = vst.msk [vmem:[%s1015 + $0x10] sm:$0xf] %vm860, %v976
        %1021 = vst.msk [vmem:[%s1015 + $0x14] sm:$0xf] %vm860, %v978
        %1022 = vst.msk [vmem:[%s1015 + $0x18] sm:$0xf] %vm860, %v980
        %1023 = vst.msk [vmem:[%s1015 + $0x1c] sm:$0xf] %vm860, %v982
        %1024 = vst.msk [vmem:[%s1015 + $0x20] sm:$0xf] %vm860, %v984
        %1025 = vst.msk [vmem:[%s1015 + $0x24] sm:$0xf] %vm860, %v986
        %1026 = vst.msk [vmem:[%s1015 + $0x28] sm:$0xf] %vm860, %v988
        %1027 = vst.msk [vmem:[%s1015 + $0x2c] sm:$0xf] %vm860, %v990
        %1028 = vst.msk [vmem:[%s1015 + $0x30] sm:$0xf] %vm860, %v992
        %1029 = vst.msk [vmem:[%s1015 + $0x34] sm:$0xf] %vm860, %v994
        %1030 = vst.msk [vmem:[%s1015 + $0x38] sm:$0xf] %vm860, %v996
        %1031 = vst.msk [vmem:[%s1015 + $0x3c] sm:$0xf] %vm860, %v998
        %v1034 = vunpack.c.l.b16 %v790
        %v1035 = vunpack.c.h.b16 %v790
        %v1036 = vunpack.c.l.b16 %v791
        %v1037 = vunpack.c.h.b16 %v791
        %v1038 = vpack.c.b16 %v1034, %v1034
        %v1039 = vpack.c.b16 %v1035, %v1035
        %v1040 = vpack.c.b16 %v1036, %v1036
        %v1041 = vpack.c.b16 %v1037, %v1037
        %s1046 = scalar_lea.vmem %s286, 16 [#allocation8]
        %1047 = vst [vmem:[%s1046] sm:$0xf] %v1038
        %1048 = vst [vmem:[%s1046 + $0x4] sm:$0xf] %v1039
        %1049 = vst [vmem:[%s1046 + $0x8] sm:$0xf] %v1040
        %1050 = vst [vmem:[%s1046 + $0xc] sm:$0xf] %v1041
        %1051 = vrot.lane.b32.xlu0 %v919, 96
        %v1052 = vpop.permute.xlu0 %1051
        %1053 = vrot.lane.b32.xlu0 %v920, 96
        %v1054 = vpop.permute.xlu0 %1053
        %1055 = vrot.lane.b32.xlu0 %v921, 96
        %v1056 = vpop.permute.xlu0 %1055
        %1057 = vrot.lane.b32.xlu0 %v922, 96
        %v1058 = vpop.permute.xlu0 %1057
        %1059 = vrot.lane.b32.xlu0 %v923, 96
        %v1060 = vpop.permute.xlu0 %1059
        %1061 = vrot.lane.b32.xlu0 %v924, 96
        %v1062 = vpop.permute.xlu0 %1061
        %1063 = vrot.lane.b32.xlu0 %v925, 96
        %v1064 = vpop.permute.xlu0 %1063
        %1065 = vrot.lane.b32.xlu0 %v926, 96
        %v1066 = vpop.permute.xlu0 %1065
        %1067 = vrot.lane.b32.xlu0 %v927, 96
        %v1068 = vpop.permute.xlu0 %1067
        %1069 = vrot.lane.b32.xlu0 %v928, 96
        %v1070 = vpop.permute.xlu0 %1069
        %1071 = vrot.lane.b32.xlu0 %v929, 96
        %v1072 = vpop.permute.xlu0 %1071
        %1073 = vrot.lane.b32.xlu0 %v930, 96
        %v1074 = vpop.permute.xlu0 %1073
        %1075 = vrot.lane.b32.xlu0 %v931, 96
        %v1076 = vpop.permute.xlu0 %1075
        %1077 = vrot.lane.b32.xlu0 %v932, 96
        %v1078 = vpop.permute.xlu0 %1077
        %1079 = vrot.lane.b32.xlu0 %v933, 96
        %v1080 = vpop.permute.xlu0 %1079
        %1081 = vrot.lane.b32.xlu0 %v934, 96
        %v1082 = vpop.permute.xlu0 %1081
        %s1099 = scalar_lea.vmem %s292, 64 [#allocation9]
        %1100 = vst.msk [vmem:[%s1099] sm:$0xf] %vm860, %v1052
        %1101 = vst.msk [vmem:[%s1099 + $0x4] sm:$0xf] %vm860, %v1054
        %1102 = vst.msk [vmem:[%s1099 + $0x8] sm:$0xf] %vm860, %v1056
        %1103 = vst.msk [vmem:[%s1099 + $0xc] sm:$0xf] %vm860, %v1058
        %1104 = vst.msk [vmem:[%s1099 + $0x10] sm:$0xf] %vm860, %v1060
        %1105 = vst.msk [vmem:[%s1099 + $0x14] sm:$0xf] %vm860, %v1062
        %1106 = vst.msk [vmem:[%s1099 + $0x18] sm:$0xf] %vm860, %v1064
        %1107 = vst.msk [vmem:[%s1099 + $0x1c] sm:$0xf] %vm860, %v1066
        %1108 = vst.msk [vmem:[%s1099 + $0x20] sm:$0xf] %vm860, %v1068
        %1109 = vst.msk [vmem:[%s1099 + $0x24] sm:$0xf] %vm860, %v1070
        %1110 = vst.msk [vmem:[%s1099 + $0x28] sm:$0xf] %vm860, %v1072
        %1111 = vst.msk [vmem:[%s1099 + $0x2c] sm:$0xf] %vm860, %v1074
        %1112 = vst.msk [vmem:[%s1099 + $0x30] sm:$0xf] %vm860, %v1076
        %1113 = vst.msk [vmem:[%s1099 + $0x34] sm:$0xf] %vm860, %v1078
        %1114 = vst.msk [vmem:[%s1099 + $0x38] sm:$0xf] %vm860, %v1080
        %1115 = vst.msk [vmem:[%s1099 + $0x3c] sm:$0xf] %vm860, %v1082
        %1116 = vrot.lane.b32.xlu0 %v828, 64
        %v1117 = vpop.permute.xlu0 %1116
        %1118 = vrot.lane.b32.xlu0 %v829, 64
        %v1119 = vpop.permute.xlu0 %1118
        %1120 = vrot.lane.b32.xlu0 %v830, 64
        %v1121 = vpop.permute.xlu0 %1120
        %1122 = vrot.lane.b32.xlu0 %v831, 64
        %v1123 = vpop.permute.xlu0 %1122
        %1124 = vrot.lane.b32.xlu0 %v832, 64
        %v1125 = vpop.permute.xlu0 %1124
        %1126 = vrot.lane.b32.xlu0 %v833, 64
        %v1127 = vpop.permute.xlu0 %1126
        %1128 = vrot.lane.b32.xlu0 %v834, 64
        %v1129 = vpop.permute.xlu0 %1128
        %1130 = vrot.lane.b32.xlu0 %v835, 64
        %v1131 = vpop.permute.xlu0 %1130
        %1132 = vrot.lane.b32.xlu0 %v836, 64
        %v1133 = vpop.permute.xlu0 %1132
        %1134 = vrot.lane.b32.xlu0 %v837, 64
        %v1135 = vpop.permute.xlu0 %1134
        %1136 = vrot.lane.b32.xlu0 %v838, 64
        %v1137 = vpop.permute.xlu0 %1136
        %1138 = vrot.lane.b32.xlu0 %v839, 64
        %v1139 = vpop.permute.xlu0 %1138
        %1140 = vrot.lane.b32.xlu0 %v840, 64
        %v1141 = vpop.permute.xlu0 %1140
        %1142 = vrot.lane.b32.xlu0 %v841, 64
        %v1143 = vpop.permute.xlu0 %1142
        %1144 = vrot.lane.b32.xlu0 %v842, 64
        %v1145 = vpop.permute.xlu0 %1144
        %1146 = vrot.lane.b32.xlu0 %v843, 64
        %v1147 = vpop.permute.xlu0 %1146
        %s1164 = scalar_lea.vmem %s279, 128 [#allocation7]
        %1165 = vst.msk [vmem:[%s1164] sm:$0xf] %vm860, %v1117
        %1166 = vst.msk [vmem:[%s1164 + $0x4] sm:$0xf] %vm860, %v1119
        %1167 = vst.msk [vmem:[%s1164 + $0x8] sm:$0xf] %vm860, %v1121
        %1168 = vst.msk [vmem:[%s1164 + $0xc] sm:$0xf] %vm860, %v1123
        %1169 = vst.msk [vmem:[%s1164 + $0x10] sm:$0xf] %vm860, %v1125
        %1170 = vst.msk [vmem:[%s1164 + $0x14] sm:$0xf] %vm860, %v1127
        %1171 = vst.msk [vmem:[%s1164 + $0x18] sm:$0xf] %vm860, %v1129
        %1172 = vst.msk [vmem:[%s1164 + $0x1c] sm:$0xf] %vm860, %v1131
        %1173 = vst.msk [vmem:[%s1164 + $0x20] sm:$0xf] %vm860, %v1133
        %1174 = vst.msk [vmem:[%s1164 + $0x24] sm:$0xf] %vm860, %v1135
        %1175 = vst.msk [vmem:[%s1164 + $0x28] sm:$0xf] %vm860, %v1137
        %1176 = vst.msk [vmem:[%s1164 + $0x2c] sm:$0xf] %vm860, %v1139
        %1177 = vst.msk [vmem:[%s1164 + $0x30] sm:$0xf] %vm860, %v1141
        %1178 = vst.msk [vmem:[%s1164 + $0x34] sm:$0xf] %vm860, %v1143
        %1179 = vst.msk [vmem:[%s1164 + $0x38] sm:$0xf] %vm860, %v1145
        %1180 = vst.msk [vmem:[%s1164 + $0x3c] sm:$0xf] %vm860, %v1147
        %v1183 = vunpack.c.l.b16 %v792
        %v1184 = vunpack.c.h.b16 %v792
        %v1185 = vunpack.c.l.b16 %v793
        %v1186 = vunpack.c.h.b16 %v793
        %v1187 = vpack.c.b16 %v1183, %v1183
        %v1188 = vpack.c.b16 %v1184, %v1184
        %v1189 = vpack.c.b16 %v1185, %v1185
        %v1190 = vpack.c.b16 %v1186, %v1186
        %s1195 = scalar_lea.vmem %s286, 32 [#allocation8]
        %1196 = vst [vmem:[%s1195] sm:$0xf] %v1187
        %1197 = vst [vmem:[%s1195 + $0x4] sm:$0xf] %v1188
        %1198 = vst [vmem:[%s1195 + $0x8] sm:$0xf] %v1189
        %1199 = vst [vmem:[%s1195 + $0xc] sm:$0xf] %v1190
        %1200 = vrot.lane.b32.xlu0 %v919, 64
        %v1201 = vpop.permute.xlu0 %1200
        %1202 = vrot.lane.b32.xlu0 %v920, 64
        %v1203 = vpop.permute.xlu0 %1202
        %1204 = vrot.lane.b32.xlu0 %v921, 64
        %v1205 = vpop.permute.xlu0 %1204
        %1206 = vrot.lane.b32.xlu0 %v922, 64
        %v1207 = vpop.permute.xlu0 %1206
        %1208 = vrot.lane.b32.xlu0 %v923, 64
        %v1209 = vpop.permute.xlu0 %1208
        %1210 = vrot.lane.b32.xlu0 %v924, 64
        %v1211 = vpop.permute.xlu0 %1210
        %1212 = vrot.lane.b32.xlu0 %v925, 64
        %v1213 = vpop.permute.xlu0 %1212
        %1214 = vrot.lane.b32.xlu0 %v926, 64
        %v1215 = vpop.permute.xlu0 %1214
        %1216 = vrot.lane.b32.xlu0 %v927, 64
        %v1217 = vpop.permute.xlu0 %1216
        %1218 = vrot.lane.b32.xlu0 %v928, 64
        %v1219 = vpop.permute.xlu0 %1218
        %1220 = vrot.lane.b32.xlu0 %v929, 64
        %v1221 = vpop.permute.xlu0 %1220
        %1222 = vrot.lane.b32.xlu0 %v930, 64
        %v1223 = vpop.permute.xlu0 %1222
        %1224 = vrot.lane.b32.xlu0 %v931, 64
        %v1225 = vpop.permute.xlu0 %1224
        %1226 = vrot.lane.b32.xlu0 %v932, 64
        %v1227 = vpop.permute.xlu0 %1226
        %1228 = vrot.lane.b32.xlu0 %v933, 64
        %v1229 = vpop.permute.xlu0 %1228
        %1230 = vrot.lane.b32.xlu0 %v934, 64
        %v1231 = vpop.permute.xlu0 %1230
        %s1248 = scalar_lea.vmem %s292, 128 [#allocation9]
        %1249 = vst.msk [vmem:[%s1248] sm:$0xf] %vm860, %v1201
        %1250 = vst.msk [vmem:[%s1248 + $0x4] sm:$0xf] %vm860, %v1203
        %1251 = vst.msk [vmem:[%s1248 + $0x8] sm:$0xf] %vm860, %v1205
        %1252 = vst.msk [vmem:[%s1248 + $0xc] sm:$0xf] %vm860, %v1207
        %1253 = vst.msk [vmem:[%s1248 + $0x10] sm:$0xf] %vm860, %v1209
        %1254 = vst.msk [vmem:[%s1248 + $0x14] sm:$0xf] %vm860, %v1211
        %1255 = vst.msk [vmem:[%s1248 + $0x18] sm:$0xf] %vm860, %v1213
        %1256 = vst.msk [vmem:[%s1248 + $0x1c] sm:$0xf] %vm860, %v1215
        %1257 = vst.msk [vmem:[%s1248 + $0x20] sm:$0xf] %vm860, %v1217
        %1258 = vst.msk [vmem:[%s1248 + $0x24] sm:$0xf] %vm860, %v1219
        %1259 = vst.msk [vmem:[%s1248 + $0x28] sm:$0xf] %vm860, %v1221
        %1260 = vst.msk [vmem:[%s1248 + $0x2c] sm:$0xf] %vm860, %v1223
        %1261 = vst.msk [vmem:[%s1248 + $0x30] sm:$0xf] %vm860, %v1225
        %1262 = vst.msk [vmem:[%s1248 + $0x34] sm:$0xf] %vm860, %v1227
        %1263 = vst.msk [vmem:[%s1248 + $0x38] sm:$0xf] %vm860, %v1229
        %1264 = vst.msk [vmem:[%s1248 + $0x3c] sm:$0xf] %vm860, %v1231
        %1265 = vrot.lane.b32.xlu0 %v828, 32
        %v1266 = vpop.permute.xlu0 %1265
        %1267 = vrot.lane.b32.xlu0 %v829, 32
        %v1268 = vpop.permute.xlu0 %1267
        %1269 = vrot.lane.b32.xlu0 %v830, 32
        %v1270 = vpop.permute.xlu0 %1269
        %1271 = vrot.lane.b32.xlu0 %v831, 32
        %v1272 = vpop.permute.xlu0 %1271
        %1273 = vrot.lane.b32.xlu0 %v832, 32
        %v1274 = vpop.permute.xlu0 %1273
        %1275 = vrot.lane.b32.xlu0 %v833, 32
        %v1276 = vpop.permute.xlu0 %1275
        %1277 = vrot.lane.b32.xlu0 %v834, 32
        %v1278 = vpop.permute.xlu0 %1277
        %1279 = vrot.lane.b32.xlu0 %v835, 32
        %v1280 = vpop.permute.xlu0 %1279
        %1281 = vrot.lane.b32.xlu0 %v836, 32
        %v1282 = vpop.permute.xlu0 %1281
        %1283 = vrot.lane.b32.xlu0 %v837, 32
        %v1284 = vpop.permute.xlu0 %1283
        %1285 = vrot.lane.b32.xlu0 %v838, 32
        %v1286 = vpop.permute.xlu0 %1285
        %1287 = vrot.lane.b32.xlu0 %v839, 32
        %v1288 = vpop.permute.xlu0 %1287
        %1289 = vrot.lane.b32.xlu0 %v840, 32
        %v1290 = vpop.permute.xlu0 %1289
        %1291 = vrot.lane.b32.xlu0 %v841, 32
        %v1292 = vpop.permute.xlu0 %1291
        %1293 = vrot.lane.b32.xlu0 %v842, 32
        %v1294 = vpop.permute.xlu0 %1293
        %1295 = vrot.lane.b32.xlu0 %v843, 32
        %v1296 = vpop.permute.xlu0 %1295
        %s1313 = scalar_lea.vmem %s279, 192 [#allocation7]
        %1314 = vst.msk [vmem:[%s1313] sm:$0xf] %vm860, %v1266
        %1315 = vst.msk [vmem:[%s1313 + $0x4] sm:$0xf] %vm860, %v1268
        %1316 = vst.msk [vmem:[%s1313 + $0x8] sm:$0xf] %vm860, %v1270
        %1317 = vst.msk [vmem:[%s1313 + $0xc] sm:$0xf] %vm860, %v1272
        %1318 = vst.msk [vmem:[%s1313 + $0x10] sm:$0xf] %vm860, %v1274
        %1319 = vst.msk [vmem:[%s1313 + $0x14] sm:$0xf] %vm860, %v1276
        %1320 = vst.msk [vmem:[%s1313 + $0x18] sm:$0xf] %vm860, %v1278
        %1321 = vst.msk [vmem:[%s1313 + $0x1c] sm:$0xf] %vm860, %v1280
        %1322 = vst.msk [vmem:[%s1313 + $0x20] sm:$0xf] %vm860, %v1282
        %1323 = vst.msk [vmem:[%s1313 + $0x24] sm:$0xf] %vm860, %v1284
        %1324 = vst.msk [vmem:[%s1313 + $0x28] sm:$0xf] %vm860, %v1286
        %1325 = vst.msk [vmem:[%s1313 + $0x2c] sm:$0xf] %vm860, %v1288
        %1326 = vst.msk [vmem:[%s1313 + $0x30] sm:$0xf] %vm860, %v1290
        %1327 = vst.msk [vmem:[%s1313 + $0x34] sm:$0xf] %vm860, %v1292
        %1328 = vst.msk [vmem:[%s1313 + $0x38] sm:$0xf] %vm860, %v1294
        %1329 = vst.msk [vmem:[%s1313 + $0x3c] sm:$0xf] %vm860, %v1296
        %v1332 = vunpack.c.l.b16 %v794
        %v1333 = vunpack.c.h.b16 %v794
        %v1334 = vunpack.c.l.b16 %v795
        %v1335 = vunpack.c.h.b16 %v795
        %v1336 = vpack.c.b16 %v1332, %v1332
        %v1337 = vpack.c.b16 %v1333, %v1333
        %v1338 = vpack.c.b16 %v1334, %v1334
        %v1339 = vpack.c.b16 %v1335, %v1335
        %s1344 = scalar_lea.vmem %s286, 48 [#allocation8]
        %1345 = vst [vmem:[%s1344] sm:$0xf] %v1336
        %1346 = vst [vmem:[%s1344 + $0x4] sm:$0xf] %v1337
        %1347 = vst [vmem:[%s1344 + $0x8] sm:$0xf] %v1338
        %1348 = vst [vmem:[%s1344 + $0xc] sm:$0xf] %v1339
        %1349 = vrot.lane.b32.xlu0 %v919, 32
        %v1350 = vpop.permute.xlu0 %1349
        %1351 = vrot.lane.b32.xlu0 %v920, 32
        %v1352 = vpop.permute.xlu0 %1351
        %1353 = vrot.lane.b32.xlu0 %v921, 32
        %v1354 = vpop.permute.xlu0 %1353
        %1355 = vrot.lane.b32.xlu0 %v922, 32
        %v1356 = vpop.permute.xlu0 %1355
        %1357 = vrot.lane.b32.xlu0 %v923, 32
        %v1358 = vpop.permute.xlu0 %1357
        %1359 = vrot.lane.b32.xlu0 %v924, 32
        %v1360 = vpop.permute.xlu0 %1359
        %1361 = vrot.lane.b32.xlu0 %v925, 32
        %v1362 = vpop.permute.xlu0 %1361
        %1363 = vrot.lane.b32.xlu0 %v926, 32
        %v1364 = vpop.permute.xlu0 %1363
        %1365 = vrot.lane.b32.xlu0 %v927, 32
        %v1366 = vpop.permute.xlu0 %1365
        %1367 = vrot.lane.b32.xlu0 %v928, 32
        %v1368 = vpop.permute.xlu0 %1367
        %1369 = vrot.lane.b32.xlu0 %v929, 32
        %v1370 = vpop.permute.xlu0 %1369
        %1371 = vrot.lane.b32.xlu0 %v930, 32
        %v1372 = vpop.permute.xlu0 %1371
        %1373 = vrot.lane.b32.xlu0 %v931, 32
        %v1374 = vpop.permute.xlu0 %1373
        %1375 = vrot.lane.b32.xlu0 %v932, 32
        %v1376 = vpop.permute.xlu0 %1375
        %1377 = vrot.lane.b32.xlu0 %v933, 32
        %v1378 = vpop.permute.xlu0 %1377
        %1379 = vrot.lane.b32.xlu0 %v934, 32
        %v1380 = vpop.permute.xlu0 %1379
        %s1397 = scalar_lea.vmem %s292, 192 [#allocation9]
        %1398 = vst.msk [vmem:[%s1397] sm:$0xf] %vm860, %v1350
        %1399 = vst.msk [vmem:[%s1397 + $0x4] sm:$0xf] %vm860, %v1352
        %1400 = vst.msk [vmem:[%s1397 + $0x8] sm:$0xf] %vm860, %v1354
        %1401 = vst.msk [vmem:[%s1397 + $0xc] sm:$0xf] %vm860, %v1356
        %1402 = vst.msk [vmem:[%s1397 + $0x10] sm:$0xf] %vm860, %v1358
        %1403 = vst.msk [vmem:[%s1397 + $0x14] sm:$0xf] %vm860, %v1360
        %1404 = vst.msk [vmem:[%s1397 + $0x18] sm:$0xf] %vm860, %v1362
        %1405 = vst.msk [vmem:[%s1397 + $0x1c] sm:$0xf] %vm860, %v1364
        %1406 = vst.msk [vmem:[%s1397 + $0x20] sm:$0xf] %vm860, %v1366
        %1407 = vst.msk [vmem:[%s1397 + $0x24] sm:$0xf] %vm860, %v1368
        %1408 = vst.msk [vmem:[%s1397 + $0x28] sm:$0xf] %vm860, %v1370
        %1409 = vst.msk [vmem:[%s1397 + $0x2c] sm:$0xf] %vm860, %v1372
        %1410 = vst.msk [vmem:[%s1397 + $0x30] sm:$0xf] %vm860, %v1374
        %1411 = vst.msk [vmem:[%s1397 + $0x34] sm:$0xf] %vm860, %v1376
        %1412 = vst.msk [vmem:[%s1397 + $0x38] sm:$0xf] %vm860, %v1378
        %1413 = vst.msk [vmem:[%s1397 + $0x3c] sm:$0xf] %vm860, %v1380
        %s1414 = sand.u32 %s116, 1
        %s1415 = sand.u32 %s116, 1
        %s1416 = smul.addr %s1415, 256
        %s1417 = scalar_lea.vmem [#allocation7], %s1416
        %s1418 = sand.u32 %s144, 1
        %s1419 = scalar_lea.sflag [#allocation4], %s1418
        %s1420 = sand.u32 %s144, 1
        %s1421 = smul.addr %s1420, 64
        %s1422 = scalar_lea.vmem [#allocation8], %s1421
        %s1423 = sand.u32 %s172, 1
        %s1424 = sand.u32 %s172, 1
        %s1425 = smul.addr %s1424, 256
        %s1426 = scalar_lea.vmem [#allocation9], %s1425
        // Predicated region
        $region41: #{tpu_custom_call.1} parent=31 // pred_check
          %p1427 = pneg %p126
        $region42: #{tpu_custom_call.1} parent=31 // pred_check_branch
          %1429 = sbr.rel (%p1427) target = $region44
        $region43: #{tpu_custom_call.1} parent=31 // pred_region
          %s1430 = smul.u32 16, %s29
          %s1431 = smul.addr %s28, 128
          %s1432 = sadd.s32 %s1430, %s1431
          %s1433 = smul.addr %s1432, 4
          %s1434 = scalar_lea.vmem %s3, %s1433
          // Predicated region
          $region45: #{tpu_custom_call.1} parent=43 // pred_check
            _
          $region46: #{tpu_custom_call.1} parent=43 // pred_check_branch
            %1436 = sbr.rel (0) target = $region48
          $region47: #{tpu_custom_call.1} parent=43 // pred_region
            // Predicated region
            $region49: #{tpu_custom_call.1} parent=47 // pred_check
              _
            $region50: #{tpu_custom_call.1} parent=47 // pred_check_branch
              %1438 = sbr.rel target = $region52
            $region51: #{tpu_custom_call.1} parent=47 // pred_region
              // Predicated region
              $region64: #{tpu_custom_call.1} parent=51 // pred_check
                _
              $region65: #{tpu_custom_call.1} parent=51 // pred_check_branch
                %1580 = sbr.rel (0) target = $region67
              $region66: #{tpu_custom_call.1} parent=51 // pred_region
                loop: start=0, step=1, limit=1
                $region68: #{tpu_custom_call.1} parent=66 // loop_pre_header
                  _
                $region69: #{tpu_custom_call.1} parent=66 // loop_header
                  %s1582 = sphi 0, %s1586
                  %p1583 = scmp.ge.s32.totalorder %s1582, 1
                  %s1587 = sphi %s1417, %s1417
                  %s1588 = sphi %s1434, %s1434
                $region70: #{tpu_custom_call.1} parent=66 // loop_header_branch
                  %1585 = sbr.rel (%p1583) target = $region74
                $region71: #{tpu_custom_call.1} parent=66 // loop_body
                  _
                $region72: #{tpu_custom_call.1} parent=66 // loop_footer
                  %s1586 = sadd.s32 1, %s1582
                $region73: #{tpu_custom_call.1} parent=66 // loop_footer_branch
                  %1581 = sbr.rel target = $region69
                $region74: #{tpu_custom_call.1} parent=66 // loop_exit
                  _
                %s1590 = ssub.s32 16, 1
                loop: start=0, step=1, limit=1
                $region75: #{tpu_custom_call.1} parent=66 // loop_pre_header
                  _
                $region76: #{tpu_custom_call.1} parent=66 // loop_header
                  %s1592 = sphi 0, %s1596
                  %p1593 = scmp.ge.s32.totalorder %s1592, 1
                  %s1597 = sphi %s1417, %s1417
                  %s1598 = sphi %s1434, %s1434
                $region77: #{tpu_custom_call.1} parent=66 // loop_header_branch
                  %1595 = sbr.rel (%p1593) target = $region81
                $region78: #{tpu_custom_call.1} parent=66 // loop_body
                  %v1599 = vld [vmem:[%s1597] sm:%s1590]
                  %1600 = vst [vmem:[%s1598] sm:%s1590] %v1599
                  %v1601 = vld [vmem:[%s1597 + $0x4] sm:%s1590]
                  %1602 = vst [vmem:[%s1598 + $0x4] sm:%s1590] %v1601
                  %v1603 = vld [vmem:[%s1597 + $0x8] sm:%s1590]
                  %1604 = vst [vmem:[%s1598 + $0x8] sm:%s1590] %v1603
                  %v1605 = vld [vmem:[%s1597 + $0xc] sm:%s1590]
                  %1606 = vst [vmem:[%s1598 + $0xc] sm:%s1590] %v1605
                  %v1607 = vld [vmem:[%s1597 + $0x10] sm:%s1590]
                  %1608 = vst [vmem:[%s1598 + $0x10] sm:%s1590] %v1607
                  %v1609 = vld [vmem:[%s1597 + $0x14] sm:%s1590]
                  %1610 = vst [vmem:[%s1598 + $0x14] sm:%s1590] %v1609
                  %v1611 = vld [vmem:[%s1597 + $0x18] sm:%s1590]
                  %1612 = vst [vmem:[%s1598 + $0x18] sm:%s1590] %v1611
                  %v1613 = vld [vmem:[%s1597 + $0x1c] sm:%s1590]
                  %1614 = vst [vmem:[%s1598 + $0x1c] sm:%s1590] %v1613
                  %v1615 = vld [vmem:[%s1597 + $0x20] sm:%s1590]
                  %1616 = vst [vmem:[%s1598 + $0x20] sm:%s1590] %v1615
                  %v1617 = vld [vmem:[%s1597 + $0x24] sm:%s1590]
                  %1618 = vst [vmem:[%s1598 + $0x24] sm:%s1590] %v1617
                  %v1619 = vld [vmem:[%s1597 + $0x28] sm:%s1590]
                  %1620 = vst [vmem:[%s1598 + $0x28] sm:%s1590] %v1619
                  %v1621 = vld [vmem:[%s1597 + $0x2c] sm:%s1590]
                  %1622 = vst [vmem:[%s1598 + $0x2c] sm:%s1590] %v1621
                  %v1623 = vld [vmem:[%s1597 + $0x30] sm:%s1590]
                  %1624 = vst [vmem:[%s1598 + $0x30] sm:%s1590] %v1623
                  %v1625 = vld [vmem:[%s1597 + $0x34] sm:%s1590]
                  %1626 = vst [vmem:[%s1598 + $0x34] sm:%s1590] %v1625
                  %v1627 = vld [vmem:[%s1597 + $0x38] sm:%s1590]
                  %1628 = vst [vmem:[%s1598 + $0x38] sm:%s1590] %v1627
                  %v1629 = vld [vmem:[%s1597 + $0x3c] sm:%s1590]
                  %1630 = vst [vmem:[%s1598 + $0x3c] sm:%s1590] %v1629
                  %v1631 = vld [vmem:[%s1597 + $0x40] sm:%s1590]
                  %1632 = vst [vmem:[%s1598 + $0x80] sm:%s1590] %v1631
                  %v1633 = vld [vmem:[%s1597 + $0x44] sm:%s1590]
                  %1634 = vst [vmem:[%s1598 + $0x84] sm:%s1590] %v1633
                  %v1635 = vld [vmem:[%s1597 + $0x48] sm:%s1590]
                  %1636 = vst [vmem:[%s1598 + $0x88] sm:%s1590] %v1635
                  %v1637 = vld [vmem:[%s1597 + $0x4c] sm:%s1590]
                  %1638 = vst [vmem:[%s1598 + $0x8c] sm:%s1590] %v1637
                  %v1639 = vld [vmem:[%s1597 + $0x50] sm:%s1590]
                  %1640 = vst [vmem:[%s1598 + $0x90] sm:%s1590] %v1639
                  %v1641 = vld [vmem:[%s1597 + $0x54] sm:%s1590]
                  %1642 = vst [vmem:[%s1598 + $0x94] sm:%s1590] %v1641
                  %v1643 = vld [vmem:[%s1597 + $0x58] sm:%s1590]
                  %1644 = vst [vmem:[%s1598 + $0x98] sm:%s1590] %v1643
                  %v1645 = vld [vmem:[%s1597 + $0x5c] sm:%s1590]
                  %1646 = vst [vmem:[%s1598 + $0x9c] sm:%s1590] %v1645
                  %v1647 = vld [vmem:[%s1597 + $0x60] sm:%s1590]
                  %1648 = vst [vmem:[%s1598 + $0xa0] sm:%s1590] %v1647
                  %v1649 = vld [vmem:[%s1597 + $0x64] sm:%s1590]
                  %1650 = vst [vmem:[%s1598 + $0xa4] sm:%s1590] %v1649
                  %v1651 = vld [vmem:[%s1597 + $0x68] sm:%s1590]
                  %1652 = vst [vmem:[%s1598 + $0xa8] sm:%s1590] %v1651
                  %v1653 = vld [vmem:[%s1597 + $0x6c] sm:%s1590]
                  %1654 = vst [vmem:[%s1598 + $0xac] sm:%s1590] %v1653
                  %v1655 = vld [vmem:[%s1597 + $0x70] sm:%s1590]
                  %1656 = vst [vmem:[%s1598 + $0xb0] sm:%s1590] %v1655
                  %v1657 = vld [vmem:[%s1597 + $0x74] sm:%s1590]
                  %1658 = vst [vmem:[%s1598 + $0xb4] sm:%s1590] %v1657
                  %v1659 = vld [vmem:[%s1597 + $0x78] sm:%s1590]
                  %1660 = vst [vmem:[%s1598 + $0xb8] sm:%s1590] %v1659
                  %v1661 = vld [vmem:[%s1597 + $0x7c] sm:%s1590]
                  %1662 = vst [vmem:[%s1598 + $0xbc] sm:%s1590] %v1661
                  %v1663 = vld [vmem:[%s1597 + $0x80] sm:%s1590]
                  %1664 = vst [vmem:[%s1598 + $0x100] sm:%s1590] %v1663
                  %v1665 = vld [vmem:[%s1597 + $0x84] sm:%s1590]
                  %1666 = vst [vmem:[%s1598 + $0x104] sm:%s1590] %v1665
                  %v1667 = vld [vmem:[%s1597 + $0x88] sm:%s1590]
                  %1668 = vst [vmem:[%s1598 + $0x108] sm:%s1590] %v1667
                  %v1669 = vld [vmem:[%s1597 + $0x8c] sm:%s1590]
                  %1670 = vst [vmem:[%s1598 + $0x10c] sm:%s1590] %v1669
                  %v1671 = vld [vmem:[%s1597 + $0x90] sm:%s1590]
                  %1672 = vst [vmem:[%s1598 + $0x110] sm:%s1590] %v1671
                  %v1673 = vld [vmem:[%s1597 + $0x94] sm:%s1590]
                  %1674 = vst [vmem:[%s1598 + $0x114] sm:%s1590] %v1673
                  %v1675 = vld [vmem:[%s1597 + $0x98] sm:%s1590]
                  %1676 = vst [vmem:[%s1598 + $0x118] sm:%s1590] %v1675
                  %v1677 = vld [vmem:[%s1597 + $0x9c] sm:%s1590]
                  %1678 = vst [vmem:[%s1598 + $0x11c] sm:%s1590] %v1677
                  %v1679 = vld [vmem:[%s1597 + $0xa0] sm:%s1590]
                  %1680 = vst [vmem:[%s1598 + $0x120] sm:%s1590] %v1679
                  %v1681 = vld [vmem:[%s1597 + $0xa4] sm:%s1590]
                  %1682 = vst [vmem:[%s1598 + $0x124] sm:%s1590] %v1681
                  %v1683 = vld [vmem:[%s1597 + $0xa8] sm:%s1590]
                  %1684 = vst [vmem:[%s1598 + $0x128] sm:%s1590] %v1683
                  %v1685 = vld [vmem:[%s1597 + $0xac] sm:%s1590]
                  %1686 = vst [vmem:[%s1598 + $0x12c] sm:%s1590] %v1685
                  %v1687 = vld [vmem:[%s1597 + $0xb0] sm:%s1590]
                  %1688 = vst [vmem:[%s1598 + $0x130] sm:%s1590] %v1687
                  %v1689 = vld [vmem:[%s1597 + $0xb4] sm:%s1590]
                  %1690 = vst [vmem:[%s1598 + $0x134] sm:%s1590] %v1689
                  %v1691 = vld [vmem:[%s1597 + $0xb8] sm:%s1590]
                  %1692 = vst [vmem:[%s1598 + $0x138] sm:%s1590] %v1691
                  %v1693 = vld [vmem:[%s1597 + $0xbc] sm:%s1590]
                  %1694 = vst [vmem:[%s1598 + $0x13c] sm:%s1590] %v1693
                  %v1695 = vld [vmem:[%s1597 + $0xc0] sm:%s1590]
                  %1696 = vst [vmem:[%s1598 + $0x180] sm:%s1590] %v1695
                  %v1697 = vld [vmem:[%s1597 + $0xc4] sm:%s1590]
                  %1698 = vst [vmem:[%s1598 + $0x184] sm:%s1590] %v1697
                  %v1699 = vld [vmem:[%s1597 + $0xc8] sm:%s1590]
                  %1700 = vst [vmem:[%s1598 + $0x188] sm:%s1590] %v1699
                  %v1701 = vld [vmem:[%s1597 + $0xcc] sm:%s1590]
                  %1702 = vst [vmem:[%s1598 + $0x18c] sm:%s1590] %v1701
                  %v1703 = vld [vmem:[%s1597 + $0xd0] sm:%s1590]
                  %1704 = vst [vmem:[%s1598 + $0x190] sm:%s1590] %v1703
                  %v1705 = vld [vmem:[%s1597 + $0xd4] sm:%s1590]
                  %1706 = vst [vmem:[%s1598 + $0x194] sm:%s1590] %v1705
                  %v1707 = vld [vmem:[%s1597 + $0xd8] sm:%s1590]
                  %1708 = vst [vmem:[%s1598 + $0x198] sm:%s1590] %v1707
                  %v1709 = vld [vmem:[%s1597 + $0xdc] sm:%s1590]
                  %1710 = vst [vmem:[%s1598 + $0x19c] sm:%s1590] %v1709
                  %v1711 = vld [vmem:[%s1597 + $0xe0] sm:%s1590]
                  %1712 = vst [vmem:[%s1598 + $0x1a0] sm:%s1590] %v1711
                  %v1713 = vld [vmem:[%s1597 + $0xe4] sm:%s1590]
                  %1714 = vst [vmem:[%s1598 + $0x1a4] sm:%s1590] %v1713
                  %v1715 = vld [vmem:[%s1597 + $0xe8] sm:%s1590]
                  %1716 = vst [vmem:[%s1598 + $0x1a8] sm:%s1590] %v1715
                  %v1717 = vld [vmem:[%s1597 + $0xec] sm:%s1590]
                  %1718 = vst [vmem:[%s1598 + $0x1ac] sm:%s1590] %v1717
                  %v1719 = vld [vmem:[%s1597 + $0xf0] sm:%s1590]
                  %1720 = vst [vmem:[%s1598 + $0x1b0] sm:%s1590] %v1719
                  %v1721 = vld [vmem:[%s1597 + $0xf4] sm:%s1590]
                  %1722 = vst [vmem:[%s1598 + $0x1b4] sm:%s1590] %v1721
                  %v1723 = vld [vmem:[%s1597 + $0xf8] sm:%s1590]
                  %1724 = vst [vmem:[%s1598 + $0x1b8] sm:%s1590] %v1723
                  %v1725 = vld [vmem:[%s1597 + $0xfc] sm:%s1590]
                  %1726 = vst [vmem:[%s1598 + $0x1bc] sm:%s1590] %v1725
                $region79: #{tpu_custom_call.1} parent=66 // loop_footer
                  %s1596 = sadd.s32 1, %s1592
                $region80: #{tpu_custom_call.1} parent=66 // loop_footer_branch
                  %1591 = sbr.rel target = $region76
                $region81: #{tpu_custom_call.1} parent=66 // loop_exit
                  _
              $region67: #{tpu_custom_call.1} parent=51 // pred_fallthru
                _
            $region52: #{tpu_custom_call.1} parent=47 // pred_fallthru
              _
            // Predicated region
            $region53: #{tpu_custom_call.1} parent=47 // pred_check
              _
            $region54: #{tpu_custom_call.1} parent=47 // pred_check_branch
              %1440 = sbr.rel (0) target = $region56
            $region55: #{tpu_custom_call.1} parent=47 // pred_region
              %s1442 = ssub.s32 16, 1
              loop: start=0, step=1, limit=1
              $region57: #{tpu_custom_call.1} parent=55 // loop_pre_header
                _
              $region58: #{tpu_custom_call.1} parent=55 // loop_header
                %s1444 = sphi 0, %s1448
                %p1445 = scmp.ge.s32.totalorder %s1444, 1
                %s1449 = sphi %s1417, %s1417
                %s1450 = sphi %s1434, %s1434
              $region59: #{tpu_custom_call.1} parent=55 // loop_header_branch
                %1447 = sbr.rel (%p1445) target = $region63
              $region60: #{tpu_custom_call.1} parent=55 // loop_body
                %v1451 = vld [vmem:[%s1449] sm:%s1442]
                %1452 = vst [vmem:[%s1450] sm:%s1442] %v1451
                %v1453 = vld [vmem:[%s1449 + $0x4] sm:%s1442]
                %1454 = vst [vmem:[%s1450 + $0x4] sm:%s1442] %v1453
                %v1455 = vld [vmem:[%s1449 + $0x8] sm:%s1442]
                %1456 = vst [vmem:[%s1450 + $0x8] sm:%s1442] %v1455
                %v1457 = vld [vmem:[%s1449 + $0xc] sm:%s1442]
                %1458 = vst [vmem:[%s1450 + $0xc] sm:%s1442] %v1457
                %v1459 = vld [vmem:[%s1449 + $0x10] sm:%s1442]
                %1460 = vst [vmem:[%s1450 + $0x10] sm:%s1442] %v1459
                %v1461 = vld [vmem:[%s1449 + $0x14] sm:%s1442]
                %1462 = vst [vmem:[%s1450 + $0x14] sm:%s1442] %v1461
                %v1463 = vld [vmem:[%s1449 + $0x18] sm:%s1442]
                %1464 = vst [vmem:[%s1450 + $0x18] sm:%s1442] %v1463
                %v1465 = vld [vmem:[%s1449 + $0x1c] sm:%s1442]
                %1466 = vst [vmem:[%s1450 + $0x1c] sm:%s1442] %v1465
                %v1467 = vld [vmem:[%s1449 + $0x20] sm:%s1442]
                %1468 = vst [vmem:[%s1450 + $0x20] sm:%s1442] %v1467
                %v1469 = vld [vmem:[%s1449 + $0x24] sm:%s1442]
                %1470 = vst [vmem:[%s1450 + $0x24] sm:%s1442] %v1469
                %v1471 = vld [vmem:[%s1449 + $0x28] sm:%s1442]
                %1472 = vst [vmem:[%s1450 + $0x28] sm:%s1442] %v1471
                %v1473 = vld [vmem:[%s1449 + $0x2c] sm:%s1442]
                %1474 = vst [vmem:[%s1450 + $0x2c] sm:%s1442] %v1473
                %v1475 = vld [vmem:[%s1449 + $0x30] sm:%s1442]
                %1476 = vst [vmem:[%s1450 + $0x30] sm:%s1442] %v1475
                %v1477 = vld [vmem:[%s1449 + $0x34] sm:%s1442]
                %1478 = vst [vmem:[%s1450 + $0x34] sm:%s1442] %v1477
                %v1479 = vld [vmem:[%s1449 + $0x38] sm:%s1442]
                %1480 = vst [vmem:[%s1450 + $0x38] sm:%s1442] %v1479
                %v1481 = vld [vmem:[%s1449 + $0x3c] sm:%s1442]
                %1482 = vst [vmem:[%s1450 + $0x3c] sm:%s1442] %v1481
                %v1483 = vld [vmem:[%s1449 + $0x40] sm:%s1442]
                %1484 = vst [vmem:[%s1450 + $0x80] sm:%s1442] %v1483
                %v1485 = vld [vmem:[%s1449 + $0x44] sm:%s1442]
                %1486 = vst [vmem:[%s1450 + $0x84] sm:%s1442] %v1485
                %v1487 = vld [vmem:[%s1449 + $0x48] sm:%s1442]
                %1488 = vst [vmem:[%s1450 + $0x88] sm:%s1442] %v1487
                %v1489 = vld [vmem:[%s1449 + $0x4c] sm:%s1442]
                %1490 = vst [vmem:[%s1450 + $0x8c] sm:%s1442] %v1489
                %v1491 = vld [vmem:[%s1449 + $0x50] sm:%s1442]
                %1492 = vst [vmem:[%s1450 + $0x90] sm:%s1442] %v1491
                %v1493 = vld [vmem:[%s1449 + $0x54] sm:%s1442]
                %1494 = vst [vmem:[%s1450 + $0x94] sm:%s1442] %v1493
                %v1495 = vld [vmem:[%s1449 + $0x58] sm:%s1442]
                %1496 = vst [vmem:[%s1450 + $0x98] sm:%s1442] %v1495
                %v1497 = vld [vmem:[%s1449 + $0x5c] sm:%s1442]
                %1498 = vst [vmem:[%s1450 + $0x9c] sm:%s1442] %v1497
                %v1499 = vld [vmem:[%s1449 + $0x60] sm:%s1442]
                %1500 = vst [vmem:[%s1450 + $0xa0] sm:%s1442] %v1499
                %v1501 = vld [vmem:[%s1449 + $0x64] sm:%s1442]
                %1502 = vst [vmem:[%s1450 + $0xa4] sm:%s1442] %v1501
                %v1503 = vld [vmem:[%s1449 + $0x68] sm:%s1442]
                %1504 = vst [vmem:[%s1450 + $0xa8] sm:%s1442] %v1503
                %v1505 = vld [vmem:[%s1449 + $0x6c] sm:%s1442]
                %1506 = vst [vmem:[%s1450 + $0xac] sm:%s1442] %v1505
                %v1507 = vld [vmem:[%s1449 + $0x70] sm:%s1442]
                %1508 = vst [vmem:[%s1450 + $0xb0] sm:%s1442] %v1507
                %v1509 = vld [vmem:[%s1449 + $0x74] sm:%s1442]
                %1510 = vst [vmem:[%s1450 + $0xb4] sm:%s1442] %v1509
                %v1511 = vld [vmem:[%s1449 + $0x78] sm:%s1442]
                %1512 = vst [vmem:[%s1450 + $0xb8] sm:%s1442] %v1511
                %v1513 = vld [vmem:[%s1449 + $0x7c] sm:%s1442]
                %1514 = vst [vmem:[%s1450 + $0xbc] sm:%s1442] %v1513
                %v1515 = vld [vmem:[%s1449 + $0x80] sm:%s1442]
                %1516 = vst [vmem:[%s1450 + $0x100] sm:%s1442] %v1515
                %v1517 = vld [vmem:[%s1449 + $0x84] sm:%s1442]
                %1518 = vst [vmem:[%s1450 + $0x104] sm:%s1442] %v1517
                %v1519 = vld [vmem:[%s1449 + $0x88] sm:%s1442]
                %1520 = vst [vmem:[%s1450 + $0x108] sm:%s1442] %v1519
                %v1521 = vld [vmem:[%s1449 + $0x8c] sm:%s1442]
                %1522 = vst [vmem:[%s1450 + $0x10c] sm:%s1442] %v1521
                %v1523 = vld [vmem:[%s1449 + $0x90] sm:%s1442]
                %1524 = vst [vmem:[%s1450 + $0x110] sm:%s1442] %v1523
                %v1525 = vld [vmem:[%s1449 + $0x94] sm:%s1442]
                %1526 = vst [vmem:[%s1450 + $0x114] sm:%s1442] %v1525
                %v1527 = vld [vmem:[%s1449 + $0x98] sm:%s1442]
                %1528 = vst [vmem:[%s1450 + $0x118] sm:%s1442] %v1527
                %v1529 = vld [vmem:[%s1449 + $0x9c] sm:%s1442]
                %1530 = vst [vmem:[%s1450 + $0x11c] sm:%s1442] %v1529
                %v1531 = vld [vmem:[%s1449 + $0xa0] sm:%s1442]
                %1532 = vst [vmem:[%s1450 + $0x120] sm:%s1442] %v1531
                %v1533 = vld [vmem:[%s1449 + $0xa4] sm:%s1442]
                %1534 = vst [vmem:[%s1450 + $0x124] sm:%s1442] %v1533
                %v1535 = vld [vmem:[%s1449 + $0xa8] sm:%s1442]
                %1536 = vst [vmem:[%s1450 + $0x128] sm:%s1442] %v1535
                %v1537 = vld [vmem:[%s1449 + $0xac] sm:%s1442]
                %1538 = vst [vmem:[%s1450 + $0x12c] sm:%s1442] %v1537
                %v1539 = vld [vmem:[%s1449 + $0xb0] sm:%s1442]
                %1540 = vst [vmem:[%s1450 + $0x130] sm:%s1442] %v1539
                %v1541 = vld [vmem:[%s1449 + $0xb4] sm:%s1442]
                %1542 = vst [vmem:[%s1450 + $0x134] sm:%s1442] %v1541
                %v1543 = vld [vmem:[%s1449 + $0xb8] sm:%s1442]
                %1544 = vst [vmem:[%s1450 + $0x138] sm:%s1442] %v1543
                %v1545 = vld [vmem:[%s1449 + $0xbc] sm:%s1442]
                %1546 = vst [vmem:[%s1450 + $0x13c] sm:%s1442] %v1545
                %v1547 = vld [vmem:[%s1449 + $0xc0] sm:%s1442]
                %1548 = vst [vmem:[%s1450 + $0x180] sm:%s1442] %v1547
                %v1549 = vld [vmem:[%s1449 + $0xc4] sm:%s1442]
                %1550 = vst [vmem:[%s1450 + $0x184] sm:%s1442] %v1549
                %v1551 = vld [vmem:[%s1449 + $0xc8] sm:%s1442]
                %1552 = vst [vmem:[%s1450 + $0x188] sm:%s1442] %v1551
                %v1553 = vld [vmem:[%s1449 + $0xcc] sm:%s1442]
                %1554 = vst [vmem:[%s1450 + $0x18c] sm:%s1442] %v1553
                %v1555 = vld [vmem:[%s1449 + $0xd0] sm:%s1442]
                %1556 = vst [vmem:[%s1450 + $0x190] sm:%s1442] %v1555
                %v1557 = vld [vmem:[%s1449 + $0xd4] sm:%s1442]
                %1558 = vst [vmem:[%s1450 + $0x194] sm:%s1442] %v1557
                %v1559 = vld [vmem:[%s1449 + $0xd8] sm:%s1442]
                %1560 = vst [vmem:[%s1450 + $0x198] sm:%s1442] %v1559
                %v1561 = vld [vmem:[%s1449 + $0xdc] sm:%s1442]
                %1562 = vst [vmem:[%s1450 + $0x19c] sm:%s1442] %v1561
                %v1563 = vld [vmem:[%s1449 + $0xe0] sm:%s1442]
                %1564 = vst [vmem:[%s1450 + $0x1a0] sm:%s1442] %v1563
                %v1565 = vld [vmem:[%s1449 + $0xe4] sm:%s1442]
                %1566 = vst [vmem:[%s1450 + $0x1a4] sm:%s1442] %v1565
                %v1567 = vld [vmem:[%s1449 + $0xe8] sm:%s1442]
                %1568 = vst [vmem:[%s1450 + $0x1a8] sm:%s1442] %v1567
                %v1569 = vld [vmem:[%s1449 + $0xec] sm:%s1442]
                %1570 = vst [vmem:[%s1450 + $0x1ac] sm:%s1442] %v1569
                %v1571 = vld [vmem:[%s1449 + $0xf0] sm:%s1442]
                %1572 = vst [vmem:[%s1450 + $0x1b0] sm:%s1442] %v1571
                %v1573 = vld [vmem:[%s1449 + $0xf4] sm:%s1442]
                %1574 = vst [vmem:[%s1450 + $0x1b4] sm:%s1442] %v1573
                %v1575 = vld [vmem:[%s1449 + $0xf8] sm:%s1442]
                %1576 = vst [vmem:[%s1450 + $0x1b8] sm:%s1442] %v1575
                %v1577 = vld [vmem:[%s1449 + $0xfc] sm:%s1442]
                %1578 = vst [vmem:[%s1450 + $0x1bc] sm:%s1442] %v1577
              $region61: #{tpu_custom_call.1} parent=55 // loop_footer
                %s1448 = sadd.s32 1, %s1444
              $region62: #{tpu_custom_call.1} parent=55 // loop_footer_branch
                %1443 = sbr.rel target = $region58
              $region63: #{tpu_custom_call.1} parent=55 // loop_exit
                _
            $region56: #{tpu_custom_call.1} parent=47 // pred_fallthru
              _
          $region48: #{tpu_custom_call.1} parent=43 // pred_fallthru
            _
          %1727 = vnop
        $region44: #{tpu_custom_call.1} parent=31 // pred_fallthru
          _
        // Predicated region
        $region82: #{tpu_custom_call.1} parent=31 // pred_check
          %p1728 = pneg %p154
        $region83: #{tpu_custom_call.1} parent=31 // pred_check_branch
          %1730 = sbr.rel (%p1728) target = $region85
        $region84: #{tpu_custom_call.1} parent=31 // pred_region
          %s1732 = ssub.s32 1024, 1024
          %1733 = vsyncadd %s1419, %s1732
          %s1734 = smul.addr %s28, 32
          %s1735 = sadd.s32 %s29, %s1734
          %s1736 = smul.addr %s1735, 64
          %s1737 = scalar_lea.hbm %s4, %s1736
          %s1738 = sshll.u32 %s1422, 4
          %s1739 = int_to_ptr.vmem [resolvable:$true] %s1738
          %1744 = dma.vmem_to_hbm [thread:$0]  %s1739, 1024, %s1737, %s1419, 64, 128, 4
        $region85: #{tpu_custom_call.1} parent=31 // pred_fallthru
          _
        // Predicated region
        $region86: #{tpu_custom_call.1} parent=31 // pred_check
          %p1745 = pneg %p182
        $region87: #{tpu_custom_call.1} parent=31 // pred_check_branch
          %1747 = sbr.rel (%p1745) target = $region89
        $region88: #{tpu_custom_call.1} parent=31 // pred_region
          %s1748 = smul.u32 16, %s29
          %s1749 = smul.addr %s28, 128
          %s1750 = sadd.s32 %s1748, %s1749
          %s1751 = smul.addr %s1750, 4
          %s1752 = scalar_lea.vmem %s5, %s1751
          // Predicated region
          $region90: #{tpu_custom_call.1} parent=88 // pred_check
            _
          $region91: #{tpu_custom_call.1} parent=88 // pred_check_branch
            %1754 = sbr.rel (0) target = $region93
          $region92: #{tpu_custom_call.1} parent=88 // pred_region
            // Predicated region
            $region94: #{tpu_custom_call.1} parent=92 // pred_check
              _
            $region95: #{tpu_custom_call.1} parent=92 // pred_check_branch
              %1756 = sbr.rel target = $region97
            $region96: #{tpu_custom_call.1} parent=92 // pred_region
              // Predicated region
              $region109: #{tpu_custom_call.1} parent=96 // pred_check
                _
              $region110: #{tpu_custom_call.1} parent=96 // pred_check_branch
                %1898 = sbr.rel (0) target = $region112
              $region111: #{tpu_custom_call.1} parent=96 // pred_region
                loop: start=0, step=1, limit=1
                $region113: #{tpu_custom_call.1} parent=111 // loop_pre_header
                  _
                $region114: #{tpu_custom_call.1} parent=111 // loop_header
                  %s1900 = sphi 0, %s1904
                  %p1901 = scmp.ge.s32.totalorder %s1900, 1
                  %s1905 = sphi %s1426, %s1426
                  %s1906 = sphi %s1752, %s1752
                $region115: #{tpu_custom_call.1} parent=111 // loop_header_branch
                  %1903 = sbr.rel (%p1901) target = $region119
                $region116: #{tpu_custom_call.1} parent=111 // loop_body
                  _
                $region117: #{tpu_custom_call.1} parent=111 // loop_footer
                  %s1904 = sadd.s32 1, %s1900
                $region118: #{tpu_custom_call.1} parent=111 // loop_footer_branch
                  %1899 = sbr.rel target = $region114
                $region119: #{tpu_custom_call.1} parent=111 // loop_exit
                  _
                %s1908 = ssub.s32 16, 1
                loop: start=0, step=1, limit=1
                $region120: #{tpu_custom_call.1} parent=111 // loop_pre_header
                  _
                $region121: #{tpu_custom_call.1} parent=111 // loop_header
                  %s1910 = sphi 0, %s1914
                  %p1911 = scmp.ge.s32.totalorder %s1910, 1
                  %s1915 = sphi %s1426, %s1426
                  %s1916 = sphi %s1752, %s1752
                $region122: #{tpu_custom_call.1} parent=111 // loop_header_branch
                  %1913 = sbr.rel (%p1911) target = $region126
                $region123: #{tpu_custom_call.1} parent=111 // loop_body
                  %v1917 = vld [vmem:[%s1915] sm:%s1908]
                  %1918 = vst [vmem:[%s1916] sm:%s1908] %v1917
                  %v1919 = vld [vmem:[%s1915 + $0x4] sm:%s1908]
                  %1920 = vst [vmem:[%s1916 + $0x4] sm:%s1908] %v1919
                  %v1921 = vld [vmem:[%s1915 + $0x8] sm:%s1908]
                  %1922 = vst [vmem:[%s1916 + $0x8] sm:%s1908] %v1921
                  %v1923 = vld [vmem:[%s1915 + $0xc] sm:%s1908]
                  %1924 = vst [vmem:[%s1916 + $0xc] sm:%s1908] %v1923
                  %v1925 = vld [vmem:[%s1915 + $0x10] sm:%s1908]
                  %1926 = vst [vmem:[%s1916 + $0x10] sm:%s1908] %v1925
                  %v1927 = vld [vmem:[%s1915 + $0x14] sm:%s1908]
                  %1928 = vst [vmem:[%s1916 + $0x14] sm:%s1908] %v1927
                  %v1929 = vld [vmem:[%s1915 + $0x18] sm:%s1908]
                  %1930 = vst [vmem:[%s1916 + $0x18] sm:%s1908] %v1929
                  %v1931 = vld [vmem:[%s1915 + $0x1c] sm:%s1908]
                  %1932 = vst [vmem:[%s1916 + $0x1c] sm:%s1908] %v1931
                  %v1933 = vld [vmem:[%s1915 + $0x20] sm:%s1908]
                  %1934 = vst [vmem:[%s1916 + $0x20] sm:%s1908] %v1933
                  %v1935 = vld [vmem:[%s1915 + $0x24] sm:%s1908]
                  %1936 = vst [vmem:[%s1916 + $0x24] sm:%s1908] %v1935
                  %v1937 = vld [vmem:[%s1915 + $0x28] sm:%s1908]
                  %1938 = vst [vmem:[%s1916 + $0x28] sm:%s1908] %v1937
                  %v1939 = vld [vmem:[%s1915 + $0x2c] sm:%s1908]
                  %1940 = vst [vmem:[%s1916 + $0x2c] sm:%s1908] %v1939
                  %v1941 = vld [vmem:[%s1915 + $0x30] sm:%s1908]
                  %1942 = vst [vmem:[%s1916 + $0x30] sm:%s1908] %v1941
                  %v1943 = vld [vmem:[%s1915 + $0x34] sm:%s1908]
                  %1944 = vst [vmem:[%s1916 + $0x34] sm:%s1908] %v1943
                  %v1945 = vld [vmem:[%s1915 + $0x38] sm:%s1908]
                  %1946 = vst [vmem:[%s1916 + $0x38] sm:%s1908] %v1945
                  %v1947 = vld [vmem:[%s1915 + $0x3c] sm:%s1908]
                  %1948 = vst [vmem:[%s1916 + $0x3c] sm:%s1908] %v1947
                  %v1949 = vld [vmem:[%s1915 + $0x40] sm:%s1908]
                  %1950 = vst [vmem:[%s1916 + $0x80] sm:%s1908] %v1949
                  %v1951 = vld [vmem:[%s1915 + $0x44] sm:%s1908]
                  %1952 = vst [vmem:[%s1916 + $0x84] sm:%s1908] %v1951
                  %v1953 = vld [vmem:[%s1915 + $0x48] sm:%s1908]
                  %1954 = vst [vmem:[%s1916 + $0x88] sm:%s1908] %v1953
                  %v1955 = vld [vmem:[%s1915 + $0x4c] sm:%s1908]
                  %1956 = vst [vmem:[%s1916 + $0x8c] sm:%s1908] %v1955
                  %v1957 = vld [vmem:[%s1915 + $0x50] sm:%s1908]
                  %1958 = vst [vmem:[%s1916 + $0x90] sm:%s1908] %v1957
                  %v1959 = vld [vmem:[%s1915 + $0x54] sm:%s1908]
                  %1960 = vst [vmem:[%s1916 + $0x94] sm:%s1908] %v1959
                  %v1961 = vld [vmem:[%s1915 + $0x58] sm:%s1908]
                  %1962 = vst [vmem:[%s1916 + $0x98] sm:%s1908] %v1961
                  %v1963 = vld [vmem:[%s1915 + $0x5c] sm:%s1908]
                  %1964 = vst [vmem:[%s1916 + $0x9c] sm:%s1908] %v1963
                  %v1965 = vld [vmem:[%s1915 + $0x60] sm:%s1908]
                  %1966 = vst [vmem:[%s1916 + $0xa0] sm:%s1908] %v1965
                  %v1967 = vld [vmem:[%s1915 + $0x64] sm:%s1908]
                  %1968 = vst [vmem:[%s1916 + $0xa4] sm:%s1908] %v1967
                  %v1969 = vld [vmem:[%s1915 + $0x68] sm:%s1908]
                  %1970 = vst [vmem:[%s1916 + $0xa8] sm:%s1908] %v1969
                  %v1971 = vld [vmem:[%s1915 + $0x6c] sm:%s1908]
                  %1972 = vst [vmem:[%s1916 + $0xac] sm:%s1908] %v1971
                  %v1973 = vld [vmem:[%s1915 + $0x70] sm:%s1908]
                  %1974 = vst [vmem:[%s1916 + $0xb0] sm:%s1908] %v1973
                  %v1975 = vld [vmem:[%s1915 + $0x74] sm:%s1908]
                  %1976 = vst [vmem:[%s1916 + $0xb4] sm:%s1908] %v1975
                  %v1977 = vld [vmem:[%s1915 + $0x78] sm:%s1908]
                  %1978 = vst [vmem:[%s1916 + $0xb8] sm:%s1908] %v1977
                  %v1979 = vld [vmem:[%s1915 + $0x7c] sm:%s1908]
                  %1980 = vst [vmem:[%s1916 + $0xbc] sm:%s1908] %v1979
                  %v1981 = vld [vmem:[%s1915 + $0x80] sm:%s1908]
                  %1982 = vst [vmem:[%s1916 + $0x100] sm:%s1908] %v1981
                  %v1983 = vld [vmem:[%s1915 + $0x84] sm:%s1908]
                  %1984 = vst [vmem:[%s1916 + $0x104] sm:%s1908] %v1983
                  %v1985 = vld [vmem:[%s1915 + $0x88] sm:%s1908]
                  %1986 = vst [vmem:[%s1916 + $0x108] sm:%s1908] %v1985
                  %v1987 = vld [vmem:[%s1915 + $0x8c] sm:%s1908]
                  %1988 = vst [vmem:[%s1916 + $0x10c] sm:%s1908] %v1987
                  %v1989 = vld [vmem:[%s1915 + $0x90] sm:%s1908]
                  %1990 = vst [vmem:[%s1916 + $0x110] sm:%s1908] %v1989
                  %v1991 = vld [vmem:[%s1915 + $0x94] sm:%s1908]
                  %1992 = vst [vmem:[%s1916 + $0x114] sm:%s1908] %v1991
                  %v1993 = vld [vmem:[%s1915 + $0x98] sm:%s1908]
                  %1994 = vst [vmem:[%s1916 + $0x118] sm:%s1908] %v1993
                  %v1995 = vld [vmem:[%s1915 + $0x9c] sm:%s1908]
                  %1996 = vst [vmem:[%s1916 + $0x11c] sm:%s1908] %v1995
                  %v1997 = vld [vmem:[%s1915 + $0xa0] sm:%s1908]
                  %1998 = vst [vmem:[%s1916 + $0x120] sm:%s1908] %v1997
                  %v1999 = vld [vmem:[%s1915 + $0xa4] sm:%s1908]
                  %2000 = vst [vmem:[%s1916 + $0x124] sm:%s1908] %v1999
                  %v2001 = vld [vmem:[%s1915 + $0xa8] sm:%s1908]
                  %2002 = vst [vmem:[%s1916 + $0x128] sm:%s1908] %v2001
                  %v2003 = vld [vmem:[%s1915 + $0xac] sm:%s1908]
                  %2004 = vst [vmem:[%s1916 + $0x12c] sm:%s1908] %v2003
                  %v2005 = vld [vmem:[%s1915 + $0xb0] sm:%s1908]
                  %2006 = vst [vmem:[%s1916 + $0x130] sm:%s1908] %v2005
                  %v2007 = vld [vmem:[%s1915 + $0xb4] sm:%s1908]
                  %2008 = vst [vmem:[%s1916 + $0x134] sm:%s1908] %v2007
                  %v2009 = vld [vmem:[%s1915 + $0xb8] sm:%s1908]
                  %2010 = vst [vmem:[%s1916 + $0x138] sm:%s1908] %v2009
                  %v2011 = vld [vmem:[%s1915 + $0xbc] sm:%s1908]
                  %2012 = vst [vmem:[%s1916 + $0x13c] sm:%s1908] %v2011
                  %v2013 = vld [vmem:[%s1915 + $0xc0] sm:%s1908]
                  %2014 = vst [vmem:[%s1916 + $0x180] sm:%s1908] %v2013
                  %v2015 = vld [vmem:[%s1915 + $0xc4] sm:%s1908]
                  %2016 = vst [vmem:[%s1916 + $0x184] sm:%s1908] %v2015
                  %v2017 = vld [vmem:[%s1915 + $0xc8] sm:%s1908]
                  %2018 = vst [vmem:[%s1916 + $0x188] sm:%s1908] %v2017
                  %v2019 = vld [vmem:[%s1915 + $0xcc] sm:%s1908]
                  %2020 = vst [vmem:[%s1916 + $0x18c] sm:%s1908] %v2019
                  %v2021 = vld [vmem:[%s1915 + $0xd0] sm:%s1908]
                  %2022 = vst [vmem:[%s1916 + $0x190] sm:%s1908] %v2021
                  %v2023 = vld [vmem:[%s1915 + $0xd4] sm:%s1908]
                  %2024 = vst [vmem:[%s1916 + $0x194] sm:%s1908] %v2023
                  %v2025 = vld [vmem:[%s1915 + $0xd8] sm:%s1908]
                  %2026 = vst [vmem:[%s1916 + $0x198] sm:%s1908] %v2025
                  %v2027 = vld [vmem:[%s1915 + $0xdc] sm:%s1908]
                  %2028 = vst [vmem:[%s1916 + $0x19c] sm:%s1908] %v2027
                  %v2029 = vld [vmem:[%s1915 + $0xe0] sm:%s1908]
                  %2030 = vst [vmem:[%s1916 + $0x1a0] sm:%s1908] %v2029
                  %v2031 = vld [vmem:[%s1915 + $0xe4] sm:%s1908]
                  %2032 = vst [vmem:[%s1916 + $0x1a4] sm:%s1908] %v2031
                  %v2033 = vld [vmem:[%s1915 + $0xe8] sm:%s1908]
                  %2034 = vst [vmem:[%s1916 + $0x1a8] sm:%s1908] %v2033
                  %v2035 = vld [vmem:[%s1915 + $0xec] sm:%s1908]
                  %2036 = vst [vmem:[%s1916 + $0x1ac] sm:%s1908] %v2035
                  %v2037 = vld [vmem:[%s1915 + $0xf0] sm:%s1908]
                  %2038 = vst [vmem:[%s1916 + $0x1b0] sm:%s1908] %v2037
                  %v2039 = vld [vmem:[%s1915 + $0xf4] sm:%s1908]
                  %2040 = vst [vmem:[%s1916 + $0x1b4] sm:%s1908] %v2039
                  %v2041 = vld [vmem:[%s1915 + $0xf8] sm:%s1908]
                  %2042 = vst [vmem:[%s1916 + $0x1b8] sm:%s1908] %v2041
                  %v2043 = vld [vmem:[%s1915 + $0xfc] sm:%s1908]
                  %2044 = vst [vmem:[%s1916 + $0x1bc] sm:%s1908] %v2043
                $region124: #{tpu_custom_call.1} parent=111 // loop_footer
                  %s1914 = sadd.s32 1, %s1910
                $region125: #{tpu_custom_call.1} parent=111 // loop_footer_branch
                  %1909 = sbr.rel target = $region121
                $region126: #{tpu_custom_call.1} parent=111 // loop_exit
                  _
              $region112: #{tpu_custom_call.1} parent=96 // pred_fallthru
                _
            $region97: #{tpu_custom_call.1} parent=92 // pred_fallthru
              _
            // Predicated region
            $region98: #{tpu_custom_call.1} parent=92 // pred_check
              _
            $region99: #{tpu_custom_call.1} parent=92 // pred_check_branch
              %1758 = sbr.rel (0) target = $region101
            $region100: #{tpu_custom_call.1} parent=92 // pred_region
              %s1760 = ssub.s32 16, 1
              loop: start=0, step=1, limit=1
              $region102: #{tpu_custom_call.1} parent=100 // loop_pre_header
                _
              $region103: #{tpu_custom_call.1} parent=100 // loop_header
                %s1762 = sphi 0, %s1766
                %p1763 = scmp.ge.s32.totalorder %s1762, 1
                %s1767 = sphi %s1426, %s1426
                %s1768 = sphi %s1752, %s1752
              $region104: #{tpu_custom_call.1} parent=100 // loop_header_branch
                %1765 = sbr.rel (%p1763) target = $region108
              $region105: #{tpu_custom_call.1} parent=100 // loop_body
                %v1769 = vld [vmem:[%s1767] sm:%s1760]
                %1770 = vst [vmem:[%s1768] sm:%s1760] %v1769
                %v1771 = vld [vmem:[%s1767 + $0x4] sm:%s1760]
                %1772 = vst [vmem:[%s1768 + $0x4] sm:%s1760] %v1771
                %v1773 = vld [vmem:[%s1767 + $0x8] sm:%s1760]
                %1774 = vst [vmem:[%s1768 + $0x8] sm:%s1760] %v1773
                %v1775 = vld [vmem:[%s1767 + $0xc] sm:%s1760]
                %1776 = vst [vmem:[%s1768 + $0xc] sm:%s1760] %v1775
                %v1777 = vld [vmem:[%s1767 + $0x10] sm:%s1760]
                %1778 = vst [vmem:[%s1768 + $0x10] sm:%s1760] %v1777
                %v1779 = vld [vmem:[%s1767 + $0x14] sm:%s1760]
                %1780 = vst [vmem:[%s1768 + $0x14] sm:%s1760] %v1779
                %v1781 = vld [vmem:[%s1767 + $0x18] sm:%s1760]
                %1782 = vst [vmem:[%s1768 + $0x18] sm:%s1760] %v1781
                %v1783 = vld [vmem:[%s1767 + $0x1c] sm:%s1760]
                %1784 = vst [vmem:[%s1768 + $0x1c] sm:%s1760] %v1783
                %v1785 = vld [vmem:[%s1767 + $0x20] sm:%s1760]
                %1786 = vst [vmem:[%s1768 + $0x20] sm:%s1760] %v1785
                %v1787 = vld [vmem:[%s1767 + $0x24] sm:%s1760]
                %1788 = vst [vmem:[%s1768 + $0x24] sm:%s1760] %v1787
                %v1789 = vld [vmem:[%s1767 + $0x28] sm:%s1760]
                %1790 = vst [vmem:[%s1768 + $0x28] sm:%s1760] %v1789
                %v1791 = vld [vmem:[%s1767 + $0x2c] sm:%s1760]
                %1792 = vst [vmem:[%s1768 + $0x2c] sm:%s1760] %v1791
                %v1793 = vld [vmem:[%s1767 + $0x30] sm:%s1760]
                %1794 = vst [vmem:[%s1768 + $0x30] sm:%s1760] %v1793
                %v1795 = vld [vmem:[%s1767 + $0x34] sm:%s1760]
                %1796 = vst [vmem:[%s1768 + $0x34] sm:%s1760] %v1795
                %v1797 = vld [vmem:[%s1767 + $0x38] sm:%s1760]
                %1798 = vst [vmem:[%s1768 + $0x38] sm:%s1760] %v1797
                %v1799 = vld [vmem:[%s1767 + $0x3c] sm:%s1760]
                %1800 = vst [vmem:[%s1768 + $0x3c] sm:%s1760] %v1799
                %v1801 = vld [vmem:[%s1767 + $0x40] sm:%s1760]
                %1802 = vst [vmem:[%s1768 + $0x80] sm:%s1760] %v1801
                %v1803 = vld [vmem:[%s1767 + $0x44] sm:%s1760]
                %1804 = vst [vmem:[%s1768 + $0x84] sm:%s1760] %v1803
                %v1805 = vld [vmem:[%s1767 + $0x48] sm:%s1760]
                %1806 = vst [vmem:[%s1768 + $0x88] sm:%s1760] %v1805
                %v1807 = vld [vmem:[%s1767 + $0x4c] sm:%s1760]
                %1808 = vst [vmem:[%s1768 + $0x8c] sm:%s1760] %v1807
                %v1809 = vld [vmem:[%s1767 + $0x50] sm:%s1760]
                %1810 = vst [vmem:[%s1768 + $0x90] sm:%s1760] %v1809
                %v1811 = vld [vmem:[%s1767 + $0x54] sm:%s1760]
                %1812 = vst [vmem:[%s1768 + $0x94] sm:%s1760] %v1811
                %v1813 = vld [vmem:[%s1767 + $0x58] sm:%s1760]
                %1814 = vst [vmem:[%s1768 + $0x98] sm:%s1760] %v1813
                %v1815 = vld [vmem:[%s1767 + $0x5c] sm:%s1760]
                %1816 = vst [vmem:[%s1768 + $0x9c] sm:%s1760] %v1815
                %v1817 = vld [vmem:[%s1767 + $0x60] sm:%s1760]
                %1818 = vst [vmem:[%s1768 + $0xa0] sm:%s1760] %v1817
                %v1819 = vld [vmem:[%s1767 + $0x64] sm:%s1760]
                %1820 = vst [vmem:[%s1768 + $0xa4] sm:%s1760] %v1819
                %v1821 = vld [vmem:[%s1767 + $0x68] sm:%s1760]
                %1822 = vst [vmem:[%s1768 + $0xa8] sm:%s1760] %v1821
                %v1823 = vld [vmem:[%s1767 + $0x6c] sm:%s1760]
                %1824 = vst [vmem:[%s1768 + $0xac] sm:%s1760] %v1823
                %v1825 = vld [vmem:[%s1767 + $0x70] sm:%s1760]
                %1826 = vst [vmem:[%s1768 + $0xb0] sm:%s1760] %v1825
                %v1827 = vld [vmem:[%s1767 + $0x74] sm:%s1760]
                %1828 = vst [vmem:[%s1768 + $0xb4] sm:%s1760] %v1827
                %v1829 = vld [vmem:[%s1767 + $0x78] sm:%s1760]
                %1830 = vst [vmem:[%s1768 + $0xb8] sm:%s1760] %v1829
                %v1831 = vld [vmem:[%s1767 + $0x7c] sm:%s1760]
                %1832 = vst [vmem:[%s1768 + $0xbc] sm:%s1760] %v1831
                %v1833 = vld [vmem:[%s1767 + $0x80] sm:%s1760]
                %1834 = vst [vmem:[%s1768 + $0x100] sm:%s1760] %v1833
                %v1835 = vld [vmem:[%s1767 + $0x84] sm:%s1760]
                %1836 = vst [vmem:[%s1768 + $0x104] sm:%s1760] %v1835
                %v1837 = vld [vmem:[%s1767 + $0x88] sm:%s1760]
                %1838 = vst [vmem:[%s1768 + $0x108] sm:%s1760] %v1837
                %v1839 = vld [vmem:[%s1767 + $0x8c] sm:%s1760]
                %1840 = vst [vmem:[%s1768 + $0x10c] sm:%s1760] %v1839
                %v1841 = vld [vmem:[%s1767 + $0x90] sm:%s1760]
                %1842 = vst [vmem:[%s1768 + $0x110] sm:%s1760] %v1841
                %v1843 = vld [vmem:[%s1767 + $0x94] sm:%s1760]
                %1844 = vst [vmem:[%s1768 + $0x114] sm:%s1760] %v1843
                %v1845 = vld [vmem:[%s1767 + $0x98] sm:%s1760]
                %1846 = vst [vmem:[%s1768 + $0x118] sm:%s1760] %v1845
                %v1847 = vld [vmem:[%s1767 + $0x9c] sm:%s1760]
                %1848 = vst [vmem:[%s1768 + $0x11c] sm:%s1760] %v1847
                %v1849 = vld [vmem:[%s1767 + $0xa0] sm:%s1760]
                %1850 = vst [vmem:[%s1768 + $0x120] sm:%s1760] %v1849
                %v1851 = vld [vmem:[%s1767 + $0xa4] sm:%s1760]
                %1852 = vst [vmem:[%s1768 + $0x124] sm:%s1760] %v1851
                %v1853 = vld [vmem:[%s1767 + $0xa8] sm:%s1760]
                %1854 = vst [vmem:[%s1768 + $0x128] sm:%s1760] %v1853
                %v1855 = vld [vmem:[%s1767 + $0xac] sm:%s1760]
                %1856 = vst [vmem:[%s1768 + $0x12c] sm:%s1760] %v1855
                %v1857 = vld [vmem:[%s1767 + $0xb0] sm:%s1760]
                %1858 = vst [vmem:[%s1768 + $0x130] sm:%s1760] %v1857
                %v1859 = vld [vmem:[%s1767 + $0xb4] sm:%s1760]
                %1860 = vst [vmem:[%s1768 + $0x134] sm:%s1760] %v1859
                %v1861 = vld [vmem:[%s1767 + $0xb8] sm:%s1760]
                %1862 = vst [vmem:[%s1768 + $0x138] sm:%s1760] %v1861
                %v1863 = vld [vmem:[%s1767 + $0xbc] sm:%s1760]
                %1864 = vst [vmem:[%s1768 + $0x13c] sm:%s1760] %v1863
                %v1865 = vld [vmem:[%s1767 + $0xc0] sm:%s1760]
                %1866 = vst [vmem:[%s1768 + $0x180] sm:%s1760] %v1865
                %v1867 = vld [vmem:[%s1767 + $0xc4] sm:%s1760]
                %1868 = vst [vmem:[%s1768 + $0x184] sm:%s1760] %v1867
                %v1869 = vld [vmem:[%s1767 + $0xc8] sm:%s1760]
                %1870 = vst [vmem:[%s1768 + $0x188] sm:%s1760] %v1869
                %v1871 = vld [vmem:[%s1767 + $0xcc] sm:%s1760]
                %1872 = vst [vmem:[%s1768 + $0x18c] sm:%s1760] %v1871
                %v1873 = vld [vmem:[%s1767 + $0xd0] sm:%s1760]
                %1874 = vst [vmem:[%s1768 + $0x190] sm:%s1760] %v1873
                %v1875 = vld [vmem:[%s1767 + $0xd4] sm:%s1760]
                %1876 = vst [vmem:[%s1768 + $0x194] sm:%s1760] %v1875
                %v1877 = vld [vmem:[%s1767 + $0xd8] sm:%s1760]
                %1878 = vst [vmem:[%s1768 + $0x198] sm:%s1760] %v1877
                %v1879 = vld [vmem:[%s1767 + $0xdc] sm:%s1760]
                %1880 = vst [vmem:[%s1768 + $0x19c] sm:%s1760] %v1879
                %v1881 = vld [vmem:[%s1767 + $0xe0] sm:%s1760]
                %1882 = vst [vmem:[%s1768 + $0x1a0] sm:%s1760] %v1881
                %v1883 = vld [vmem:[%s1767 + $0xe4] sm:%s1760]
                %1884 = vst [vmem:[%s1768 + $0x1a4] sm:%s1760] %v1883
                %v1885 = vld [vmem:[%s1767 + $0xe8] sm:%s1760]
                %1886 = vst [vmem:[%s1768 + $0x1a8] sm:%s1760] %v1885
                %v1887 = vld [vmem:[%s1767 + $0xec] sm:%s1760]
                %1888 = vst [vmem:[%s1768 + $0x1ac] sm:%s1760] %v1887
                %v1889 = vld [vmem:[%s1767 + $0xf0] sm:%s1760]
                %1890 = vst [vmem:[%s1768 + $0x1b0] sm:%s1760] %v1889
                %v1891 = vld [vmem:[%s1767 + $0xf4] sm:%s1760]
                %1892 = vst [vmem:[%s1768 + $0x1b4] sm:%s1760] %v1891
                %v1893 = vld [vmem:[%s1767 + $0xf8] sm:%s1760]
                %1894 = vst [vmem:[%s1768 + $0x1b8] sm:%s1760] %v1893
                %v1895 = vld [vmem:[%s1767 + $0xfc] sm:%s1760]
                %1896 = vst [vmem:[%s1768 + $0x1bc] sm:%s1760] %v1895
              $region106: #{tpu_custom_call.1} parent=100 // loop_footer
                %s1766 = sadd.s32 1, %s1762
              $region107: #{tpu_custom_call.1} parent=100 // loop_footer_branch
                %1761 = sbr.rel target = $region103
              $region108: #{tpu_custom_call.1} parent=100 // loop_exit
                _
            $region101: #{tpu_custom_call.1} parent=92 // pred_fallthru
              _
          $region93: #{tpu_custom_call.1} parent=88 // pred_fallthru
            _
          %2045 = vnop
        $region89: #{tpu_custom_call.1} parent=31 // pred_fallthru
          _
      $region32: #{tpu_custom_call.1} parent=5 // pred_fallthru
        _
      %p2046 = scmp.le.s32.totalorder 2, %s19
      // Predicated region
      $region127: #{tpu_custom_call.1} parent=5 // pred_check
        %p2047 = pneg %p2046
      $region128: #{tpu_custom_call.1} parent=5 // pred_check_branch
        %2049 = sbr.rel (%p2047) target = $region130
      $region129: #{tpu_custom_call.1} parent=5 // pred_region
        %s2050 = ssub.s32 %s19, 2
        // Predicated region
        $region131: #{tpu_custom_call.1} parent=129 // pred_check
          %p2051 = pneg %p132
        $region132: #{tpu_custom_call.1} parent=129 // pred_check_branch
          %2053 = sbr.rel (%p2051) target = $region134
        $region133: #{tpu_custom_call.1} parent=129 // pred_region
          %s2054 = sand.u32 %s117, 1
          %s2055 = sand.u32 %s117, 1
          %s2056 = smul.addr %s2055, 256
          %s2057 = scalar_lea.vmem [#allocation7], %s2056
        $region134: #{tpu_custom_call.1} parent=129 // pred_fallthru
          _
        // Predicated region
        $region135: #{tpu_custom_call.1} parent=129 // pred_check
          %p2058 = pneg %p160
        $region136: #{tpu_custom_call.1} parent=129 // pred_check_branch
          %2060 = sbr.rel (%p2058) target = $region138
        $region137: #{tpu_custom_call.1} parent=129 // pred_region
          %s2061 = sand.u32 %s145, 1
          %s2062 = scalar_lea.sflag [#allocation4], %s2061
          %s2063 = sand.u32 %s145, 1
          %s2064 = smul.addr %s2063, 64
          %s2065 = scalar_lea.vmem [#allocation8], %s2064
          %2066 = dma.done %s2062, 1024
        $region138: #{tpu_custom_call.1} parent=129 // pred_fallthru
          _
        // Predicated region
        $region139: #{tpu_custom_call.1} parent=129 // pred_check
          %p2067 = pneg %p188
        $region140: #{tpu_custom_call.1} parent=129 // pred_check_branch
          %2069 = sbr.rel (%p2067) target = $region142
        $region141: #{tpu_custom_call.1} parent=129 // pred_region
          %s2070 = sand.u32 %s173, 1
          %s2071 = sand.u32 %s173, 1
          %s2072 = smul.addr %s2071, 256
          %s2073 = scalar_lea.vmem [#allocation9], %s2072
        $region142: #{tpu_custom_call.1} parent=129 // pred_fallthru
          _
      $region130: #{tpu_custom_call.1} parent=5 // pred_fallthru
        _
    $region6: #{tpu_custom_call.1} parent=1 // loop_footer
      %s23 = sadd.s32 1, %s19
    $region7: #{tpu_custom_call.1} parent=1 // loop_footer_branch
      %18 = sbr.rel target = $region3
    $region8: #{tpu_custom_call.1} parent=1 // loop_exit
      _
    %2074 = vsyncpa [#allocation3], 1
    %s2075 = scalar_lea.sflag [#allocation3], 1
    %2076 = vsyncpa %s2075, 1
    %2077 = vsyncpa [#allocation6], 1
    %2078 = vsyncpa [#allocation4], 1
    %s2079 = scalar_lea.sflag [#allocation4], 1
    %2080 = vsyncpa %s2079, 1

// kernel: tpu_custom_call.1
$region0: #{tpu_custom_call.1}
  #allocation0 [shape = 'u32[]', space=smem, size = 0x4, offset = 0x4, fixed_abs, tag = 'smem constant byte address 0x4 - core index']
  #allocation1 [shape = 'u32[144,128]{1,0:T(1,128)}', space=vmem, size = 0x12000, scoped, tag = 'internal scratch']
  %s0 = inlined_call_operand.hbm [shape: bf16[2,256,128], index: 0, kind: input, shape index: {}]
  %s1 = inlined_call_operand.hbm [shape: bf16[128,384], index: 1, kind: input, shape index: {}]
  %s2 = inlined_call_operand.vmem [shape: f32[1,384], index: 2, kind: input, shape index: {}]
  %s3 = inlined_call_operand.vmem [shape: bf16[2,4,256,32], index: 3, kind: output, shape index: {0}]
  %s4 = inlined_call_operand.hbm [shape: bf16[2,4,32,256], index: 4, kind: output, shape index: {1}]
  %s5 = inlined_call_operand.vmem [shape: bf16[2,4,256,32], index: 5, kind: output, shape index: {2}]
  %6 = xla_tuple %s3, %s4, %s5
  %s7 = sld [smem:[#allocation0]]
  $region143: #{tpu_custom_call.1} parent=0
    _
  %s9 = ssub.s32 1, %s7
  %s10 = scalar_select 0, %s9, %s7
  $region1: #{tpu_custom_call.1} parent=0
    #allocation2 [shape = 'u8[65536]{0}', space=vmem, size = 0x10000, scoped, tag = 'input window, operand 0']
    #allocation3 [shape = 's32[2]{0}', space=sflag, size = 0x8, scoped, tag = 'scoped memory for tpu_custom_call.1']
    #allocation4 [shape = 's32[2]{0}', space=sflag, size = 0x8, scoped, tag = 'scoped memory for tpu_custom_call.1']
    #allocation5 [shape = 'u8[98304]{0}', space=vmem, size = 0x18000, scoped, tag = 'input window, operand 1, single buffered']
    #allocation6 [shape = 's32[1]{0}', space=sflag, size = 0x4, scoped, tag = 'scoped memory for tpu_custom_call.1']
    #allocation7 [shape = 'u8[262144]{0}', space=vmem, size = 0x40000, scoped, tag = 'output window, operand 0']
    #allocation8 [shape = 'u8[65536]{0}', space=vmem, size = 0x10000, scoped, tag = 'output window, operand 1']
    #allocation9 [shape = 'u8[262144]{0}', space=vmem, size = 0x40000, scoped, tag = 'output window, operand 2']
    %11 = vsyncpa [#allocation3], 0
    %s12 = scalar_lea.sflag [#allocation3], 1
    %13 = vsyncpa %s12, 0
    %14 = vsyncpa [#allocation6], 0
    %15 = vsyncpa [#allocation4], 0
    %s16 = scalar_lea.sflag [#allocation4], 1
    %17 = vsyncpa %s16, 0
    loop: start=0, step=1, limit=6
    $region2: #{tpu_custom_call.1} parent=1 // loop_pre_header
      _
    $region3: #{tpu_custom_call.1} parent=1 // loop_header
      %s19 = sphi 0, %s23
      %p20 = scmp.ge.s32.totalorder %s19, 6
      %s26 = sphi 0, %s38
      %s27 = sphi 0, %s34
      %s28 = sphi 0, %s26
      %s29 = sphi 0, %s27
      %s30 = sphi 0, %s28
      %s31 = sphi 0, %s29
      %s43 = sphi 0, %s45
      %s46 = sphi 0, %s43
      %s47 = sphi 0, %s46
      %s63 = sphi 0, %s47
      %s67 = sphi 0, %s67
      %s69 = sphi 0, %s67
      %s70 = sphi 0, %s69
      %s84 = sphi 0, %s70
      %s88 = sphi 0, %s88
      %s90 = sphi 0, %s88
      %s91 = sphi 0, %s90
      %s105 = sphi 0, %s91
      %s113 = sphi 0, %s115
      %s116 = sphi 0, %s113
      %s117 = sphi 0, %s116
      %s133 = sphi 0, %s117
      %s141 = sphi 0, %s143
      %s144 = sphi 0, %s141
      %s145 = sphi 0, %s144
      %s161 = sphi 0, %s145
      %s169 = sphi 0, %s171
      %s172 = sphi 0, %s169
      %s173 = sphi 0, %s172
      %s189 = sphi 0, %s173
    $region4: #{tpu_custom_call.1} parent=1 // loop_header_branch
      %22 = sbr.rel (%p20) target = $region8
    $region5: #{tpu_custom_call.1} parent=1 // loop_body
      %s24 = ssub.s32 %s19, 1
      %s25 = ssub.s32 %s19, 2
      %s32 = sadd.s32 1, %s27
      %p33 = scmp.ge.s32.totalorder %s32, 2
      %s34 = scalar_select %p33, 0, %s32
      %s35 = sadd.s32 1, %s26
      %s36 = scalar_select %p33, %s35, %s26
      %p37 = scmp.ge.s32.totalorder %s36, 2
      %s38 = scalar_select %p37, 0, %s36
      %s39 = ssub.s32 %s26, %s38
      %s40 = ssub.s32 %s27, %s34
      %s41 = sor.u32 %s39, %s40
      %p42 = scmp.eq.s32.totalorder %s41, 0
      %s44 = sadd.s32 %s43, 1
      %s45 = scalar_select %p42, %s43, %s44
      %p48 = pneg %p42
      %p49 = scmp.eq.s32.totalorder %s19, 3
      %p50 = por %p48, %p49
      %p51 = scmp.ne.s32.totalorder %s43, %s46
      %p52 = scmp.eq.s32.totalorder %s19, 0
      %p53 = por %p51, %p52
      %p54 = scmp.ne.s32.totalorder %s43, %s46
      %p55 = scmp.eq.s32.totalorder %s24, 3
      %p56 = por %p54, %p55
      %p57 = scmp.ne.s32.totalorder %s46, %s47
      %p58 = scmp.eq.s32.totalorder %s24, 0
      %p59 = por %p57, %p58
      %p60 = scmp.ne.s32.totalorder %s46, %s47
      %p61 = scmp.eq.s32.totalorder %s25, 3
      %p62 = por %p60, %p61
      %p64 = scmp.ne.s32.totalorder %s47, %s63
      %p65 = scmp.eq.s32.totalorder %s25, 0
      %p66 = por %p64, %p65
      %s68 = sadd.s32 %s67, 1
      %p71 = scmp.eq.s32.totalorder %s19, 3
      %p72 = scmp.ne.s32.totalorder %s67, %s69
      %p73 = scmp.eq.s32.totalorder %s19, 0
      %p74 = por %p72, %p73
      %p75 = scmp.ne.s32.totalorder %s67, %s69
      %p76 = scmp.eq.s32.totalorder %s24, 3
      %p77 = por %p75, %p76
      %p78 = scmp.ne.s32.totalorder %s69, %s70
      %p79 = scmp.eq.s32.totalorder %s24, 0
      %p80 = por %p78, %p79
      %p81 = scmp.ne.s32.totalorder %s69, %s70
      %p82 = scmp.eq.s32.totalorder %s25, 3
      %p83 = por %p81, %p82
      %p85 = scmp.ne.s32.totalorder %s70, %s84
      %p86 = scmp.eq.s32.totalorder %s25, 0
      %p87 = por %p85, %p86
      %s89 = sadd.s32 %s88, 1
      %p92 = scmp.eq.s32.totalorder %s19, 3
      %p93 = scmp.ne.s32.totalorder %s88, %s90
      %p94 = scmp.eq.s32.totalorder %s19, 0
      %p95 = por %p93, %p94
      %p96 = scmp.ne.s32.totalorder %s88, %s90
      %p97 = scmp.eq.s32.totalorder %s24, 3
      %p98 = por %p96, %p97
      %p99 = scmp.ne.s32.totalorder %s90, %s91
      %p100 = scmp.eq.s32.totalorder %s24, 0
      %p101 = por %p99, %p100
      %p102 = scmp.ne.s32.totalorder %s90, %s91
      %p103 = scmp.eq.s32.totalorder %s25, 3
      %p104 = por %p102, %p103
      %p106 = scmp.ne.s32.totalorder %s91, %s105
      %p107 = scmp.eq.s32.totalorder %s25, 0
      %p108 = por %p106, %p107
      %s109 = ssub.s32 %s26, %s38
      %s110 = ssub.s32 %s27, %s34
      %s111 = sor.u32 %s109, %s110
      %p112 = scmp.eq.s32.totalorder %s111, 0
      %s114 = sadd.s32 %s113, 1
      %s115 = scalar_select %p112, %s113, %s114
      %p118 = pneg %p112
      %p119 = scmp.eq.s32.totalorder %s19, 3
      %p120 = por %p118, %p119
      %p121 = scmp.ne.s32.totalorder %s113, %s116
      %p122 = scmp.eq.s32.totalorder %s19, 0
      %p123 = por %p121, %p122
      %p124 = scmp.ne.s32.totalorder %s113, %s116
      %p125 = scmp.eq.s32.totalorder %s24, 3
      %p126 = por %p124, %p125
      %p127 = scmp.ne.s32.totalorder %s116, %s117
      %p128 = scmp.eq.s32.totalorder %s24, 0
      %p129 = por %p127, %p128
      %p130 = scmp.ne.s32.totalorder %s116, %s117
      %p131 = scmp.eq.s32.totalorder %s25, 3
      %p132 = por %p130, %p131
      %p134 = scmp.ne.s32.totalorder %s117, %s133
      %p135 = scmp.eq.s32.totalorder %s25, 0
      %p136 = por %p134, %p135
      %s137 = ssub.s32 %s26, %s38
      %s138 = ssub.s32 %s27, %s34
      %s139 = sor.u32 %s137, %s138
      %p140 = scmp.eq.s32.totalorder %s139, 0
      %s142 = sadd.s32 %s141, 1
      %s143 = scalar_select %p140, %s141, %s142
      %p146 = pneg %p140
      %p147 = scmp.eq.s32.totalorder %s19, 3
      %p148 = por %p146, %p147
      %p149 = scmp.ne.s32.totalorder %s141, %s144
      %p150 = scmp.eq.s32.totalorder %s19, 0
      %p151 = por %p149, %p150
      %p152 = scmp.ne.s32.totalorder %s141, %s144
      %p153 = scmp.eq.s32.totalorder %s24, 3
      %p154 = por %p152, %p153
      %p155 = scmp.ne.s32.totalorder %s144, %s145
      %p156 = scmp.eq.s32.totalorder %s24, 0
      %p157 = por %p155, %p156
      %p158 = scmp.ne.s32.totalorder %s144, %s145
      %p159 = scmp.eq.s32.totalorder %s25, 3
      %p160 = por %p158, %p159
      %p162 = scmp.ne.s32.totalorder %s145, %s161
      %p163 = scmp.eq.s32.totalorder %s25, 0
      %p164 = por %p162, %p163
      %s165 = ssub.s32 %s26, %s38
      %s166 = ssub.s32 %s27, %s34
      %s167 = sor.u32 %s165, %s166
      %p168 = scmp.eq.s32.totalorder %s167, 0
      %s170 = sadd.s32 %s169, 1
      %s171 = scalar_select %p168, %s169, %s170
      %p174 = pneg %p168
      %p175 = scmp.eq.s32.totalorder %s19, 3
      %p176 = por %p174, %p175
      %p177 = scmp.ne.s32.totalorder %s169, %s172
      %p178 = scmp.eq.s32.totalorder %s19, 0
      %p179 = por %p177, %p178
      %p180 = scmp.ne.s32.totalorder %s169, %s172
      %p181 = scmp.eq.s32.totalorder %s24, 3
      %p182 = por %p180, %p181
      %p183 = scmp.ne.s32.totalorder %s172, %s173
      %p184 = scmp.eq.s32.totalorder %s24, 0
      %p185 = por %p183, %p184
      %p186 = scmp.ne.s32.totalorder %s172, %s173
      %p187 = scmp.eq.s32.totalorder %s25, 3
      %p188 = por %p186, %p187
      %p190 = scmp.ne.s32.totalorder %s173, %s189
      %p191 = scmp.eq.s32.totalorder %s25, 0
      %p192 = por %p190, %p191
      %p193 = scmp.le.s32.totalorder 1, %s19
      %p194 = scmp.lt.s32.totalorder %s19, 5
      %p195 = pnand %p193, %p194
      %p196 = pneg %p195
      // Predicated region
      $region9: #{tpu_custom_call.1} parent=5 // pred_check
        _
      $region10: #{tpu_custom_call.1} parent=5 // pred_check_branch
        %198 = sbr.rel (%p195) target = $region12
      $region11: #{tpu_custom_call.1} parent=5 // pred_region
        %s199 = ssub.s32 %s19, 1
        // Predicated region
        $region13: #{tpu_custom_call.1} parent=11 // pred_check
          %p200 = pneg %p80
        $region14: #{tpu_custom_call.1} parent=11 // pred_check_branch
          %202 = sbr.rel (%p200) target = $region16
        $region15: #{tpu_custom_call.1} parent=11 // pred_region
          %s204 = ssub.s32 3072, 3072
          %205 = vsyncadd [#allocation6], %s204
          %s206 = sshll.u32 [#allocation5], 4
          %s207 = int_to_ptr.vmem [resolvable:$true] %s206
          %212 = dma.hbm_to_vmem [thread:$0]  %s1, 3072, %s207, [#allocation6], 192, 192, 12
        $region16: #{tpu_custom_call.1} parent=11 // pred_fallthru
          _
        // Predicated region
        $region17: #{tpu_custom_call.1} parent=11 // pred_check
          %p213 = pneg %p101
        $region18: #{tpu_custom_call.1} parent=11 // pred_check_branch
          %215 = sbr.rel (%p213) target = $region20
        $region19: #{tpu_custom_call.1} parent=11 // pred_region
          _
        $region20: #{tpu_custom_call.1} parent=11 // pred_fallthru
          _
      $region12: #{tpu_custom_call.1} parent=5 // pred_fallthru
        _
      %p216 = scmp.lt.s32.totalorder %s19, 4
      // Predicated region
      $region21: #{tpu_custom_call.1} parent=5 // pred_check
        %p217 = pneg %p216
      $region22: #{tpu_custom_call.1} parent=5 // pred_check_branch
        %219 = sbr.rel (%p217) target = $region24
      $region23: #{tpu_custom_call.1} parent=5 // pred_region
        // Predicated region
        $region25: #{tpu_custom_call.1} parent=23 // pred_check
          %p220 = pneg %p53
        $region26: #{tpu_custom_call.1} parent=23 // pred_check_branch
          %222 = sbr.rel (%p220) target = $region28
        $region27: #{tpu_custom_call.1} parent=23 // pred_region
          %s223 = sand.u32 %s43, 1
          %s224 = scalar_lea.sflag [#allocation3], %s223
          %s225 = sand.u32 %s43, 1
          %s226 = smul.addr %s225, 64
          %s227 = scalar_lea.vmem [#allocation2], %s226
          %s228 = smul.u32 16, %s27
          %s230 = ssub.s32 1024, 1024
          %231 = vsyncadd %s224, %s230
          %s232 = smul.addr %s26, 32
          %s233 = sadd.s32 %s228, %s232
          %s234 = smul.addr %s233, 64
          %s235 = scalar_lea.hbm %s0, %s234
          %s236 = sshll.u32 %s227, 4
          %s237 = int_to_ptr.vmem [resolvable:$true] %s236
          %242 = dma.hbm_to_vmem [thread:$0]  %s235, 1024, %s237, %s224, 64, 64, 4
        $region28: #{tpu_custom_call.1} parent=23 // pred_fallthru
          _
      $region24: #{tpu_custom_call.1} parent=5 // pred_fallthru
        _
      %p243 = scmp.le.s32.totalorder 1, %s19
      %p244 = scmp.lt.s32.totalorder %s19, 5
      %p245 = pnand %p243, %p244
      %p246 = pneg %p245
      // Predicated region
      $region29: #{tpu_custom_call.1} parent=5 // pred_check
        _
      $region30: #{tpu_custom_call.1} parent=5 // pred_check_branch
        %248 = sbr.rel (%p245) target = $region32
      $region31: #{tpu_custom_call.1} parent=5 // pred_region
        %s249 = ssub.s32 %s19, 1
        %s250 = sand.u32 %s46, 1
        %s251 = scalar_lea.sflag [#allocation3], %s250
        %s252 = sand.u32 %s46, 1
        %s253 = smul.addr %s252, 64
        %s254 = scalar_lea.vmem [#allocation2], %s253
        // Predicated region
        $region33: #{tpu_custom_call.1} parent=31 // pred_check
          %p255 = pneg %p59
        $region34: #{tpu_custom_call.1} parent=31 // pred_check_branch
          %257 = sbr.rel (%p255) target = $region36
        $region35: #{tpu_custom_call.1} parent=31 // pred_region
          %258 = dma.done %s251, 1024
        $region36: #{tpu_custom_call.1} parent=31 // pred_fallthru
          _
        // Predicated region
        $region37: #{tpu_custom_call.1} parent=31 // pred_check
          %p259 = pneg %p80
        $region38: #{tpu_custom_call.1} parent=31 // pred_check_branch
          %261 = sbr.rel (%p259) target = $region40
        $region39: #{tpu_custom_call.1} parent=31 // pred_region
          %262 = dma.done [#allocation6], 3072
        $region40: #{tpu_custom_call.1} parent=31 // pred_fallthru
          _
        %s263 = sand.u32 %s46, 1
        %s264 = scalar_lea.sflag [#allocation3], %s263
        %s265 = sand.u32 %s46, 1
        %s266 = smul.addr %s265, 64
        %s267 = scalar_lea.vmem [#allocation2], %s266
        %p268 = pneg %p59
        %p269 = pneg %p56
        %p270 = pneg %p80
        %p271 = pneg %p77
        %p272 = pneg %p101
        %p273 = pneg %p98
        %p274 = pneg %p129
        %p275 = pneg %p126
        %s276 = sand.u32 %s116, 1
        %s277 = sand.u32 %s116, 1
        %s278 = smul.addr %s277, 256
        %s279 = scalar_lea.vmem [#allocation7], %s278
        %p280 = pneg %p157
        %p281 = pneg %p154
        %s282 = sand.u32 %s144, 1
        %s283 = scalar_lea.sflag [#allocation4], %s282
        %s284 = sand.u32 %s144, 1
        %s285 = smul.addr %s284, 64
        %s286 = scalar_lea.vmem [#allocation8], %s285
        %p287 = pneg %p185
        %p288 = pneg %p182
        %s289 = sand.u32 %s172, 1
        %s290 = sand.u32 %s172, 1
        %s291 = smul.addr %s290, 256
        %s292 = scalar_lea.vmem [#allocation9], %s291
        %s293 = smul.u32 16, %s29
        %s294 = smul.u32 16, %s29
        %s295 = smul.u32 16, %s29
        %v297 = vld [vmem:[%s254] sm:$0xf]
        %v298 = vld [vmem:[%s254 + $0x4] sm:$0xf]
        %v299 = vld [vmem:[%s254 + $0x8] sm:$0xf]
        %v300 = vld [vmem:[%s254 + $0xc] sm:$0xf]
        %v301 = vld [vmem:[%s254 + $0x10] sm:$0xf]
        %v302 = vld [vmem:[%s254 + $0x14] sm:$0xf]
        %v303 = vld [vmem:[%s254 + $0x18] sm:$0xf]
        %v304 = vld [vmem:[%s254 + $0x1c] sm:$0xf]
        %v305 = vld [vmem:[%s254 + $0x20] sm:$0xf]
        %v306 = vld [vmem:[%s254 + $0x24] sm:$0xf]
        %v307 = vld [vmem:[%s254 + $0x28] sm:$0xf]
        %v308 = vld [vmem:[%s254 + $0x2c] sm:$0xf]
        %v309 = vld [vmem:[%s254 + $0x30] sm:$0xf]
        %v310 = vld [vmem:[%s254 + $0x34] sm:$0xf]
        %v311 = vld [vmem:[%s254 + $0x38] sm:$0xf]
        %v312 = vld [vmem:[%s254 + $0x3c] sm:$0xf]
        %v313 = vld [vmem:[#allocation5] sm:$0xff]
        %v314 = vld [vmem:[#allocation5 + $0x8] sm:$0xf]
        %v315 = vld [vmem:[#allocation5 + $0xc] sm:$0xff]
        %v316 = vld [vmem:[#allocation5 + $0x14] sm:$0xf]
        %v317 = vld [vmem:[#allocation5 + $0x18] sm:$0xff]
        %v318 = vld [vmem:[#allocation5 + $0x20] sm:$0xf]
        %v319 = vld [vmem:[#allocation5 + $0x24] sm:$0xff]
        %v320 = vld [vmem:[#allocation5 + $0x2c] sm:$0xf]
        %v321 = vld [vmem:[#allocation5 + $0x30] sm:$0xff]
        %v322 = vld [vmem:[#allocation5 + $0x38] sm:$0xf]
        %v323 = vld [vmem:[#allocation5 + $0x3c] sm:$0xff]
        %v324 = vld [vmem:[#allocation5 + $0x44] sm:$0xf]
        %v325 = vld [vmem:[#allocation5 + $0x48] sm:$0xff]
        %v326 = vld [vmem:[#allocation5 + $0x50] sm:$0xf]
        %v327 = vld [vmem:[#allocation5 + $0x54] sm:$0xff]
        %v328 = vld [vmem:[#allocation5 + $0x5c] sm:$0xf]
        %v329 = vld [vmem:[#allocation5 + $0x60] sm:$0xff]
        %v330 = vld [vmem:[#allocation5 + $0x68] sm:$0xf]
        %v331 = vld [vmem:[#allocation5 + $0x6c] sm:$0xff]
        %v332 = vld [vmem:[#allocation5 + $0x74] sm:$0xf]
        %v333 = vld [vmem:[#allocation5 + $0x78] sm:$0xff]
        %v334 = vld [vmem:[#allocation5 + $0x80] sm:$0xf]
        %v335 = vld [vmem:[#allocation5 + $0x84] sm:$0xff]
        %v336 = vld [vmem:[#allocation5 + $0x8c] sm:$0xf]
        %v337 = vld [vmem:[#allocation5 + $0x90] sm:$0xff]
        %v338 = vld [vmem:[#allocation5 + $0x98] sm:$0xf]
        %v339 = vld [vmem:[#allocation5 + $0x9c] sm:$0xff]
        %v340 = vld [vmem:[#allocation5 + $0xa4] sm:$0xf]
        %v341 = vld [vmem:[#allocation5 + $0xa8] sm:$0xff]
        %v342 = vld [vmem:[#allocation5 + $0xb0] sm:$0xf]
        %v343 = vld [vmem:[#allocation5 + $0xb4] sm:$0xff]
        %v344 = vld [vmem:[#allocation5 + $0xbc] sm:$0xf]
        %v345 = vld [vmem:[%s2] sm:$0x7]
        %v347 = vlaneseq
        %v348 = vshrl.u32 %v347, 7
        %v349 = vsub.s32 0, %v348
        %v350 = vrot.slane %v345, %v349
        %v351 = vlaneseq
        %v352 = vshrl.u32 %v351, 7
        %v353 = vsub.s32 1, %v352
        %v354 = vrot.slane %v345, %v353
        %v355 = vlaneseq
        %v356 = vshrl.u32 %v355, 7
        %v357 = vsub.s32 2, %v356
        %v358 = vrot.slane %v345, %v357
        %v378 = vunpack.c.l.b16 %v297
        %v379 = vunpack.c.l.b16 %v298
        %v380 = vunpack.c.l.b16 %v299
        %v381 = vunpack.c.l.b16 %v300
        %v382 = vunpack.c.l.b16 %v301
        %v383 = vunpack.c.l.b16 %v302
        %v384 = vunpack.c.l.b16 %v303
        %v385 = vunpack.c.l.b16 %v304
        %v386 = vunpack.c.l.b16 %v305
        %v387 = vunpack.c.l.b16 %v306
        %v388 = vunpack.c.l.b16 %v307
        %v389 = vunpack.c.l.b16 %v308
        %v390 = vunpack.c.l.b16 %v309
        %v391 = vunpack.c.l.b16 %v310
        %v392 = vunpack.c.l.b16 %v311
        %v393 = vunpack.c.l.b16 %v312
        %v394 = vpack.c.b16 %v379, %v378
        %v395 = vpack.c.b16 %v381, %v380
        %v396 = vpack.c.b16 %v383, %v382
        %v397 = vpack.c.b16 %v385, %v384
        %v398 = vpack.c.b16 %v387, %v386
        %v399 = vpack.c.b16 %v389, %v388
        %v400 = vpack.c.b16 %v391, %v390
        %v401 = vpack.c.b16 %v393, %v392
        %v442 = vunpack.c.l.b16 %v313
        %v443 = vunpack.c.h.b16 %v313
        %v444 = vunpack.c.l.b16 %v314
        %v445 = vunpack.c.l.b16 %v315
        %v446 = vunpack.c.h.b16 %v315
        %v447 = vunpack.c.l.b16 %v316
        %v448 = vunpack.c.l.b16 %v317
        %v449 = vunpack.c.h.b16 %v317
        %v450 = vunpack.c.l.b16 %v318
        %v451 = vunpack.c.l.b16 %v319
        %v452 = vunpack.c.h.b16 %v319
        %v453 = vunpack.c.l.b16 %v320
        %v454 = vunpack.c.l.b16 %v321
        %v455 = vunpack.c.h.b16 %v321
        %v456 = vunpack.c.l.b16 %v322
        %v457 = vunpack.c.l.b16 %v323
        %v458 = vunpack.c.h.b16 %v323
        %v459 = vunpack.c.l.b16 %v324
        %v460 = vunpack.c.l.b16 %v325
        %v461 = vunpack.c.h.b16 %v325
        %v462 = vunpack.c.l.b16 %v326
        %v463 = vunpack.c.l.b16 %v327
        %v464 = vunpack.c.h.b16 %v327
        %v465 = vunpack.c.l.b16 %v328
        %v466 = vunpack.c.l.b16 %v329
        %v467 = vunpack.c.h.b16 %v329
        %v468 = vunpack.c.l.b16 %v330
        %v469 = vunpack.c.l.b16 %v331
        %v470 = vunpack.c.h.b16 %v331
        %v471 = vunpack.c.l.b16 %v332
        %v472 = vunpack.c.l.b16 %v333
        %v473 = vunpack.c.h.b16 %v333
        %v474 = vunpack.c.l.b16 %v334
        %v475 = vunpack.c.l.b16 %v335
        %v476 = vunpack.c.h.b16 %v335
        %v477 = vunpack.c.l.b16 %v336
        %v478 = vunpack.c.l.b16 %v337
        %v479 = vunpack.c.h.b16 %v337
        %v480 = vunpack.c.l.b16 %v338
        %v481 = vunpack.c.l.b16 %v339
        %v482 = vunpack.c.h.b16 %v339
        %v483 = vunpack.c.l.b16 %v340
        %v484 = vunpack.c.l.b16 %v341
        %v485 = vunpack.c.h.b16 %v341
        %v486 = vunpack.c.l.b16 %v342
        %v487 = vunpack.c.l.b16 %v343
        %v488 = vunpack.c.h.b16 %v343
        %v489 = vunpack.c.l.b16 %v344
        %v490 = vpack.c.b16 %v445, %v442
        %v491 = vpack.c.b16 %v446, %v443
        %v492 = vpack.c.b16 %v447, %v444
        %v493 = vpack.c.b16 %v451, %v448
        %v494 = vpack.c.b16 %v452, %v449
        %v495 = vpack.c.b16 %v453, %v450
        %v496 = vpack.c.b16 %v457, %v454
        %v497 = vpack.c.b16 %v458, %v455
        %v498 = vpack.c.b16 %v459, %v456
        %v499 = vpack.c.b16 %v463, %v460
        %v500 = vpack.c.b16 %v464, %v461
        %v501 = vpack.c.b16 %v465, %v462
        %v502 = vpack.c.b16 %v469, %v466
        %v503 = vpack.c.b16 %v470, %v467
        %v504 = vpack.c.b16 %v471, %v468
        %v505 = vpack.c.b16 %v475, %v472
        %v506 = vpack.c.b16 %v476, %v473
        %v507 = vpack.c.b16 %v477, %v474
        %v508 = vpack.c.b16 %v481, %v478
        %v509 = vpack.c.b16 %v482, %v479
        %v510 = vpack.c.b16 %v483, %v480
        %v511 = vpack.c.b16 %v487, %v484
        %v512 = vpack.c.b16 %v488, %v485
        %v513 = vpack.c.b16 %v489, %v486
        %538 = vmatprep.subr.bf16.mxu0 %v512
        %539 = vmatpush1.bf16.msra.mxu0 %v511
        %540 = vmatprep.subr.bf16.mxu0 %v509
        %541 = vmatpush1.bf16.msra.mxu0 %v508
        %542 = vmatprep.subr.bf16.mxu0 %v506
        %543 = vmatpush1.bf16.msra.mxu0 %v505
        %544 = vmatprep.subr.bf16.mxu0 %v503
        %545 = vmatpush1.bf16.msra.mxu0 %v502
        %546 = vmatprep.subr.bf16.mxu0 %v500
        %547 = vmatpush1.bf16.msra.mxu0 %v499
        %548 = vmatprep.subr.bf16.mxu0 %v497
        %549 = vmatpush1.bf16.msra.mxu0 %v496
        %550 = vmatprep.subr.bf16.mxu0 %v494
        %551 = vmatpush1.bf16.msra.mxu0 %v493
        %552 = vmatprep.subr.bf16.mxu0 %v491
        %553 = vmatpush1.bf16.msra.mxu0 %v490
        %554 = vmatprep.subr.bf16.mxu0 0
        %555 = vmatpush2.bf16.msra.mxu0 0
        %556 = vmatprep.subr.bf16.mxu0 0
        %557 = vmatpush2.bf16.msra.mxu0 0
        %558 = vmatprep.subr.bf16.mxu0 0
        %559 = vmatpush2.bf16.msra.mxu0 0
        %560 = vmatprep.subr.bf16.mxu0 0
        %561 = vmatpush2.bf16.msra.mxu0 0
        %562 = vmatprep.subr.bf16.mxu0 0
        %563 = vmatpush2.bf16.msra.mxu0 0
        %564 = vmatprep.subr.bf16.mxu0 0
        %565 = vmatpush2.bf16.msra.mxu0 0
        %566 = vmatprep.subr.bf16.mxu0 0
        %567 = vmatpush2.bf16.msra.mxu0 0
        %568 = vmatprep.subr.bf16.mxu0 0
        %569 = vmatpush2.bf16.msra.mxu0 0
        %570 = vmatprep.mubr.bf16.mxu0 0
        %571 = vmatmul.mubr.bf16.gmra.mxu0 %v394
        %v572 = vpop.f32.mrf.mxu0
        %v573 = vadd.f32 %v350, %v572
        %v574 = vpop.f32.mrf.mxu0
        %v575 = vadd.f32 %v354, %v574
        %v576 = vpop.f32.mrf.mxu0
        %v577 = vadd.f32 %v350, %v576
        %v578 = vpop.f32.mrf.mxu0
        %v579 = vadd.f32 %v354, %v578
        %580 = vmatprep.mubr.bf16.mxu0 0
        %581 = vmatmul.mubr.bf16.gmra.mxu0 %v395
        %v582 = vpop.f32.mrf.mxu0
        %v583 = vadd.f32 %v350, %v582
        %v584 = vpop.f32.mrf.mxu0
        %v585 = vadd.f32 %v354, %v584
        %v586 = vpop.f32.mrf.mxu0
        %v587 = vadd.f32 %v350, %v586
        %v588 = vpop.f32.mrf.mxu0
        %v589 = vadd.f32 %v354, %v588
        %590 = vmatprep.mubr.bf16.mxu0 0
        %591 = vmatmul.mubr.bf16.gmra.mxu0 %v396
        %v592 = vpop.f32.mrf.mxu0
        %v593 = vadd.f32 %v350, %v592
        %v594 = vpop.f32.mrf.mxu0
        %v595 = vadd.f32 %v354, %v594
        %v596 = vpop.f32.mrf.mxu0
        %v597 = vadd.f32 %v350, %v596
        %v598 = vpop.f32.mrf.mxu0
        %v599 = vadd.f32 %v354, %v598
        %600 = vmatprep.mubr.bf16.mxu0 0
        %601 = vmatmul.mubr.bf16.gmra.mxu0 %v397
        %v602 = vpop.f32.mrf.mxu0
        %v603 = vadd.f32 %v350, %v602
        %v604 = vpop.f32.mrf.mxu0
        %v605 = vadd.f32 %v354, %v604
        %v606 = vpop.f32.mrf.mxu0
        %v607 = vadd.f32 %v350, %v606
        %v608 = vpop.f32.mrf.mxu0
        %v609 = vadd.f32 %v354, %v608
        %610 = vmatprep.mubr.bf16.mxu0 0
        %611 = vmatmul.mubr.bf16.gmra.mxu0 %v398
        %v612 = vpop.f32.mrf.mxu0
        %v613 = vadd.f32 %v350, %v612
        %v614 = vpop.f32.mrf.mxu0
        %v615 = vadd.f32 %v354, %v614
        %v616 = vpop.f32.mrf.mxu0
        %v617 = vadd.f32 %v350, %v616
        %v618 = vpop.f32.mrf.mxu0
        %v619 = vadd.f32 %v354, %v618
        %620 = vmatprep.mubr.bf16.mxu0 0
        %621 = vmatmul.mubr.bf16.gmra.mxu0 %v399
        %v622 = vpop.f32.mrf.mxu0
        %v623 = vadd.f32 %v350, %v622
        %v624 = vpop.f32.mrf.mxu0
        %v625 = vadd.f32 %v354, %v624
        %v626 = vpop.f32.mrf.mxu0
        %v627 = vadd.f32 %v350, %v626
        %v628 = vpop.f32.mrf.mxu0
        %v629 = vadd.f32 %v354, %v628
        %630 = vmatprep.mubr.bf16.mxu0 0
        %631 = vmatmul.mubr.bf16.gmra.mxu0 %v400
        %v632 = vpop.f32.mrf.mxu0
        %v633 = vadd.f32 %v350, %v632
        %v634 = vpop.f32.mrf.mxu0
        %v635 = vadd.f32 %v354, %v634
        %v636 = vpop.f32.mrf.mxu0
        %v637 = vadd.f32 %v350, %v636
        %v638 = vpop.f32.mrf.mxu0
        %v639 = vadd.f32 %v354, %v638
        %640 = vmatprep.mubr.bf16.mxu0 0
        %641 = vmatmul.mubr.bf16.gmra.mxu0 %v401
        %v642 = vpop.f32.mrf.mxu0
        %v643 = vadd.f32 %v350, %v642
        %v644 = vpop.f32.mrf.mxu0
        %v645 = vadd.f32 %v354, %v644
        %v646 = vpop.f32.mrf.mxu0
        %v647 = vadd.f32 %v350, %v646
        %v648 = vpop.f32.mrf.mxu0
        %v649 = vadd.f32 %v354, %v648
        %650 = vdwg.mxu0
        %651 = vmatprep.subr.bf16.mxu0 0
        %652 = vmatpush1.bf16.msra.mxu0 %v513
        %653 = vmatprep.subr.bf16.mxu0 0
        %654 = vmatpush1.bf16.msra.mxu0 %v510
        %655 = vmatprep.subr.bf16.mxu0 0
        %656 = vmatpush1.bf16.msra.mxu0 %v507
        %657 = vmatprep.subr.bf16.mxu0 0
        %658 = vmatpush1.bf16.msra.mxu0 %v504
        %659 = vmatprep.subr.bf16.mxu0 0
        %660 = vmatpush1.bf16.msra.mxu0 %v501
        %661 = vmatprep.subr.bf16.mxu0 0
        %662 = vmatpush1.bf16.msra.mxu0 %v498
        %663 = vmatprep.subr.bf16.mxu0 0
        %664 = vmatpush1.bf16.msra.mxu0 %v495
        %665 = vmatprep.subr.bf16.mxu0 0
        %666 = vmatpush1.bf16.msra.mxu0 %v492
        %667 = vmatprep.subr.bf16.mxu0 0
        %668 = vmatpush2.bf16.msra.mxu0 0
        %669 = vmatprep.subr.bf16.mxu0 0
        %670 = vmatpush2.bf16.msra.mxu0 0
        %671 = vmatprep.subr.bf16.mxu0 0
        %672 = vmatpush2.bf16.msra.mxu0 0
        %673 = vmatprep.subr.bf16.mxu0 0
        %674 = vmatpush2.bf16.msra.mxu0 0
        %675 = vmatprep.subr.bf16.mxu0 0
        %676 = vmatpush2.bf16.msra.mxu0 0
        %677 = vmatprep.subr.bf16.mxu0 0
        %678 = vmatpush2.bf16.msra.mxu0 0
        %679 = vmatprep.subr.bf16.mxu0 0
        %680 = vmatpush2.bf16.msra.mxu0 0
        %681 = vmatprep.subr.bf16.mxu0 0
        %682 = vmatpush2.bf16.msra.mxu0 0
        %683 = vmatprep.mubr.bf16.mxu0 0
        %684 = vmatmul.mubr.bf16.gmra.mxu0 %v394
        %v685 = vpop.f32.mrf.mxu0
        %v686 = vadd.f32 %v358, %v685
        %v687 = vpop.f32.mrf.mxu0
        %v688 = vpop.f32.mrf.mxu0
        %v689 = vadd.f32 %v358, %v688
        %v690 = vpop.f32.mrf.mxu0
        %691 = vmatprep.mubr.bf16.mxu0 0
        %692 = vmatmul.mubr.bf16.gmra.mxu0 %v395
        %v693 = vpop.f32.mrf.mxu0
        %v694 = vadd.f32 %v358, %v693
        %v695 = vpop.f32.mrf.mxu0
        %v696 = vpop.f32.mrf.mxu0
        %v697 = vadd.f32 %v358, %v696
        %v698 = vpop.f32.mrf.mxu0
        %699 = vmatprep.mubr.bf16.mxu0 0
        %700 = vmatmul.mubr.bf16.gmra.mxu0 %v396
        %v701 = vpop.f32.mrf.mxu0
        %v702 = vadd.f32 %v358, %v701
        %v703 = vpop.f32.mrf.mxu0
        %v704 = vpop.f32.mrf.mxu0
        %v705 = vadd.f32 %v358, %v704
        %v706 = vpop.f32.mrf.mxu0
        %707 = vmatprep.mubr.bf16.mxu0 0
        %708 = vmatmul.mubr.bf16.gmra.mxu0 %v397
        %v709 = vpop.f32.mrf.mxu0
        %v710 = vadd.f32 %v358, %v709
        %v711 = vpop.f32.mrf.mxu0
        %v712 = vpop.f32.mrf.mxu0
        %v713 = vadd.f32 %v358, %v712
        %v714 = vpop.f32.mrf.mxu0
        %715 = vmatprep.mubr.bf16.mxu0 0
        %716 = vmatmul.mubr.bf16.gmra.mxu0 %v398
        %v717 = vpop.f32.mrf.mxu0
        %v718 = vadd.f32 %v358, %v717
        %v719 = vpop.f32.mrf.mxu0
        %v720 = vpop.f32.mrf.mxu0
        %v721 = vadd.f32 %v358, %v720
        %v722 = vpop.f32.mrf.mxu0
        %723 = vmatprep.mubr.bf16.mxu0 0
        %724 = vmatmul.mubr.bf16.gmra.mxu0 %v399
        %v725 = vpop.f32.mrf.mxu0
        %v726 = vadd.f32 %v358, %v725
        %v727 = vpop.f32.mrf.mxu0
        %v728 = vpop.f32.mrf.mxu0
        %v729 = vadd.f32 %v358, %v728
        %v730 = vpop.f32.mrf.mxu0
        %731 = vmatprep.mubr.bf16.mxu0 0
        %732 = vmatmul.mubr.bf16.gmra.mxu0 %v400
        %v733 = vpop.f32.mrf.mxu0
        %v734 = vadd.f32 %v358, %v733
        %v735 = vpop.f32.mrf.mxu0
        %v736 = vpop.f32.mrf.mxu0
        %v737 = vadd.f32 %v358, %v736
        %v738 = vpop.f32.mrf.mxu0
        %739 = vmatprep.mubr.bf16.mxu0 0
        %740 = vmatmul.mubr.bf16.gmra.mxu0 %v401
        %v741 = vpop.f32.mrf.mxu0
        %v742 = vadd.f32 %v358, %v741
        %v743 = vpop.f32.mrf.mxu0
        %v744 = vpop.f32.mrf.mxu0
        %v745 = vadd.f32 %v358, %v744
        %v746 = vpop.f32.mrf.mxu0
        %747 = vdwg.mxu0
        %v748 = vpack.c.bf16 %v577, %v573
        %v749 = vpack.c.bf16 %v587, %v583
        %v750 = vpack.c.bf16 %v597, %v593
        %v751 = vpack.c.bf16 %v607, %v603
        %v752 = vpack.c.bf16 %v617, %v613
        %v753 = vpack.c.bf16 %v627, %v623
        %v754 = vpack.c.bf16 %v637, %v633
        %v755 = vpack.c.bf16 %v647, %v643
        %756 = vxpose.xlu0.b32.start [1/16] %v575, 128
        %757 = vxpose.xlu0.b32.cont [2/16] %v579, 128
        %758 = vxpose.xlu0.b32.cont [3/16] %v585, 128
        %759 = vxpose.xlu0.b32.cont [4/16] %v589, 128
        %760 = vxpose.xlu0.b32.cont [5/16] %v595, 128
        %761 = vxpose.xlu0.b32.cont [6/16] %v599, 128
        %762 = vxpose.xlu0.b32.cont [7/16] %v605, 128
        %763 = vxpose.xlu0.b32.cont [8/16] %v609, 128
        %764 = vxpose.xlu0.b32.cont [9/16] %v615, 128
        %765 = vxpose.xlu0.b32.cont [10/16] %v619, 128
        %766 = vxpose.xlu0.b32.cont [11/16] %v625, 128
        %767 = vxpose.xlu0.b32.cont [12/16] %v629, 128
        %768 = vxpose.xlu0.b32.cont [13/16] %v635, 128
        %769 = vxpose.xlu0.b32.cont [14/16] %v639, 128
        %770 = vxpose.xlu0.b32.cont [15/16] %v645, 128
        %771 = vxpose.xlu0.b32.end [16/16] %v649, 128
        %v772 = vpop.trf.xlu0
        %v773 = vpop.trf.xlu0
        %v774 = vpop.trf.xlu0
        %v775 = vpop.trf.xlu0
        %v776 = vpop.trf.xlu0
        %v777 = vpop.trf.xlu0
        %v778 = vpop.trf.xlu0
        %v779 = vpop.trf.xlu0
        %v780 = vpop.trf.xlu0
        %v781 = vpop.trf.xlu0
        %v782 = vpop.trf.xlu0
        %v783 = vpop.trf.xlu0
        %v784 = vpop.trf.xlu0
        %v785 = vpop.trf.xlu0
        %v786 = vpop.trf.xlu0
        %v787 = vpop.trf.xlu0
        %v788 = vpack.c.bf16 %v773, %v772
        %v789 = vpack.c.bf16 %v775, %v774
        %v790 = vpack.c.bf16 %v777, %v776
        %v791 = vpack.c.bf16 %v779, %v778
        %v792 = vpack.c.bf16 %v781, %v780
        %v793 = vpack.c.bf16 %v783, %v782
        %v794 = vpack.c.bf16 %v785, %v784
        %v795 = vpack.c.bf16 %v787, %v786
        %v796 = vpack.c.bf16 %v689, %v686
        %v797 = vpack.c.bf16 %v697, %v694
        %v798 = vpack.c.bf16 %v705, %v702
        %v799 = vpack.c.bf16 %v713, %v710
        %v800 = vpack.c.bf16 %v721, %v718
        %v801 = vpack.c.bf16 %v729, %v726
        %v802 = vpack.c.bf16 %v737, %v734
        %v803 = vpack.c.bf16 %v745, %v742
        %v812 = vunpack.c.l.b16 %v748
        %v813 = vunpack.c.h.b16 %v748
        %v814 = vunpack.c.l.b16 %v749
        %v815 = vunpack.c.h.b16 %v749
        %v816 = vunpack.c.l.b16 %v750
        %v817 = vunpack.c.h.b16 %v750
        %v818 = vunpack.c.l.b16 %v751
        %v819 = vunpack.c.h.b16 %v751
        %v820 = vunpack.c.l.b16 %v752
        %v821 = vunpack.c.h.b16 %v752
        %v822 = vunpack.c.l.b16 %v753
        %v823 = vunpack.c.h.b16 %v753
        %v824 = vunpack.c.l.b16 %v754
        %v825 = vunpack.c.h.b16 %v754
        %v826 = vunpack.c.l.b16 %v755
        %v827 = vunpack.c.h.b16 %v755
        %v828 = vpack.c.b16 %v812, %v812
        %v829 = vpack.c.b16 %v813, %v813
        %v830 = vpack.c.b16 %v814, %v814
        %v831 = vpack.c.b16 %v815, %v815
        %v832 = vpack.c.b16 %v816, %v816
        %v833 = vpack.c.b16 %v817, %v817
        %v834 = vpack.c.b16 %v818, %v818
        %v835 = vpack.c.b16 %v819, %v819
        %v836 = vpack.c.b16 %v820, %v820
        %v837 = vpack.c.b16 %v821, %v821
        %v838 = vpack.c.b16 %v822, %v822
        %v839 = vpack.c.b16 %v823, %v823
        %v840 = vpack.c.b16 %v824, %v824
        %v841 = vpack.c.b16 %v825, %v825
        %v842 = vpack.c.b16 %v826, %v826
        %v843 = vpack.c.b16 %v827, %v827
        %vm860 = vcmask 257024
        %861 = vst.msk [vmem:[%s279] sm:$0xf] %vm860, %v828
        %862 = vst.msk [vmem:[%s279 + $0x4] sm:$0xf] %vm860, %v829
        %863 = vst.msk [vmem:[%s279 + $0x8] sm:$0xf] %vm860, %v830
        %864 = vst.msk [vmem:[%s279 + $0xc] sm:$0xf] %vm860, %v831
        %865 = vst.msk [vmem:[%s279 + $0x10] sm:$0xf] %vm860, %v832
        %866 = vst.msk [vmem:[%s279 + $0x14] sm:$0xf] %vm860, %v833
        %867 = vst.msk [vmem:[%s279 + $0x18] sm:$0xf] %vm860, %v834
        %868 = vst.msk [vmem:[%s279 + $0x1c] sm:$0xf] %vm860, %v835
        %869 = vst.msk [vmem:[%s279 + $0x20] sm:$0xf] %vm860, %v836
        %870 = vst.msk [vmem:[%s279 + $0x24] sm:$0xf] %vm860, %v837
        %871 = vst.msk [vmem:[%s279 + $0x28] sm:$0xf] %vm860, %v838
        %872 = vst.msk [vmem:[%s279 + $0x2c] sm:$0xf] %vm860, %v839
        %873 = vst.msk [vmem:[%s279 + $0x30] sm:$0xf] %vm860, %v840
        %874 = vst.msk [vmem:[%s279 + $0x34] sm:$0xf] %vm860, %v841
        %875 = vst.msk [vmem:[%s279 + $0x38] sm:$0xf] %vm860, %v842
        %876 = vst.msk [vmem:[%s279 + $0x3c] sm:$0xf] %vm860, %v843
        %v879 = vunpack.c.l.b16 %v788
        %v880 = vunpack.c.h.b16 %v788
        %v881 = vunpack.c.l.b16 %v789
        %v882 = vunpack.c.h.b16 %v789
        %v883 = vpack.c.b16 %v879, %v879
        %v884 = vpack.c.b16 %v880, %v880
        %v885 = vpack.c.b16 %v881, %v881
        %v886 = vpack.c.b16 %v882, %v882
        %891 = vst [vmem:[%s286] sm:$0xf] %v883
        %892 = vst [vmem:[%s286 + $0x4] sm:$0xf] %v884
        %893 = vst [vmem:[%s286 + $0x8] sm:$0xf] %v885
        %894 = vst [vmem:[%s286 + $0xc] sm:$0xf] %v886
        %v903 = vunpack.c.l.b16 %v796
        %v904 = vunpack.c.h.b16 %v796
        %v905 = vunpack.c.l.b16 %v797
        %v906 = vunpack.c.h.b16 %v797
        %v907 = vunpack.c.l.b16 %v798
        %v908 = vunpack.c.h.b16 %v798
        %v909 = vunpack.c.l.b16 %v799
        %v910 = vunpack.c.h.b16 %v799
        %v911 = vunpack.c.l.b16 %v800
        %v912 = vunpack.c.h.b16 %v800
        %v913 = vunpack.c.l.b16 %v801
        %v914 = vunpack.c.h.b16 %v801
        %v915 = vunpack.c.l.b16 %v802
        %v916 = vunpack.c.h.b16 %v802
        %v917 = vunpack.c.l.b16 %v803
        %v918 = vunpack.c.h.b16 %v803
        %v919 = vpack.c.b16 %v903, %v903
        %v920 = vpack.c.b16 %v904, %v904
        %v921 = vpack.c.b16 %v905, %v905
        %v922 = vpack.c.b16 %v906, %v906
        %v923 = vpack.c.b16 %v907, %v907
        %v924 = vpack.c.b16 %v908, %v908
        %v925 = vpack.c.b16 %v909, %v909
        %v926 = vpack.c.b16 %v910, %v910
        %v927 = vpack.c.b16 %v911, %v911
        %v928 = vpack.c.b16 %v912, %v912
        %v929 = vpack.c.b16 %v913, %v913
        %v930 = vpack.c.b16 %v914, %v914
        %v931 = vpack.c.b16 %v915, %v915
        %v932 = vpack.c.b16 %v916, %v916
        %v933 = vpack.c.b16 %v917, %v917
        %v934 = vpack.c.b16 %v918, %v918
        %951 = vst.msk [vmem:[%s292] sm:$0xf] %vm860, %v919
        %952 = vst.msk [vmem:[%s292 + $0x4] sm:$0xf] %vm860, %v920
        %953 = vst.msk [vmem:[%s292 + $0x8] sm:$0xf] %vm860, %v921
        %954 = vst.msk [vmem:[%s292 + $0xc] sm:$0xf] %vm860, %v922
        %955 = vst.msk [vmem:[%s292 + $0x10] sm:$0xf] %vm860, %v923
        %956 = vst.msk [vmem:[%s292 + $0x14] sm:$0xf] %vm860, %v924
        %957 = vst.msk [vmem:[%s292 + $0x18] sm:$0xf] %vm860, %v925
        %958 = vst.msk [vmem:[%s292 + $0x1c] sm:$0xf] %vm860, %v926
        %959 = vst.msk [vmem:[%s292 + $0x20] sm:$0xf] %vm860, %v927
        %960 = vst.msk [vmem:[%s292 + $0x24] sm:$0xf] %vm860, %v928
        %961 = vst.msk [vmem:[%s292 + $0x28] sm:$0xf] %vm860, %v929
        %962 = vst.msk [vmem:[%s292 + $0x2c] sm:$0xf] %vm860, %v930
        %963 = vst.msk [vmem:[%s292 + $0x30] sm:$0xf] %vm860, %v931
        %964 = vst.msk [vmem:[%s292 + $0x34] sm:$0xf] %vm860, %v932
        %965 = vst.msk [vmem:[%s292 + $0x38] sm:$0xf] %vm860, %v933
        %966 = vst.msk [vmem:[%s292 + $0x3c] sm:$0xf] %vm860, %v934
        %967 = vrot.lane.b32.xlu0 %v828, 96
        %v968 = vpop.permute.xlu0 %967
        %969 = vrot.lane.b32.xlu0 %v829, 96
        %v970 = vpop.permute.xlu0 %969
        %971 = vrot.lane.b32.xlu0 %v830, 96
        %v972 = vpop.permute.xlu0 %971
        %973 = vrot.lane.b32.xlu0 %v831, 96
        %v974 = vpop.permute.xlu0 %973
        %975 = vrot.lane.b32.xlu0 %v832, 96
        %v976 = vpop.permute.xlu0 %975
        %977 = vrot.lane.b32.xlu0 %v833, 96
        %v978 = vpop.permute.xlu0 %977
        %979 = vrot.lane.b32.xlu0 %v834, 96
        %v980 = vpop.permute.xlu0 %979
        %981 = vrot.lane.b32.xlu0 %v835, 96
        %v982 = vpop.permute.xlu0 %981
        %983 = vrot.lane.b32.xlu0 %v836, 96
        %v984 = vpop.permute.xlu0 %983
        %985 = vrot.lane.b32.xlu0 %v837, 96
        %v986 = vpop.permute.xlu0 %985
        %987 = vrot.lane.b32.xlu0 %v838, 96
        %v988 = vpop.permute.xlu0 %987
        %989 = vrot.lane.b32.xlu0 %v839, 96
        %v990 = vpop.permute.xlu0 %989
        %991 = vrot.lane.b32.xlu0 %v840, 96
        %v992 = vpop.permute.xlu0 %991
        %993 = vrot.lane.b32.xlu0 %v841, 96
        %v994 = vpop.permute.xlu0 %993
        %995 = vrot.lane.b32.xlu0 %v842, 96
        %v996 = vpop.permute.xlu0 %995
        %997 = vrot.lane.b32.xlu0 %v843, 96
        %v998 = vpop.permute.xlu0 %997
        %s1015 = scalar_lea.vmem %s279, 64 [#allocation7]
        %1016 = vst.msk [vmem:[%s1015] sm:$0xf] %vm860, %v968
        %1017 = vst.msk [vmem:[%s1015 + $0x4] sm:$0xf] %vm860, %v970
        %1018 = vst.msk [vmem:[%s1015 + $0x8] sm:$0xf] %vm860, %v972
        %1019 = vst.msk [vmem:[%s1015 + $0xc] sm:$0xf] %vm860, %v974
        %1020 = vst.msk [vmem:[%s1015 + $0x10] sm:$0xf] %vm860, %v976
        %1021 = vst.msk [vmem:[%s1015 + $0x14] sm:$0xf] %vm860, %v978
        %1022 = vst.msk [vmem:[%s1015 + $0x18] sm:$0xf] %vm860, %v980
        %1023 = vst.msk [vmem:[%s1015 + $0x1c] sm:$0xf] %vm860, %v982
        %1024 = vst.msk [vmem:[%s1015 + $0x20] sm:$0xf] %vm860, %v984
        %1025 = vst.msk [vmem:[%s1015 + $0x24] sm:$0xf] %vm860, %v986
        %1026 = vst.msk [vmem:[%s1015 + $0x28] sm:$0xf] %vm860, %v988
        %1027 = vst.msk [vmem:[%s1015 + $0x2c] sm:$0xf] %vm860, %v990
        %1028 = vst.msk [vmem:[%s1015 + $0x30] sm:$0xf] %vm860, %v992
        %1029 = vst.msk [vmem:[%s1015 + $0x34] sm:$0xf] %vm860, %v994
        %1030 = vst.msk [vmem:[%s1015 + $0x38] sm:$0xf] %vm860, %v996
        %1031 = vst.msk [vmem:[%s1015 + $0x3c] sm:$0xf] %vm860, %v998
        %v1034 = vunpack.c.l.b16 %v790
        %v1035 = vunpack.c.h.b16 %v790
        %v1036 = vunpack.c.l.b16 %v791
        %v1037 = vunpack.c.h.b16 %v791
        %v1038 = vpack.c.b16 %v1034, %v1034
        %v1039 = vpack.c.b16 %v1035, %v1035
        %v1040 = vpack.c.b16 %v1036, %v1036
        %v1041 = vpack.c.b16 %v1037, %v1037
        %s1046 = scalar_lea.vmem %s286, 16 [#allocation8]
        %1047 = vst [vmem:[%s1046] sm:$0xf] %v1038
        %1048 = vst [vmem:[%s1046 + $0x4] sm:$0xf] %v1039
        %1049 = vst [vmem:[%s1046 + $0x8] sm:$0xf] %v1040
        %1050 = vst [vmem:[%s1046 + $0xc] sm:$0xf] %v1041
        %1051 = vrot.lane.b32.xlu0 %v919, 96
        %v1052 = vpop.permute.xlu0 %1051
        %1053 = vrot.lane.b32.xlu0 %v920, 96
        %v1054 = vpop.permute.xlu0 %1053
        %1055 = vrot.lane.b32.xlu0 %v921, 96
        %v1056 = vpop.permute.xlu0 %1055
        %1057 = vrot.lane.b32.xlu0 %v922, 96
        %v1058 = vpop.permute.xlu0 %1057
        %1059 = vrot.lane.b32.xlu0 %v923, 96
        %v1060 = vpop.permute.xlu0 %1059
        %1061 = vrot.lane.b32.xlu0 %v924, 96
        %v1062 = vpop.permute.xlu0 %1061
        %1063 = vrot.lane.b32.xlu0 %v925, 96
        %v1064 = vpop.permute.xlu0 %1063
        %1065 = vrot.lane.b32.xlu0 %v926, 96
        %v1066 = vpop.permute.xlu0 %1065
        %1067 = vrot.lane.b32.xlu0 %v927, 96
        %v1068 = vpop.permute.xlu0 %1067
        %1069 = vrot.lane.b32.xlu0 %v928, 96
        %v1070 = vpop.permute.xlu0 %1069
        %1071 = vrot.lane.b32.xlu0 %v929, 96
        %v1072 = vpop.permute.xlu0 %1071
        %1073 = vrot.lane.b32.xlu0 %v930, 96
        %v1074 = vpop.permute.xlu0 %1073
        %1075 = vrot.lane.b32.xlu0 %v931, 96
        %v1076 = vpop.permute.xlu0 %1075
        %1077 = vrot.lane.b32.xlu0 %v932, 96
        %v1078 = vpop.permute.xlu0 %1077
        %1079 = vrot.lane.b32.xlu0 %v933, 96
        %v1080 = vpop.permute.xlu0 %1079
        %1081 = vrot.lane.b32.xlu0 %v934, 96
        %v1082 = vpop.permute.xlu0 %1081
        %s1099 = scalar_lea.vmem %s292, 64 [#allocation9]
        %1100 = vst.msk [vmem:[%s1099] sm:$0xf] %vm860, %v1052
        %1101 = vst.msk [vmem:[%s1099 + $0x4] sm:$0xf] %vm860, %v1054
        %1102 = vst.msk [vmem:[%s1099 + $0x8] sm:$0xf] %vm860, %v1056
        %1103 = vst.msk [vmem:[%s1099 + $0xc] sm:$0xf] %vm860, %v1058
        %1104 = vst.msk [vmem:[%s1099 + $0x10] sm:$0xf] %vm860, %v1060
        %1105 = vst.msk [vmem:[%s1099 + $0x14] sm:$0xf] %vm860, %v1062
        %1106 = vst.msk [vmem:[%s1099 + $0x18] sm:$0xf] %vm860, %v1064
        %1107 = vst.msk [vmem:[%s1099 + $0x1c] sm:$0xf] %vm860, %v1066
        %1108 = vst.msk [vmem:[%s1099 + $0x20] sm:$0xf] %vm860, %v1068
        %1109 = vst.msk [vmem:[%s1099 + $0x24] sm:$0xf] %vm860, %v1070
        %1110 = vst.msk [vmem:[%s1099 + $0x28] sm:$0xf] %vm860, %v1072
        %1111 = vst.msk [vmem:[%s1099 + $0x2c] sm:$0xf] %vm860, %v1074
        %1112 = vst.msk [vmem:[%s1099 + $0x30] sm:$0xf] %vm860, %v1076
        %1113 = vst.msk [vmem:[%s1099 + $0x34] sm:$0xf] %vm860, %v1078
        %1114 = vst.msk [vmem:[%s1099 + $0x38] sm:$0xf] %vm860, %v1080
        %1115 = vst.msk [vmem:[%s1099 + $0x3c] sm:$0xf] %vm860, %v1082
        %1116 = vrot.lane.b32.xlu0 %v828, 64
        %v1117 = vpop.permute.xlu0 %1116
        %1118 = vrot.lane.b32.xlu0 %v829, 64
        %v1119 = vpop.permute.xlu0 %1118
        %1120 = vrot.lane.b32.xlu0 %v830, 64
        %v1121 = vpop.permute.xlu0 %1120
        %1122 = vrot.lane.b32.xlu0 %v831, 64
        %v1123 = vpop.permute.xlu0 %1122
        %1124 = vrot.lane.b32.xlu0 %v832, 64
        %v1125 = vpop.permute.xlu0 %1124
        %1126 = vrot.lane.b32.xlu0 %v833, 64
        %v1127 = vpop.permute.xlu0 %1126
        %1128 = vrot.lane.b32.xlu0 %v834, 64
        %v1129 = vpop.permute.xlu0 %1128
        %1130 = vrot.lane.b32.xlu0 %v835, 64
        %v1131 = vpop.permute.xlu0 %1130
        %1132 = vrot.lane.b32.xlu0 %v836, 64
        %v1133 = vpop.permute.xlu0 %1132
        %1134 = vrot.lane.b32.xlu0 %v837, 64
        %v1135 = vpop.permute.xlu0 %1134
        %1136 = vrot.lane.b32.xlu0 %v838, 64
        %v1137 = vpop.permute.xlu0 %1136
        %1138 = vrot.lane.b32.xlu0 %v839, 64
        %v1139 = vpop.permute.xlu0 %1138
        %1140 = vrot.lane.b32.xlu0 %v840, 64
        %v1141 = vpop.permute.xlu0 %1140
        %1142 = vrot.lane.b32.xlu0 %v841, 64
        %v1143 = vpop.permute.xlu0 %1142
        %1144 = vrot.lane.b32.xlu0 %v842, 64
        %v1145 = vpop.permute.xlu0 %1144
        %1146 = vrot.lane.b32.xlu0 %v843, 64
        %v1147 = vpop.permute.xlu0 %1146
        %s1164 = scalar_lea.vmem %s279, 128 [#allocation7]
        %1165 = vst.msk [vmem:[%s1164] sm:$0xf] %vm860, %v1117
        %1166 = vst.msk [vmem:[%s1164 + $0x4] sm:$0xf] %vm860, %v1119
        %1167 = vst.msk [vmem:[%s1164 + $0x8] sm:$0xf] %vm860, %v1121
        %1168 = vst.msk [vmem:[%s1164 + $0xc] sm:$0xf] %vm860, %v1123
        %1169 = vst.msk [vmem:[%s1164 + $0x10] sm:$0xf] %vm860, %v1125
        %1170 = vst.msk [vmem:[%s1164 + $0x14] sm:$0xf] %vm860, %v1127
        %1171 = vst.msk [vmem:[%s1164 + $0x18] sm:$0xf] %vm860, %v1129
        %1172 = vst.msk [vmem:[%s1164 + $0x1c] sm:$0xf] %vm860, %v1131
        %1173 = vst.msk [vmem:[%s1164 + $0x20] sm:$0xf] %vm860, %v1133
        %1174 = vst.msk [vmem:[%s1164 + $0x24] sm:$0xf] %vm860, %v1135
        %1175 = vst.msk [vmem:[%s1164 + $0x28] sm:$0xf] %vm860, %v1137
        %1176 = vst.msk [vmem:[%s1164 + $0x2c] sm:$0xf] %vm860, %v1139
        %1177 = vst.msk [vmem:[%s1164 + $0x30] sm:$0xf] %vm860, %v1141
        %1178 = vst.msk [vmem:[%s1164 + $0x34] sm:$0xf] %vm860, %v1143
        %1179 = vst.msk [vmem:[%s1164 + $0x38] sm:$0xf] %vm860, %v1145
        %1180 = vst.msk [vmem:[%s1164 + $0x3c] sm:$0xf] %vm860, %v1147
        %v1183 = vunpack.c.l.b16 %v792
        %v1184 = vunpack.c.h.b16 %v792
        %v1185 = vunpack.c.l.b16 %v793
        %v1186 = vunpack.c.h.b16 %v793
        %v1187 = vpack.c.b16 %v1183, %v1183
        %v1188 = vpack.c.b16 %v1184, %v1184
        %v1189 = vpack.c.b16 %v1185, %v1185
        %v1190 = vpack.c.b16 %v1186, %v1186
        %s1195 = scalar_lea.vmem %s286, 32 [#allocation8]
        %1196 = vst [vmem:[%s1195] sm:$0xf] %v1187
        %1197 = vst [vmem:[%s1195 + $0x4] sm:$0xf] %v1188
        %1198 = vst [vmem:[%s1195 + $0x8] sm:$0xf] %v1189
        %1199 = vst [vmem:[%s1195 + $0xc] sm:$0xf] %v1190
        %1200 = vrot.lane.b32.xlu0 %v919, 64
        %v1201 = vpop.permute.xlu0 %1200
        %1202 = vrot.lane.b32.xlu0 %v920, 64
        %v1203 = vpop.permute.xlu0 %1202
        %1204 = vrot.lane.b32.xlu0 %v921, 64
        %v1205 = vpop.permute.xlu0 %1204
        %1206 = vrot.lane.b32.xlu0 %v922, 64
        %v1207 = vpop.permute.xlu0 %1206
        %1208 = vrot.lane.b32.xlu0 %v923, 64
        %v1209 = vpop.permute.xlu0 %1208
        %1210 = vrot.lane.b32.xlu0 %v924, 64
        %v1211 = vpop.permute.xlu0 %1210
        %1212 = vrot.lane.b32.xlu0 %v925, 64
        %v1213 = vpop.permute.xlu0 %1212
        %1214 = vrot.lane.b32.xlu0 %v926, 64
        %v1215 = vpop.permute.xlu0 %1214
        %1216 = vrot.lane.b32.xlu0 %v927, 64
        %v1217 = vpop.permute.xlu0 %1216
        %1218 = vrot.lane.b32.xlu0 %v928, 64
        %v1219 = vpop.permute.xlu0 %1218
        %1220 = vrot.lane.b32.xlu0 %v929, 64
        %v1221 = vpop.permute.xlu0 %1220
        %1222 = vrot.lane.b32.xlu0 %v930, 64
        %v1223 = vpop.permute.xlu0 %1222
        %1224 = vrot.lane.b32.xlu0 %v931, 64
        %v1225 = vpop.permute.xlu0 %1224
        %1226 = vrot.lane.b32.xlu0 %v932, 64
        %v1227 = vpop.permute.xlu0 %1226
        %1228 = vrot.lane.b32.xlu0 %v933, 64
        %v1229 = vpop.permute.xlu0 %1228
        %1230 = vrot.lane.b32.xlu0 %v934, 64
        %v1231 = vpop.permute.xlu0 %1230
        %s1248 = scalar_lea.vmem %s292, 128 [#allocation9]
        %1249 = vst.msk [vmem:[%s1248] sm:$0xf] %vm860, %v1201
        %1250 = vst.msk [vmem:[%s1248 + $0x4] sm:$0xf] %vm860, %v1203
        %1251 = vst.msk [vmem:[%s1248 + $0x8] sm:$0xf] %vm860, %v1205
        %1252 = vst.msk [vmem:[%s1248 + $0xc] sm:$0xf] %vm860, %v1207
        %1253 = vst.msk [vmem:[%s1248 + $0x10] sm:$0xf] %vm860, %v1209
        %1254 = vst.msk [vmem:[%s1248 + $0x14] sm:$0xf] %vm860, %v1211
        %1255 = vst.msk [vmem:[%s1248 + $0x18] sm:$0xf] %vm860, %v1213
        %1256 = vst.msk [vmem:[%s1248 + $0x1c] sm:$0xf] %vm860, %v1215
        %1257 = vst.msk [vmem:[%s1248 + $0x20] sm:$0xf] %vm860, %v1217
        %1258 = vst.msk [vmem:[%s1248 + $0x24] sm:$0xf] %vm860, %v1219
        %1259 = vst.msk [vmem:[%s1248 + $0x28] sm:$0xf] %vm860, %v1221
        %1260 = vst.msk [vmem:[%s1248 + $0x2c] sm:$0xf] %vm860, %v1223
        %1261 = vst.msk [vmem:[%s1248 + $0x30] sm:$0xf] %vm860, %v1225
        %1262 = vst.msk [vmem:[%s1248 + $0x34] sm:$0xf] %vm860, %v1227
        %1263 = vst.msk [vmem:[%s1248 + $0x38] sm:$0xf] %vm860, %v1229
        %1264 = vst.msk [vmem:[%s1248 + $0x3c] sm:$0xf] %vm860, %v1231
        %1265 = vrot.lane.b32.xlu0 %v828, 32
        %v1266 = vpop.permute.xlu0 %1265
        %1267 = vrot.lane.b32.xlu0 %v829, 32
        %v1268 = vpop.permute.xlu0 %1267
        %1269 = vrot.lane.b32.xlu0 %v830, 32
        %v1270 = vpop.permute.xlu0 %1269
        %1271 = vrot.lane.b32.xlu0 %v831, 32
        %v1272 = vpop.permute.xlu0 %1271
        %1273 = vrot.lane.b32.xlu0 %v832, 32
        %v1274 = vpop.permute.xlu0 %1273
        %1275 = vrot.lane.b32.xlu0 %v833, 32
        %v1276 = vpop.permute.xlu0 %1275
        %1277 = vrot.lane.b32.xlu0 %v834, 32
        %v1278 = vpop.permute.xlu0 %1277
        %1279 = vrot.lane.b32.xlu0 %v835, 32
        %v1280 = vpop.permute.xlu0 %1279
        %1281 = vrot.lane.b32.xlu0 %v836, 32
        %v1282 = vpop.permute.xlu0 %1281
        %1283 = vrot.lane.b32.xlu0 %v837, 32
        %v1284 = vpop.permute.xlu0 %1283
        %1285 = vrot.lane.b32.xlu0 %v838, 32
        %v1286 = vpop.permute.xlu0 %1285
        %1287 = vrot.lane.b32.xlu0 %v839, 32
        %v1288 = vpop.permute.xlu0 %1287
        %1289 = vrot.lane.b32.xlu0 %v840, 32
        %v1290 = vpop.permute.xlu0 %1289
        %1291 = vrot.lane.b32.xlu0 %v841, 32
        %v1292 = vpop.permute.xlu0 %1291
        %1293 = vrot.lane.b32.xlu0 %v842, 32
        %v1294 = vpop.permute.xlu0 %1293
        %1295 = vrot.lane.b32.xlu0 %v843, 32
        %v1296 = vpop.permute.xlu0 %1295
        %s1313 = scalar_lea.vmem %s279, 192 [#allocation7]
        %1314 = vst.msk [vmem:[%s1313] sm:$0xf] %vm860, %v1266
        %1315 = vst.msk [vmem:[%s1313 + $0x4] sm:$0xf] %vm860, %v1268
        %1316 = vst.msk [vmem:[%s1313 + $0x8] sm:$0xf] %vm860, %v1270
        %1317 = vst.msk [vmem:[%s1313 + $0xc] sm:$0xf] %vm860, %v1272
        %1318 = vst.msk [vmem:[%s1313 + $0x10] sm:$0xf] %vm860, %v1274
        %1319 = vst.msk [vmem:[%s1313 + $0x14] sm:$0xf] %vm860, %v1276
        %1320 = vst.msk [vmem:[%s1313 + $0x18] sm:$0xf] %vm860, %v1278
        %1321 = vst.msk [vmem:[%s1313 + $0x1c] sm:$0xf] %vm860, %v1280
        %1322 = vst.msk [vmem:[%s1313 + $0x20] sm:$0xf] %vm860, %v1282
        %1323 = vst.msk [vmem:[%s1313 + $0x24] sm:$0xf] %vm860, %v1284
        %1324 = vst.msk [vmem:[%s1313 + $0x28] sm:$0xf] %vm860, %v1286
        %1325 = vst.msk [vmem:[%s1313 + $0x2c] sm:$0xf] %vm860, %v1288
        %1326 = vst.msk [vmem:[%s1313 + $0x30] sm:$0xf] %vm860, %v1290
        %1327 = vst.msk [vmem:[%s1313 + $0x34] sm:$0xf] %vm860, %v1292
        %1328 = vst.msk [vmem:[%s1313 + $0x38] sm:$0xf] %vm860, %v1294
        %1329 = vst.msk [vmem:[%s1313 + $0x3c] sm:$0xf] %vm860, %v1296
        %v1332 = vunpack.c.l.b16 %v794
        %v1333 = vunpack.c.h.b16 %v794
        %v1334 = vunpack.c.l.b16 %v795
        %v1335 = vunpack.c.h.b16 %v795
        %v1336 = vpack.c.b16 %v1332, %v1332
        %v1337 = vpack.c.b16 %v1333, %v1333
        %v1338 = vpack.c.b16 %v1334, %v1334
        %v1339 = vpack.c.b16 %v1335, %v1335
        %s1344 = scalar_lea.vmem %s286, 48 [#allocation8]
        %1345 = vst [vmem:[%s1344] sm:$0xf] %v1336
        %1346 = vst [vmem:[%s1344 + $0x4] sm:$0xf] %v1337
        %1347 = vst [vmem:[%s1344 + $0x8] sm:$0xf] %v1338
        %1348 = vst [vmem:[%s1344 + $0xc] sm:$0xf] %v1339
        %1349 = vrot.lane.b32.xlu0 %v919, 32
        %v1350 = vpop.permute.xlu0 %1349
        %1351 = vrot.lane.b32.xlu0 %v920, 32
        %v1352 = vpop.permute.xlu0 %1351
        %1353 = vrot.lane.b32.xlu0 %v921, 32
        %v1354 = vpop.permute.xlu0 %1353
        %1355 = vrot.lane.b32.xlu0 %v922, 32
        %v1356 = vpop.permute.xlu0 %1355
        %1357 = vrot.lane.b32.xlu0 %v923, 32
        %v1358 = vpop.permute.xlu0 %1357
        %1359 = vrot.lane.b32.xlu0 %v924, 32
        %v1360 = vpop.permute.xlu0 %1359
        %1361 = vrot.lane.b32.xlu0 %v925, 32
        %v1362 = vpop.permute.xlu0 %1361
        %1363 = vrot.lane.b32.xlu0 %v926, 32
        %v1364 = vpop.permute.xlu0 %1363
        %1365 = vrot.lane.b32.xlu0 %v927, 32
        %v1366 = vpop.permute.xlu0 %1365
        %1367 = vrot.lane.b32.xlu0 %v928, 32
        %v1368 = vpop.permute.xlu0 %1367
        %1369 = vrot.lane.b32.xlu0 %v929, 32
        %v1370 = vpop.permute.xlu0 %1369
        %1371 = vrot.lane.b32.xlu0 %v930, 32
        %v1372 = vpop.permute.xlu0 %1371
        %1373 = vrot.lane.b32.xlu0 %v931, 32
        %v1374 = vpop.permute.xlu0 %1373
        %1375 = vrot.lane.b32.xlu0 %v932, 32
        %v1376 = vpop.permute.xlu0 %1375
        %1377 = vrot.lane.b32.xlu0 %v933, 32
        %v1378 = vpop.permute.xlu0 %1377
        %1379 = vrot.lane.b32.xlu0 %v934, 32
        %v1380 = vpop.permute.xlu0 %1379
        %s1397 = scalar_lea.vmem %s292, 192 [#allocation9]
        %1398 = vst.msk [vmem:[%s1397] sm:$0xf] %vm860, %v1350
        %1399 = vst.msk [vmem:[%s1397 + $0x4] sm:$0xf] %vm860, %v1352
        %1400 = vst.msk [vmem:[%s1397 + $0x8] sm:$0xf] %vm860, %v1354
        %1401 = vst.msk [vmem:[%s1397 + $0xc] sm:$0xf] %vm860, %v1356
        %1402 = vst.msk [vmem:[%s1397 + $0x10] sm:$0xf] %vm860, %v1358
        %1403 = vst.msk [vmem:[%s1397 + $0x14] sm:$0xf] %vm860, %v1360
        %1404 = vst.msk [vmem:[%s1397 + $0x18] sm:$0xf] %vm860, %v1362
        %1405 = vst.msk [vmem:[%s1397 + $0x1c] sm:$0xf] %vm860, %v1364
        %1406 = vst.msk [vmem:[%s1397 + $0x20] sm:$0xf] %vm860, %v1366
        %1407 = vst.msk [vmem:[%s1397 + $0x24] sm:$0xf] %vm860, %v1368
        %1408 = vst.msk [vmem:[%s1397 + $0x28] sm:$0xf] %vm860, %v1370
        %1409 = vst.msk [vmem:[%s1397 + $0x2c] sm:$0xf] %vm860, %v1372
        %1410 = vst.msk [vmem:[%s1397 + $0x30] sm:$0xf] %vm860, %v1374
        %1411 = vst.msk [vmem:[%s1397 + $0x34] sm:$0xf] %vm860, %v1376
        %1412 = vst.msk [vmem:[%s1397 + $0x38] sm:$0xf] %vm860, %v1378
        %1413 = vst.msk [vmem:[%s1397 + $0x3c] sm:$0xf] %vm860, %v1380
        %s1414 = sand.u32 %s116, 1
        %s1415 = sand.u32 %s116, 1
        %s1416 = smul.addr %s1415, 256
        %s1417 = scalar_lea.vmem [#allocation7], %s1416
        %s1418 = sand.u32 %s144, 1
        %s1419 = scalar_lea.sflag [#allocation4], %s1418
        %s1420 = sand.u32 %s144, 1
        %s1421 = smul.addr %s1420, 64
        %s1422 = scalar_lea.vmem [#allocation8], %s1421
        %s1423 = sand.u32 %s172, 1
        %s1424 = sand.u32 %s172, 1
        %s1425 = smul.addr %s1424, 256
        %s1426 = scalar_lea.vmem [#allocation9], %s1425
        // Predicated region
        $region41: #{tpu_custom_call.1} parent=31 // pred_check
          %p1427 = pneg %p126
        $region42: #{tpu_custom_call.1} parent=31 // pred_check_branch
          %1429 = sbr.rel (%p1427) target = $region44
        $region43: #{tpu_custom_call.1} parent=31 // pred_region
          %s1430 = smul.u32 16, %s29
          %s1431 = smul.addr %s28, 128
          %s1432 = sadd.s32 %s1430, %s1431
          %s1433 = smul.addr %s1432, 4
          %s1434 = scalar_lea.vmem %s3, %s1433
          // Predicated region
          $region45: #{tpu_custom_call.1} parent=43 // pred_check
            _
          $region46: #{tpu_custom_call.1} parent=43 // pred_check_branch
            %1436 = sbr.rel (0) target = $region48
          $region47: #{tpu_custom_call.1} parent=43 // pred_region
            // Predicated region
            $region49: #{tpu_custom_call.1} parent=47 // pred_check
              _
            $region50: #{tpu_custom_call.1} parent=47 // pred_check_branch
              %1438 = sbr.rel target = $region52
            $region51: #{tpu_custom_call.1} parent=47 // pred_region
              // Predicated region
              $region64: #{tpu_custom_call.1} parent=51 // pred_check
                _
              $region65: #{tpu_custom_call.1} parent=51 // pred_check_branch
                %1580 = sbr.rel (0) target = $region67
              $region66: #{tpu_custom_call.1} parent=51 // pred_region
                loop: start=0, step=1, limit=1
                $region68: #{tpu_custom_call.1} parent=66 // loop_pre_header
                  _
                $region69: #{tpu_custom_call.1} parent=66 // loop_header
                  %s1582 = sphi 0, %s1586
                  %p1583 = scmp.ge.s32.totalorder %s1582, 1
                  %s1587 = sphi %s1417, %s1417
                  %s1588 = sphi %s1434, %s1434
                $region70: #{tpu_custom_call.1} parent=66 // loop_header_branch
                  %1585 = sbr.rel (%p1583) target = $region74
                $region71: #{tpu_custom_call.1} parent=66 // loop_body
                  _
                $region72: #{tpu_custom_call.1} parent=66 // loop_footer
                  %s1586 = sadd.s32 1, %s1582
                $region73: #{tpu_custom_call.1} parent=66 // loop_footer_branch
                  %1581 = sbr.rel target = $region69
                $region74: #{tpu_custom_call.1} parent=66 // loop_exit
                  _
                %s1590 = ssub.s32 16, 1
                loop: start=0, step=1, limit=1
                $region75: #{tpu_custom_call.1} parent=66 // loop_pre_header
                  _
                $region76: #{tpu_custom_call.1} parent=66 // loop_header
                  %s1592 = sphi 0, %s1596
                  %p1593 = scmp.ge.s32.totalorder %s1592, 1
                  %s1597 = sphi %s1417, %s1417
                  %s1598 = sphi %s1434, %s1434
                $region77: #{tpu_custom_call.1} parent=66 // loop_header_branch
                  %1595 = sbr.rel (%p1593) target = $region81
                $region78: #{tpu_custom_call.1} parent=66 // loop_body
                  %v1599 = vld [vmem:[%s1597] sm:%s1590]
                  %1600 = vst [vmem:[%s1598] sm:%s1590] %v1599
                  %v1601 = vld [vmem:[%s1597 + $0x4] sm:%s1590]
                  %1602 = vst [vmem:[%s1598 + $0x4] sm:%s1590] %v1601
                  %v1603 = vld [vmem:[%s1597 + $0x8] sm:%s1590]
                  %1604 = vst [vmem:[%s1598 + $0x8] sm:%s1590] %v1603
                  %v1605 = vld [vmem:[%s1597 + $0xc] sm:%s1590]
                  %1606 = vst [vmem:[%s1598 + $0xc] sm:%s1590] %v1605
                  %v1607 = vld [vmem:[%s1597 + $0x10] sm:%s1590]
                  %1608 = vst [vmem:[%s1598 + $0x10] sm:%s1590] %v1607
                  %v1609 = vld [vmem:[%s1597 + $0x14] sm:%s1590]
                  %1610 = vst [vmem:[%s1598 + $0x14] sm:%s1590] %v1609
                  %v1611 = vld [vmem:[%s1597 + $0x18] sm:%s1590]
                  %1612 = vst [vmem:[%s1598 + $0x18] sm:%s1590] %v1611
                  %v1613 = vld [vmem:[%s1597 + $0x1c] sm:%s1590]
                  %1614 = vst [vmem:[%s1598 + $0x1c] sm:%s1590] %v1613
                  %v1615 = vld [vmem:[%s1597 + $0x20] sm:%s1590]
                  %1616 = vst [vmem:[%s1598 + $0x20] sm:%s1590] %v1615
                  %v1617 = vld [vmem:[%s1597 + $0x24] sm:%s1590]
                  %1618 = vst [vmem:[%s1598 + $0x24] sm:%s1590] %v1617
                  %v1619 = vld [vmem:[%s1597 + $0x28] sm:%s1590]
                  %1620 = vst [vmem:[%s1598 + $0x28] sm:%s1590] %v1619
                  %v1621 = vld [vmem:[%s1597 + $0x2c] sm:%s1590]
                  %1622 = vst [vmem:[%s1598 + $0x2c] sm:%s1590] %v1621
                  %v1623 = vld [vmem:[%s1597 + $0x30] sm:%s1590]
                  %1624 = vst [vmem:[%s1598 + $0x30] sm:%s1590] %v1623
                  %v1625 = vld [vmem:[%s1597 + $0x34] sm:%s1590]
                  %1626 = vst [vmem:[%s1598 + $0x34] sm:%s1590] %v1625
                  %v1627 = vld [vmem:[%s1597 + $0x38] sm:%s1590]
                  %1628 = vst [vmem:[%s1598 + $0x38] sm:%s1590] %v1627
                  %v1629 = vld [vmem:[%s1597 + $0x3c] sm:%s1590]
                  %1630 = vst [vmem:[%s1598 + $0x3c] sm:%s1590] %v1629
                  %v1631 = vld [vmem:[%s1597 + $0x40] sm:%s1590]
                  %1632 = vst [vmem:[%s1598 + $0x80] sm:%s1590] %v1631
                  %v1633 = vld [vmem:[%s1597 + $0x44] sm:%s1590]
                  %1634 = vst [vmem:[%s1598 + $0x84] sm:%s1590] %v1633
                  %v1635 = vld [vmem:[%s1597 + $0x48] sm:%s1590]
                  %1636 = vst [vmem:[%s1598 + $0x88] sm:%s1590] %v1635
                  %v1637 = vld [vmem:[%s1597 + $0x4c] sm:%s1590]
                  %1638 = vst [vmem:[%s1598 + $0x8c] sm:%s1590] %v1637
                  %v1639 = vld [vmem:[%s1597 + $0x50] sm:%s1590]
                  %1640 = vst [vmem:[%s1598 + $0x90] sm:%s1590] %v1639
                  %v1641 = vld [vmem:[%s1597 + $0x54] sm:%s1590]
                  %1642 = vst [vmem:[%s1598 + $0x94] sm:%s1590] %v1641
                  %v1643 = vld [vmem:[%s1597 + $0x58] sm:%s1590]
                  %1644 = vst [vmem:[%s1598 + $0x98] sm:%s1590] %v1643
                  %v1645 = vld [vmem:[%s1597 + $0x5c] sm:%s1590]
                  %1646 = vst [vmem:[%s1598 + $0x9c] sm:%s1590] %v1645
                  %v1647 = vld [vmem:[%s1597 + $0x60] sm:%s1590]
                  %1648 = vst [vmem:[%s1598 + $0xa0] sm:%s1590] %v1647
                  %v1649 = vld [vmem:[%s1597 + $0x64] sm:%s1590]
                  %1650 = vst [vmem:[%s1598 + $0xa4] sm:%s1590] %v1649
                  %v1651 = vld [vmem:[%s1597 + $0x68] sm:%s1590]
                  %1652 = vst [vmem:[%s1598 + $0xa8] sm:%s1590] %v1651
                  %v1653 = vld [vmem:[%s1597 + $0x6c] sm:%s1590]
                  %1654 = vst [vmem:[%s1598 + $0xac] sm:%s1590] %v1653
                  %v1655 = vld [vmem:[%s1597 + $0x70] sm:%s1590]
                  %1656 = vst [vmem:[%s1598 + $0xb0] sm:%s1590] %v1655
                  %v1657 = vld [vmem:[%s1597 + $0x74] sm:%s1590]
                  %1658 = vst [vmem:[%s1598 + $0xb4] sm:%s1590] %v1657
                  %v1659 = vld [vmem:[%s1597 + $0x78] sm:%s1590]
                  %1660 = vst [vmem:[%s1598 + $0xb8] sm:%s1590] %v1659
                  %v1661 = vld [vmem:[%s1597 + $0x7c] sm:%s1590]
                  %1662 = vst [vmem:[%s1598 + $0xbc] sm:%s1590] %v1661
                  %v1663 = vld [vmem:[%s1597 + $0x80] sm:%s1590]
                  %1664 = vst [vmem:[%s1598 + $0x100] sm:%s1590] %v1663
                  %v1665 = vld [vmem:[%s1597 + $0x84] sm:%s1590]
                  %1666 = vst [vmem:[%s1598 + $0x104] sm:%s1590] %v1665
                  %v1667 = vld [vmem:[%s1597 + $0x88] sm:%s1590]
                  %1668 = vst [vmem:[%s1598 + $0x108] sm:%s1590] %v1667
                  %v1669 = vld [vmem:[%s1597 + $0x8c] sm:%s1590]
                  %1670 = vst [vmem:[%s1598 + $0x10c] sm:%s1590] %v1669
                  %v1671 = vld [vmem:[%s1597 + $0x90] sm:%s1590]
                  %1672 = vst [vmem:[%s1598 + $0x110] sm:%s1590] %v1671
                  %v1673 = vld [vmem:[%s1597 + $0x94] sm:%s1590]
                  %1674 = vst [vmem:[%s1598 + $0x114] sm:%s1590] %v1673
                  %v1675 = vld [vmem:[%s1597 + $0x98] sm:%s1590]
                  %1676 = vst [vmem:[%s1598 + $0x118] sm:%s1590] %v1675
                  %v1677 = vld [vmem:[%s1597 + $0x9c] sm:%s1590]
                  %1678 = vst [vmem:[%s1598 + $0x11c] sm:%s1590] %v1677
                  %v1679 = vld [vmem:[%s1597 + $0xa0] sm:%s1590]
                  %1680 = vst [vmem:[%s1598 + $0x120] sm:%s1590] %v1679
                  %v1681 = vld [vmem:[%s1597 + $0xa4] sm:%s1590]
                  %1682 = vst [vmem:[%s1598 + $0x124] sm:%s1590] %v1681
                  %v1683 = vld [vmem:[%s1597 + $0xa8] sm:%s1590]
                  %1684 = vst [vmem:[%s1598 + $0x128] sm:%s1590] %v1683
                  %v1685 = vld [vmem:[%s1597 + $0xac] sm:%s1590]
                  %1686 = vst [vmem:[%s1598 + $0x12c] sm:%s1590] %v1685
                  %v1687 = vld [vmem:[%s1597 + $0xb0] sm:%s1590]
                  %1688 = vst [vmem:[%s1598 + $0x130] sm:%s1590] %v1687
                  %v1689 = vld [vmem:[%s1597 + $0xb4] sm:%s1590]
                  %1690 = vst [vmem:[%s1598 + $0x134] sm:%s1590] %v1689
                  %v1691 = vld [vmem:[%s1597 + $0xb8] sm:%s1590]
                  %1692 = vst [vmem:[%s1598 + $0x138] sm:%s1590] %v1691
                  %v1693 = vld [vmem:[%s1597 + $0xbc] sm:%s1590]
                  %1694 = vst [vmem:[%s1598 + $0x13c] sm:%s1590] %v1693
                  %v1695 = vld [vmem:[%s1597 + $0xc0] sm:%s1590]
                  %1696 = vst [vmem:[%s1598 + $0x180] sm:%s1590] %v1695
                  %v1697 = vld [vmem:[%s1597 + $0xc4] sm:%s1590]
                  %1698 = vst [vmem:[%s1598 + $0x184] sm:%s1590] %v1697
                  %v1699 = vld [vmem:[%s1597 + $0xc8] sm:%s1590]
                  %1700 = vst [vmem:[%s1598 + $0x188] sm:%s1590] %v1699
                  %v1701 = vld [vmem:[%s1597 + $0xcc] sm:%s1590]
                  %1702 = vst [vmem:[%s1598 + $0x18c] sm:%s1590] %v1701
                  %v1703 = vld [vmem:[%s1597 + $0xd0] sm:%s1590]
                  %1704 = vst [vmem:[%s1598 + $0x190] sm:%s1590] %v1703
                  %v1705 = vld [vmem:[%s1597 + $0xd4] sm:%s1590]
                  %1706 = vst [vmem:[%s1598 + $0x194] sm:%s1590] %v1705
                  %v1707 = vld [vmem:[%s1597 + $0xd8] sm:%s1590]
                  %1708 = vst [vmem:[%s1598 + $0x198] sm:%s1590] %v1707
                  %v1709 = vld [vmem:[%s1597 + $0xdc] sm:%s1590]
                  %1710 = vst [vmem:[%s1598 + $0x19c] sm:%s1590] %v1709
                  %v1711 = vld [vmem:[%s1597 + $0xe0] sm:%s1590]
                  %1712 = vst [vmem:[%s1598 + $0x1a0] sm:%s1590] %v1711
                  %v1713 = vld [vmem:[%s1597 + $0xe4] sm:%s1590]
                  %1714 = vst [vmem:[%s1598 + $0x1a4] sm:%s1590] %v1713
                  %v1715 = vld [vmem:[%s1597 + $0xe8] sm:%s1590]
                  %1716 = vst [vmem:[%s1598 + $0x1a8] sm:%s1590] %v1715
                  %v1717 = vld [vmem:[%s1597 + $0xec] sm:%s1590]
                  %1718 = vst [vmem:[%s1598 + $0x1ac] sm:%s1590] %v1717
                  %v1719 = vld [vmem:[%s1597 + $0xf0] sm:%s1590]
                  %1720 = vst [vmem:[%s1598 + $0x1b0] sm:%s1590] %v1719
                  %v1721 = vld [vmem:[%s1597 + $0xf4] sm:%s1590]
                  %1722 = vst [vmem:[%s1598 + $0x1b4] sm:%s1590] %v1721
                  %v1723 = vld [vmem:[%s1597 + $0xf8] sm:%s1590]
                  %1724 = vst [vmem:[%s1598 + $0x1b8] sm:%s1590] %v1723
                  %v1725 = vld [vmem:[%s1597 + $0xfc] sm:%s1590]
                  %1726 = vst [vmem:[%s1598 + $0x1bc] sm:%s1590] %v1725
                $region79: #{tpu_custom_call.1} parent=66 // loop_footer
                  %s1596 = sadd.s32 1, %s1592
                $region80: #{tpu_custom_call.1} parent=66 // loop_footer_branch
                  %1591 = sbr.rel target = $region76
                $region81: #{tpu_custom_call.1} parent=66 // loop_exit
                  _
              $region67: #{tpu_custom_call.1} parent=51 // pred_fallthru
                _
            $region52: #{tpu_custom_call.1} parent=47 // pred_fallthru
              _
            // Predicated region
            $region53: #{tpu_custom_call.1} parent=47 // pred_check
              _
            $region54: #{tpu_custom_call.1} parent=47 // pred_check_branch
              %1440 = sbr.rel (0) target = $region56
            $region55: #{tpu_custom_call.1} parent=47 // pred_region
              %s1442 = ssub.s32 16, 1
              loop: start=0, step=1, limit=1
              $region57: #{tpu_custom_call.1} parent=55 // loop_pre_header
                _
              $region58: #{tpu_custom_call.1} parent=55 // loop_header
                %s1444 = sphi 0, %s1448
                %p1445 = scmp.ge.s32.totalorder %s1444, 1
                %s1449 = sphi %s1417, %s1417
                %s1450 = sphi %s1434, %s1434
              $region59: #{tpu_custom_call.1} parent=55 // loop_header_branch
                %1447 = sbr.rel (%p1445) target = $region63
              $region60: #{tpu_custom_call.1} parent=55 // loop_body
                %v1451 = vld [vmem:[%s1449] sm:%s1442]
                %1452 = vst [vmem:[%s1450] sm:%s1442] %v1451
                %v1453 = vld [vmem:[%s1449 + $0x4] sm:%s1442]
                %1454 = vst [vmem:[%s1450 + $0x4] sm:%s1442] %v1453
                %v1455 = vld [vmem:[%s1449 + $0x8] sm:%s1442]
                %1456 = vst [vmem:[%s1450 + $0x8] sm:%s1442] %v1455
                %v1457 = vld [vmem:[%s1449 + $0xc] sm:%s1442]
                %1458 = vst [vmem:[%s1450 + $0xc] sm:%s1442] %v1457
                %v1459 = vld [vmem:[%s1449 + $0x10] sm:%s1442]
                %1460 = vst [vmem:[%s1450 + $0x10] sm:%s1442] %v1459
                %v1461 = vld [vmem:[%s1449 + $0x14] sm:%s1442]
                %1462 = vst [vmem:[%s1450 + $0x14] sm:%s1442] %v1461
                %v1463 = vld [vmem:[%s1449 + $0x18] sm:%s1442]
                %1464 = vst [vmem:[%s1450 + $0x18] sm:%s1442] %v1463
                %v1465 = vld [vmem:[%s1449 + $0x1c] sm:%s1442]
                %1466 = vst [vmem:[%s1450 + $0x1c] sm:%s1442] %v1465
                %v1467 = vld [vmem:[%s1449 + $0x20] sm:%s1442]
                %1468 = vst [vmem:[%s1450 + $0x20] sm:%s1442] %v1467
                %v1469 = vld [vmem:[%s1449 + $0x24] sm:%s1442]
                %1470 = vst [vmem:[%s1450 + $0x24] sm:%s1442] %v1469
                %v1471 = vld [vmem:[%s1449 + $0x28] sm:%s1442]
                %1472 = vst [vmem:[%s1450 + $0x28] sm:%s1442] %v1471
                %v1473 = vld [vmem:[%s1449 + $0x2c] sm:%s1442]
                %1474 = vst [vmem:[%s1450 + $0x2c] sm:%s1442] %v1473
                %v1475 = vld [vmem:[%s1449 + $0x30] sm:%s1442]
                %1476 = vst [vmem:[%s1450 + $0x30] sm:%s1442] %v1475
                %v1477 = vld [vmem:[%s1449 + $0x34] sm:%s1442]
                %1478 = vst [vmem:[%s1450 + $0x34] sm:%s1442] %v1477
                %v1479 = vld [vmem:[%s1449 + $0x38] sm:%s1442]
                %1480 = vst [vmem:[%s1450 + $0x38] sm:%s1442] %v1479
                %v1481 = vld [vmem:[%s1449 + $0x3c] sm:%s1442]
                %1482 = vst [vmem:[%s1450 + $0x3c] sm:%s1442] %v1481
                %v1483 = vld [vmem:[%s1449 + $0x40] sm:%s1442]
                %1484 = vst [vmem:[%s1450 + $0x80] sm:%s1442] %v1483
                %v1485 = vld [vmem:[%s1449 + $0x44] sm:%s1442]
                %1486 = vst [vmem:[%s1450 + $0x84] sm:%s1442] %v1485
                %v1487 = vld [vmem:[%s1449 + $0x48] sm:%s1442]
                %1488 = vst [vmem:[%s1450 + $0x88] sm:%s1442] %v1487
                %v1489 = vld [vmem:[%s1449 + $0x4c] sm:%s1442]
                %1490 = vst [vmem:[%s1450 + $0x8c] sm:%s1442] %v1489
                %v1491 = vld [vmem:[%s1449 + $0x50] sm:%s1442]
                %1492 = vst [vmem:[%s1450 + $0x90] sm:%s1442] %v1491
                %v1493 = vld [vmem:[%s1449 + $0x54] sm:%s1442]
                %1494 = vst [vmem:[%s1450 + $0x94] sm:%s1442] %v1493
                %v1495 = vld [vmem:[%s1449 + $0x58] sm:%s1442]
                %1496 = vst [vmem:[%s1450 + $0x98] sm:%s1442] %v1495
                %v1497 = vld [vmem:[%s1449 + $0x5c] sm:%s1442]
                %1498 = vst [vmem:[%s1450 + $0x9c] sm:%s1442] %v1497
                %v1499 = vld [vmem:[%s1449 + $0x60] sm:%s1442]
                %1500 = vst [vmem:[%s1450 + $0xa0] sm:%s1442] %v1499
                %v1501 = vld [vmem:[%s1449 + $0x64] sm:%s1442]
                %1502 = vst [vmem:[%s1450 + $0xa4] sm:%s1442] %v1501
                %v1503 = vld [vmem:[%s1449 + $0x68] sm:%s1442]
                %1504 = vst [vmem:[%s1450 + $0xa8] sm:%s1442] %v1503
                %v1505 = vld [vmem:[%s1449 + $0x6c] sm:%s1442]
                %1506 = vst [vmem:[%s1450 + $0xac] sm:%s1442] %v1505
                %v1507 = vld [vmem:[%s1449 + $0x70] sm:%s1442]
                %1508 = vst [vmem:[%s1450 + $0xb0] sm:%s1442] %v1507
                %v1509 = vld [vmem:[%s1449 + $0x74] sm:%s1442]
                %1510 = vst [vmem:[%s1450 + $0xb4] sm:%s1442] %v1509
                %v1511 = vld [vmem:[%s1449 + $0x78] sm:%s1442]
                %1512 = vst [vmem:[%s1450 + $0xb8] sm:%s1442] %v1511
                %v1513 = vld [vmem:[%s1449 + $0x7c] sm:%s1442]
                %1514 = vst [vmem:[%s1450 + $0xbc] sm:%s1442] %v1513
                %v1515 = vld [vmem:[%s1449 + $0x80] sm:%s1442]
                %1516 = vst [vmem:[%s1450 + $0x100] sm:%s1442] %v1515
                %v1517 = vld [vmem:[%s1449 + $0x84] sm:%s1442]
                %1518 = vst [vmem:[%s1450 + $0x104] sm:%s1442] %v1517
                %v1519 = vld [vmem:[%s1449 + $0x88] sm:%s1442]
                %1520 = vst [vmem:[%s1450 + $0x108] sm:%s1442] %v1519
                %v1521 = vld [vmem:[%s1449 + $0x8c] sm:%s1442]
                %1522 = vst [vmem:[%s1450 + $0x10c] sm:%s1442] %v1521
                %v1523 = vld [vmem:[%s1449 + $0x90] sm:%s1442]
                %1524 = vst [vmem:[%s1450 + $0x110] sm:%s1442] %v1523
                %v1525 = vld [vmem:[%s1449 + $0x94] sm:%s1442]
                %1526 = vst [vmem:[%s1450 + $0x114] sm:%s1442] %v1525
                %v1527 = vld [vmem:[%s1449 + $0x98] sm:%s1442]
                %1528 = vst [vmem:[%s1450 + $0x118] sm:%s1442] %v1527
                %v1529 = vld [vmem:[%s1449 + $0x9c] sm:%s1442]
                %1530 = vst [vmem:[%s1450 + $0x11c] sm:%s1442] %v1529
                %v1531 = vld [vmem:[%s1449 + $0xa0] sm:%s1442]
                %1532 = vst [vmem:[%s1450 + $0x120] sm:%s1442] %v1531
                %v1533 = vld [vmem:[%s1449 + $0xa4] sm:%s1442]
                %1534 = vst [vmem:[%s1450 + $0x124] sm:%s1442] %v1533
                %v1535 = vld [vmem:[%s1449 + $0xa8] sm:%s1442]
                %1536 = vst [vmem:[%s1450 + $0x128] sm:%s1442] %v1535
                %v1537 = vld [vmem:[%s1449 + $0xac] sm:%s1442]
                %1538 = vst [vmem:[%s1450 + $0x12c] sm:%s1442] %v1537
                %v1539 = vld [vmem:[%s1449 + $0xb0] sm:%s1442]
                %1540 = vst [vmem:[%s1450 + $0x130] sm:%s1442] %v1539
                %v1541 = vld [vmem:[%s1449 + $0xb4] sm:%s1442]
                %1542 = vst [vmem:[%s1450 + $0x134] sm:%s1442] %v1541
                %v1543 = vld [vmem:[%s1449 + $0xb8] sm:%s1442]
                %1544 = vst [vmem:[%s1450 + $0x138] sm:%s1442] %v1543
                %v1545 = vld [vmem:[%s1449 + $0xbc] sm:%s1442]
                %1546 = vst [vmem:[%s1450 + $0x13c] sm:%s1442] %v1545
                %v1547 = vld [vmem:[%s1449 + $0xc0] sm:%s1442]
                %1548 = vst [vmem:[%s1450 + $0x180] sm:%s1442] %v1547
                %v1549 = vld [vmem:[%s1449 + $0xc4] sm:%s1442]
                %1550 = vst [vmem:[%s1450 + $0x184] sm:%s1442] %v1549
                %v1551 = vld [vmem:[%s1449 + $0xc8] sm:%s1442]
                %1552 = vst [vmem:[%s1450 + $0x188] sm:%s1442] %v1551
                %v1553 = vld [vmem:[%s1449 + $0xcc] sm:%s1442]
                %1554 = vst [vmem:[%s1450 + $0x18c] sm:%s1442] %v1553
                %v1555 = vld [vmem:[%s1449 + $0xd0] sm:%s1442]
                %1556 = vst [vmem:[%s1450 + $0x190] sm:%s1442] %v1555
                %v1557 = vld [vmem:[%s1449 + $0xd4] sm:%s1442]
                %1558 = vst [vmem:[%s1450 + $0x194] sm:%s1442] %v1557
                %v1559 = vld [vmem:[%s1449 + $0xd8] sm:%s1442]
                %1560 = vst [vmem:[%s1450 + $0x198] sm:%s1442] %v1559
                %v1561 = vld [vmem:[%s1449 + $0xdc] sm:%s1442]
                %1562 = vst [vmem:[%s1450 + $0x19c] sm:%s1442] %v1561
                %v1563 = vld [vmem:[%s1449 + $0xe0] sm:%s1442]
                %1564 = vst [vmem:[%s1450 + $0x1a0] sm:%s1442] %v1563
                %v1565 = vld [vmem:[%s1449 + $0xe4] sm:%s1442]
                %1566 = vst [vmem:[%s1450 + $0x1a4] sm:%s1442] %v1565
                %v1567 = vld [vmem:[%s1449 + $0xe8] sm:%s1442]
                %1568 = vst [vmem:[%s1450 + $0x1a8] sm:%s1442] %v1567
                %v1569 = vld [vmem:[%s1449 + $0xec] sm:%s1442]
                %1570 = vst [vmem:[%s1450 + $0x1ac] sm:%s1442] %v1569
                %v1571 = vld [vmem:[%s1449 + $0xf0] sm:%s1442]
                %1572 = vst [vmem:[%s1450 + $0x1b0] sm:%s1442] %v1571
                %v1573 = vld [vmem:[%s1449 + $0xf4] sm:%s1442]
                %1574 = vst [vmem:[%s1450 + $0x1b4] sm:%s1442] %v1573
                %v1575 = vld [vmem:[%s1449 + $0xf8] sm:%s1442]
                %1576 = vst [vmem:[%s1450 + $0x1b8] sm:%s1442] %v1575
                %v1577 = vld [vmem:[%s1449 + $0xfc] sm:%s1442]
                %1578 = vst [vmem:[%s1450 + $0x1bc] sm:%s1442] %v1577
              $region61: #{tpu_custom_call.1} parent=55 // loop_footer
                %s1448 = sadd.s32 1, %s1444
              $region62: #{tpu_custom_call.1} parent=55 // loop_footer_branch
                %1443 = sbr.rel target = $region58
              $region63: #{tpu_custom_call.1} parent=55 // loop_exit
                _
            $region56: #{tpu_custom_call.1} parent=47 // pred_fallthru
              _
          $region48: #{tpu_custom_call.1} parent=43 // pred_fallthru
            _
          %1727 = vnop
        $region44: #{tpu_custom_call.1} parent=31 // pred_fallthru
          _
        // Predicated region
        $region82: #{tpu_custom_call.1} parent=31 // pred_check
          %p1728 = pneg %p154
        $region83: #{tpu_custom_call.1} parent=31 // pred_check_branch
          %1730 = sbr.rel (%p1728) target = $region85
        $region84: #{tpu_custom_call.1} parent=31 // pred_region
          %s1732 = ssub.s32 1024, 1024
          %1733 = vsyncadd %s1419, %s1732
          %s1734 = smul.addr %s28, 32
          %s1735 = sadd.s32 %s29, %s1734
          %s1736 = smul.addr %s1735, 64
          %s1737 = scalar_lea.hbm %s4, %s1736
          %s1738 = sshll.u32 %s1422, 4
          %s1739 = int_to_ptr.vmem [resolvable:$true] %s1738
          %1744 = dma.vmem_to_hbm [thread:$0]  %s1739, 1024, %s1737, %s1419, 64, 128, 4
        $region85: #{tpu_custom_call.1} parent=31 // pred_fallthru
          _
        // Predicated region
        $region86: #{tpu_custom_call.1} parent=31 // pred_check
          %p1745 = pneg %p182
        $region87: #{tpu_custom_call.1} parent=31 // pred_check_branch
          %1747 = sbr.rel (%p1745) target = $region89
        $region88: #{tpu_custom_call.1} parent=31 // pred_region
          %s1748 = smul.u32 16, %s29
          %s1749 = smul.addr %s28, 128
          %s1750 = sadd.s32 %s1748, %s1749
          %s1751 = smul.addr %s1750, 4
          %s1752 = scalar_lea.vmem %s5, %s1751
          // Predicated region
          $region90: #{tpu_custom_call.1} parent=88 // pred_check
            _
          $region91: #{tpu_custom_call.1} parent=88 // pred_check_branch
            %1754 = sbr.rel (0) target = $region93
          $region92: #{tpu_custom_call.1} parent=88 // pred_region
            // Predicated region
            $region94: #{tpu_custom_call.1} parent=92 // pred_check
              _
            $region95: #{tpu_custom_call.1} parent=92 // pred_check_branch
              %1756 = sbr.rel target = $region97
            $region96: #{tpu_custom_call.1} parent=92 // pred_region
              // Predicated region
              $region109: #{tpu_custom_call.1} parent=96 // pred_check
                _
              $region110: #{tpu_custom_call.1} parent=96 // pred_check_branch
                %1898 = sbr.rel (0) target = $region112
              $region111: #{tpu_custom_call.1} parent=96 // pred_region
                loop: start=0, step=1, limit=1
                $region113: #{tpu_custom_call.1} parent=111 // loop_pre_header
                  _
                $region114: #{tpu_custom_call.1} parent=111 // loop_header
                  %s1900 = sphi 0, %s1904
                  %p1901 = scmp.ge.s32.totalorder %s1900, 1
                  %s1905 = sphi %s1426, %s1426
                  %s1906 = sphi %s1752, %s1752
                $region115: #{tpu_custom_call.1} parent=111 // loop_header_branch
                  %1903 = sbr.rel (%p1901) target = $region119
                $region116: #{tpu_custom_call.1} parent=111 // loop_body
                  _
                $region117: #{tpu_custom_call.1} parent=111 // loop_footer
                  %s1904 = sadd.s32 1, %s1900
                $region118: #{tpu_custom_call.1} parent=111 // loop_footer_branch
                  %1899 = sbr.rel target = $region114
                $region119: #{tpu_custom_call.1} parent=111 // loop_exit
                  _
                %s1908 = ssub.s32 16, 1
                loop: start=0, step=1, limit=1
                $region120: #{tpu_custom_call.1} parent=111 // loop_pre_header
                  _
                $region121: #{tpu_custom_call.1} parent=111 // loop_header
                  %s1910 = sphi 0, %s1914
                  %p1911 = scmp.ge.s32.totalorder %s1910, 1
                  %s1915 = sphi %s1426, %s1426
                  %s1916 = sphi %s1752, %s1752
                $region122: #{tpu_custom_call.1} parent=111 // loop_header_branch
                  %1913 = sbr.rel (%p1911) target = $region126
                $region123: #{tpu_custom_call.1} parent=111 // loop_body
                  %v1917 = vld [vmem:[%s1915] sm:%s1908]
                  %1918 = vst [vmem:[%s1916] sm:%s1908] %v1917
                  %v1919 = vld [vmem:[%s1915 + $0x4] sm:%s1908]
                  %1920 = vst [vmem:[%s1916 + $0x4] sm:%s1908] %v1919
                  %v1921 = vld [vmem:[%s1915 + $0x8] sm:%s1908]
                  %1922 = vst [vmem:[%s1916 + $0x8] sm:%s1908] %v1921
                  %v1923 = vld [vmem:[%s1915 + $0xc] sm:%s1908]
                  %1924 = vst [vmem:[%s1916 + $0xc] sm:%s1908] %v1923
                  %v1925 = vld [vmem:[%s1915 + $0x10] sm:%s1908]
                  %1926 = vst [vmem:[%s1916 + $0x10] sm:%s1908] %v1925
                  %v1927 = vld [vmem:[%s1915 + $0x14] sm:%s1908]
                  %1928 = vst [vmem:[%s1916 + $0x14] sm:%s1908] %v1927
                  %v1929 = vld [vmem:[%s1915 + $0x18] sm:%s1908]
                  %1930 = vst [vmem:[%s1916 + $0x18] sm:%s1908] %v1929
                  %v1931 = vld [vmem:[%s1915 + $0x1c] sm:%s1908]
                  %1932 = vst [vmem:[%s1916 + $0x1c] sm:%s1908] %v1931
                  %v1933 = vld [vmem:[%s1915 + $0x20] sm:%s1908]
                  %1934 = vst [vmem:[%s1916 + $0x20] sm:%s1908] %v1933
                  %v1935 = vld [vmem:[%s1915 + $0x24] sm:%s1908]
                  %1936 = vst [vmem:[%s1916 + $0x24] sm:%s1908] %v1935
                  %v1937 = vld [vmem:[%s1915 + $0x28] sm:%s1908]
                  %1938 = vst [vmem:[%s1916 + $0x28] sm:%s1908] %v1937
                  %v1939 = vld [vmem:[%s1915 + $0x2c] sm:%s1908]
                  %1940 = vst [vmem:[%s1916 + $0x2c] sm:%s1908] %v1939
                  %v1941 = vld [vmem:[%s1915 + $0x30] sm:%s1908]
                  %1942 = vst [vmem:[%s1916 + $0x30] sm:%s1908] %v1941
                  %v1943 = vld [vmem:[%s1915 + $0x34] sm:%s1908]
                  %1944 = vst [vmem:[%s1916 + $0x34] sm:%s1908] %v1943
                  %v1945 = vld [vmem:[%s1915 + $0x38] sm:%s1908]
                  %1946 = vst [vmem:[%s1916 + $0x38] sm:%s1908] %v1945
                  %v1947 = vld [vmem:[%s1915 + $0x3c] sm:%s1908]
                  %1948 = vst [vmem:[%s1916 + $0x3c] sm:%s1908] %v1947
                  %v1949 = vld [vmem:[%s1915 + $0x40] sm:%s1908]
                  %1950 = vst [vmem:[%s1916 + $0x80] sm:%s1908] %v1949
                  %v1951 = vld [vmem:[%s1915 + $0x44] sm:%s1908]
                  %1952 = vst [vmem:[%s1916 + $0x84] sm:%s1908] %v1951
                  %v1953 = vld [vmem:[%s1915 + $0x48] sm:%s1908]
                  %1954 = vst [vmem:[%s1916 + $0x88] sm:%s1908] %v1953
                  %v1955 = vld [vmem:[%s1915 + $0x4c] sm:%s1908]
                  %1956 = vst [vmem:[%s1916 + $0x8c] sm:%s1908] %v1955
                  %v1957 = vld [vmem:[%s1915 + $0x50] sm:%s1908]
                  %1958 = vst [vmem:[%s1916 + $0x90] sm:%s1908] %v1957
                  %v1959 = vld [vmem:[%s1915 + $0x54] sm:%s1908]
                  %1960 = vst [vmem:[%s1916 + $0x94] sm:%s1908] %v1959
                  %v1961 = vld [vmem:[%s1915 + $0x58] sm:%s1908]
                  %1962 = vst [vmem:[%s1916 + $0x98] sm:%s1908] %v1961
                  %v1963 = vld [vmem:[%s1915 + $0x5c] sm:%s1908]
                  %1964 = vst [vmem:[%s1916 + $0x9c] sm:%s1908] %v1963
                  %v1965 = vld [vmem:[%s1915 + $0x60] sm:%s1908]
                  %1966 = vst [vmem:[%s1916 + $0xa0] sm:%s1908] %v1965
                  %v1967 = vld [vmem:[%s1915 + $0x64] sm:%s1908]
                  %1968 = vst [vmem:[%s1916 + $0xa4] sm:%s1908] %v1967
                  %v1969 = vld [vmem:[%s1915 + $0x68] sm:%s1908]
                  %1970 = vst [vmem:[%s1916 + $0xa8] sm:%s1908] %v1969
                  %v1971 = vld [vmem:[%s1915 + $0x6c] sm:%s1908]
                  %1972 = vst [vmem:[%s1916 + $0xac] sm:%s1908] %v1971
                  %v1973 = vld [vmem:[%s1915 + $0x70] sm:%s1908]
                  %1974 = vst [vmem:[%s1916 + $0xb0] sm:%s1908] %v1973
                  %v1975 = vld [vmem:[%s1915 + $0x74] sm:%s1908]
                  %1976 = vst [vmem:[%s1916 + $0xb4] sm:%s1908] %v1975
                  %v1977 = vld [vmem:[%s1915 + $0x78] sm:%s1908]
                  %1978 = vst [vmem:[%s1916 + $0xb8] sm:%s1908] %v1977
                  %v1979 = vld [vmem:[%s1915 + $0x7c] sm:%s1908]
                  %1980 = vst [vmem:[%s1916 + $0xbc] sm:%s1908] %v1979
                  %v1981 = vld [vmem:[%s1915 + $0x80] sm:%s1908]
                  %1982 = vst [vmem:[%s1916 + $0x100] sm:%s1908] %v1981
                  %v1983 = vld [vmem:[%s1915 + $0x84] sm:%s1908]
                  %1984 = vst [vmem:[%s1916 + $0x104] sm:%s1908] %v1983
                  %v1985 = vld [vmem:[%s1915 + $0x88] sm:%s1908]
                  %1986 = vst [vmem:[%s1916 + $0x108] sm:%s1908] %v1985
                  %v1987 = vld [vmem:[%s1915 + $0x8c] sm:%s1908]
                  %1988 = vst [vmem:[%s1916 + $0x10c] sm:%s1908] %v1987
                  %v1989 = vld [vmem:[%s1915 + $0x90] sm:%s1908]
                  %1990 = vst [vmem:[%s1916 + $0x110] sm:%s1908] %v1989
                  %v1991 = vld [vmem:[%s1915 + $0x94] sm:%s1908]
                  %1992 = vst [vmem:[%s1916 + $0x114] sm:%s1908] %v1991
                  %v1993 = vld [vmem:[%s1915 + $0x98] sm:%s1908]
                  %1994 = vst [vmem:[%s1916 + $0x118] sm:%s1908] %v1993
                  %v1995 = vld [vmem:[%s1915 + $0x9c] sm:%s1908]
                  %1996 = vst [vmem:[%s1916 + $0x11c] sm:%s1908] %v1995
                  %v1997 = vld [vmem:[%s1915 + $0xa0] sm:%s1908]
                  %1998 = vst [vmem:[%s1916 + $0x120] sm:%s1908] %v1997
                  %v1999 = vld [vmem:[%s1915 + $0xa4] sm:%s1908]
                  %2000 = vst [vmem:[%s1916 + $0x124] sm:%s1908] %v1999
                  %v2001 = vld [vmem:[%s1915 + $0xa8] sm:%s1908]
                  %2002 = vst [vmem:[%s1916 + $0x128] sm:%s1908] %v2001
                  %v2003 = vld [vmem:[%s1915 + $0xac] sm:%s1908]
                  %2004 = vst [vmem:[%s1916 + $0x12c] sm:%s1908] %v2003
                  %v2005 = vld [vmem:[%s1915 + $0xb0] sm:%s1908]
                  %2006 = vst [vmem:[%s1916 + $0x130] sm:%s1908] %v2005
                  %v2007 = vld [vmem:[%s1915 + $0xb4] sm:%s1908]
                  %2008 = vst [vmem:[%s1916 + $0x134] sm:%s1908] %v2007
                  %v2009 = vld [vmem:[%s1915 + $0xb8] sm:%s1908]
                  %2010 = vst [vmem:[%s1916 + $0x138] sm:%s1908] %v2009
                  %v2011 = vld [vmem:[%s1915 + $0xbc] sm:%s1908]
                  %2012 = vst [vmem:[%s1916 + $0x13c] sm:%s1908] %v2011
                  %v2013 = vld [vmem:[%s1915 + $0xc0] sm:%s1908]
                  %2014 = vst [vmem:[%s1916 + $0x180] sm:%s1908] %v2013
                  %v2015 = vld [vmem:[%s1915 + $0xc4] sm:%s1908]
                  %2016 = vst [vmem:[%s1916 + $0x184] sm:%s1908] %v2015
                  %v2017 = vld [vmem:[%s1915 + $0xc8] sm:%s1908]
                  %2018 = vst [vmem:[%s1916 + $0x188] sm:%s1908] %v2017
                  %v2019 = vld [vmem:[%s1915 + $0xcc] sm:%s1908]
                  %2020 = vst [vmem:[%s1916 + $0x18c] sm:%s1908] %v2019
                  %v2021 = vld [vmem:[%s1915 + $0xd0] sm:%s1908]
                  %2022 = vst [vmem:[%s1916 + $0x190] sm:%s1908] %v2021
                  %v2023 = vld [vmem:[%s1915 + $0xd4] sm:%s1908]
                  %2024 = vst [vmem:[%s1916 + $0x194] sm:%s1908] %v2023
                  %v2025 = vld [vmem:[%s1915 + $0xd8] sm:%s1908]
                  %2026 = vst [vmem:[%s1916 + $0x198] sm:%s1908] %v2025
                  %v2027 = vld [vmem:[%s1915 + $0xdc] sm:%s1908]
                  %2028 = vst [vmem:[%s1916 + $0x19c] sm:%s1908] %v2027
                  %v2029 = vld [vmem:[%s1915 + $0xe0] sm:%s1908]
                  %2030 = vst [vmem:[%s1916 + $0x1a0] sm:%s1908] %v2029
                  %v2031 = vld [vmem:[%s1915 + $0xe4] sm:%s1908]
                  %2032 = vst [vmem:[%s1916 + $0x1a4] sm:%s1908] %v2031
                  %v2033 = vld [vmem:[%s1915 + $0xe8] sm:%s1908]
                  %2034 = vst [vmem:[%s1916 + $0x1a8] sm:%s1908] %v2033
                  %v2035 = vld [vmem:[%s1915 + $0xec] sm:%s1908]
                  %2036 = vst [vmem:[%s1916 + $0x1ac] sm:%s1908] %v2035
                  %v2037 = vld [vmem:[%s1915 + $0xf0] sm:%s1908]
                  %2038 = vst [vmem:[%s1916 + $0x1b0] sm:%s1908] %v2037
                  %v2039 = vld [vmem:[%s1915 + $0xf4] sm:%s1908]
                  %2040 = vst [vmem:[%s1916 + $0x1b4] sm:%s1908] %v2039
                  %v2041 = vld [vmem:[%s1915 + $0xf8] sm:%s1908]
                  %2042 = vst [vmem:[%s1916 + $0x1b8] sm:%s1908] %v2041
                  %v2043 = vld [vmem:[%s1915 + $0xfc] sm:%s1908]
                  %2044 = vst [vmem:[%s1916 + $0x1bc] sm:%s1908] %v2043
                $region124: #{tpu_custom_call.1} parent=111 // loop_footer
                  %s1914 = sadd.s32 1, %s1910
                $region125: #{tpu_custom_call.1} parent=111 // loop_footer_branch
                  %1909 = sbr.rel target = $region121
                $region126: #{tpu_custom_call.1} parent=111 // loop_exit
                  _
              $region112: #{tpu_custom_call.1} parent=96 // pred_fallthru
                _
            $region97: #{tpu_custom_call.1} parent=92 // pred_fallthru
              _
            // Predicated region
            $region98: #{tpu_custom_call.1} parent=92 // pred_check
              _
            $region99: #{tpu_custom_call.1} parent=92 // pred_check_branch
              %1758 = sbr.rel (0) target = $region101
            $region100: #{tpu_custom_call.1} parent=92 // pred_region
              %s1760 = ssub.s32 16, 1
              loop: start=0, step=1, limit=1
              $region102: #{tpu_custom_call.1} parent=100 // loop_pre_header
                _
              $region103: #{tpu_custom_call.1} parent=100 // loop_header
                %s1762 = sphi 0, %s1766
                %p1763 = scmp.ge.s32.totalorder %s1762, 1
                %s1767 = sphi %s1426, %s1426
                %s1768 = sphi %s1752, %s1752
              $region104: #{tpu_custom_call.1} parent=100 // loop_header_branch
                %1765 = sbr.rel (%p1763) target = $region108
              $region105: #{tpu_custom_call.1} parent=100 // loop_body
                %v1769 = vld [vmem:[%s1767] sm:%s1760]
                %1770 = vst [vmem:[%s1768] sm:%s1760] %v1769
                %v1771 = vld [vmem:[%s1767 + $0x4] sm:%s1760]
                %1772 = vst [vmem:[%s1768 + $0x4] sm:%s1760] %v1771
                %v1773 = vld [vmem:[%s1767 + $0x8] sm:%s1760]
                %1774 = vst [vmem:[%s1768 + $0x8] sm:%s1760] %v1773
                %v1775 = vld [vmem:[%s1767 + $0xc] sm:%s1760]
                %1776 = vst [vmem:[%s1768 + $0xc] sm:%s1760] %v1775
                %v1777 = vld [vmem:[%s1767 + $0x10] sm:%s1760]
                %1778 = vst [vmem:[%s1768 + $0x10] sm:%s1760] %v1777
                %v1779 = vld [vmem:[%s1767 + $0x14] sm:%s1760]
                %1780 = vst [vmem:[%s1768 + $0x14] sm:%s1760] %v1779
                %v1781 = vld [vmem:[%s1767 + $0x18] sm:%s1760]
                %1782 = vst [vmem:[%s1768 + $0x18] sm:%s1760] %v1781
                %v1783 = vld [vmem:[%s1767 + $0x1c] sm:%s1760]
                %1784 = vst [vmem:[%s1768 + $0x1c] sm:%s1760] %v1783
                %v1785 = vld [vmem:[%s1767 + $0x20] sm:%s1760]
                %1786 = vst [vmem:[%s1768 + $0x20] sm:%s1760] %v1785
                %v1787 = vld [vmem:[%s1767 + $0x24] sm:%s1760]
                %1788 = vst [vmem:[%s1768 + $0x24] sm:%s1760] %v1787
                %v1789 = vld [vmem:[%s1767 + $0x28] sm:%s1760]
                %1790 = vst [vmem:[%s1768 + $0x28] sm:%s1760] %v1789
                %v1791 = vld [vmem:[%s1767 + $0x2c] sm:%s1760]
                %1792 = vst [vmem:[%s1768 + $0x2c] sm:%s1760] %v1791
                %v1793 = vld [vmem:[%s1767 + $0x30] sm:%s1760]
                %1794 = vst [vmem:[%s1768 + $0x30] sm:%s1760] %v1793
                %v1795 = vld [vmem:[%s1767 + $0x34] sm:%s1760]
                %1796 = vst [vmem:[%s1768 + $0x34] sm:%s1760] %v1795
                %v1797 = vld [vmem:[%s1767 + $0x38] sm:%s1760]
                %1798 = vst [vmem:[%s1768 + $0x38] sm:%s1760] %v1797
                %v1799 = vld [vmem:[%s1767 + $0x3c] sm:%s1760]
                %1800 = vst [vmem:[%s1768 + $0x3c] sm:%s1760] %v1799
                %v1801 = vld [vmem:[%s1767 + $0x40] sm:%s1760]
                %1802 = vst [vmem:[%s1768 + $0x80] sm:%s1760] %v1801
                %v1803 = vld [vmem:[%s1767 + $0x44] sm:%s1760]
                %1804 = vst [vmem:[%s1768 + $0x84] sm:%s1760] %v1803
                %v1805 = vld [vmem:[%s1767 + $0x48] sm:%s1760]
                %1806 = vst [vmem:[%s1768 + $0x88] sm:%s1760] %v1805
                %v1807 = vld [vmem:[%s1767 + $0x4c] sm:%s1760]
                %1808 = vst [vmem:[%s1768 + $0x8c] sm:%s1760] %v1807
                %v1809 = vld [vmem:[%s1767 + $0x50] sm:%s1760]
                %1810 = vst [vmem:[%s1768 + $0x90] sm:%s1760] %v1809
                %v1811 = vld [vmem:[%s1767 + $0x54] sm:%s1760]
                %1812 = vst [vmem:[%s1768 + $0x94] sm:%s1760] %v1811
                %v1813 = vld [vmem:[%s1767 + $0x58] sm:%s1760]
                %1814 = vst [vmem:[%s1768 + $0x98] sm:%s1760] %v1813
                %v1815 = vld [vmem:[%s1767 + $0x5c] sm:%s1760]
                %1816 = vst [vmem:[%s1768 + $0x9c] sm:%s1760] %v1815
                %v1817 = vld [vmem:[%s1767 + $0x60] sm:%s1760]
                %1818 = vst [vmem:[%s1768 + $0xa0] sm:%s1760] %v1817
                %v1819 = vld [vmem:[%s1767 + $0x64] sm:%s1760]
                %1820 = vst [vmem:[%s1768 + $0xa4] sm:%s1760] %v1819
                %v1821 = vld [vmem:[%s1767 + $0x68] sm:%s1760]
                %1822 = vst [vmem:[%s1768 + $0xa8] sm:%s1760] %v1821
                %v1823 = vld [vmem:[%s1767 + $0x6c] sm:%s1760]
                %1824 = vst [vmem:[%s1768 + $0xac] sm:%s1760] %v1823
                %v1825 = vld [vmem:[%s1767 + $0x70] sm:%s1760]
                %1826 = vst [vmem:[%s1768 + $0xb0] sm:%s1760] %v1825
                %v1827 = vld [vmem:[%s1767 + $0x74] sm:%s1760]
                %1828 = vst [vmem:[%s1768 + $0xb4] sm:%s1760] %v1827
                %v1829 = vld [vmem:[%s1767 + $0x78] sm:%s1760]
                %1830 = vst [vmem:[%s1768 + $0xb8] sm:%s1760] %v1829
                %v1831 = vld [vmem:[%s1767 + $0x7c] sm:%s1760]
                %1832 = vst [vmem:[%s1768 + $0xbc] sm:%s1760] %v1831
                %v1833 = vld [vmem:[%s1767 + $0x80] sm:%s1760]
                %1834 = vst [vmem:[%s1768 + $0x100] sm:%s1760] %v1833
                %v1835 = vld [vmem:[%s1767 + $0x84] sm:%s1760]
                %1836 = vst [vmem:[%s1768 + $0x104] sm:%s1760] %v1835
                %v1837 = vld [vmem:[%s1767 + $0x88] sm:%s1760]
                %1838 = vst [vmem:[%s1768 + $0x108] sm:%s1760] %v1837
                %v1839 = vld [vmem:[%s1767 + $0x8c] sm:%s1760]
                %1840 = vst [vmem:[%s1768 + $0x10c] sm:%s1760] %v1839
                %v1841 = vld [vmem:[%s1767 + $0x90] sm:%s1760]
                %1842 = vst [vmem:[%s1768 + $0x110] sm:%s1760] %v1841
                %v1843 = vld [vmem:[%s1767 + $0x94] sm:%s1760]
                %1844 = vst [vmem:[%s1768 + $0x114] sm:%s1760] %v1843
                %v1845 = vld [vmem:[%s1767 + $0x98] sm:%s1760]
                %1846 = vst [vmem:[%s1768 + $0x118] sm:%s1760] %v1845
                %v1847 = vld [vmem:[%s1767 + $0x9c] sm:%s1760]
                %1848 = vst [vmem:[%s1768 + $0x11c] sm:%s1760] %v1847
                %v1849 = vld [vmem:[%s1767 + $0xa0] sm:%s1760]
                %1850 = vst [vmem:[%s1768 + $0x120] sm:%s1760] %v1849
                %v1851 = vld [vmem:[%s1767 + $0xa4] sm:%s1760]
                %1852 = vst [vmem:[%s1768 + $0x124] sm:%s1760] %v1851
                %v1853 = vld [vmem:[%s1767 + $0xa8] sm:%s1760]
                %1854 = vst [vmem:[%s1768 + $0x128] sm:%s1760] %v1853
                %v1855 = vld [vmem:[%s1767 + $0xac] sm:%s1760]
                %1856 = vst [vmem:[%s1768 + $0x12c] sm:%s1760] %v1855
                %v1857 = vld [vmem:[%s1767 + $0xb0] sm:%s1760]
                %1858 = vst [vmem:[%s1768 + $0x130] sm:%s1760] %v1857
                %v1859 = vld [vmem:[%s1767 + $0xb4] sm:%s1760]
                %1860 = vst [vmem:[%s1768 + $0x134] sm:%s1760] %v1859
                %v1861 = vld [vmem:[%s1767 + $0xb8] sm:%s1760]
                %1862 = vst [vmem:[%s1768 + $0x138] sm:%s1760] %v1861
                %v1863 = vld [vmem:[%s1767 + $0xbc] sm:%s1760]
                %1864 = vst [vmem:[%s1768 + $0x13c] sm:%s1760] %v1863
                %v1865 = vld [vmem:[%s1767 + $0xc0] sm:%s1760]
                %1866 = vst [vmem:[%s1768 + $0x180] sm:%s1760] %v1865
                %v1867 = vld [vmem:[%s1767 + $0xc4] sm:%s1760]
                %1868 = vst [vmem:[%s1768 + $0x184] sm:%s1760] %v1867
                %v1869 = vld [vmem:[%s1767 + $0xc8] sm:%s1760]
                %1870 = vst [vmem:[%s1768 + $0x188] sm:%s1760] %v1869
                %v1871 = vld [vmem:[%s1767 + $0xcc] sm:%s1760]
                %1872 = vst [vmem:[%s1768 + $0x18c] sm:%s1760] %v1871
                %v1873 = vld [vmem:[%s1767 + $0xd0] sm:%s1760]
                %1874 = vst [vmem:[%s1768 + $0x190] sm:%s1760] %v1873
                %v1875 = vld [vmem:[%s1767 + $0xd4] sm:%s1760]
                %1876 = vst [vmem:[%s1768 + $0x194] sm:%s1760] %v1875
                %v1877 = vld [vmem:[%s1767 + $0xd8] sm:%s1760]
                %1878 = vst [vmem:[%s1768 + $0x198] sm:%s1760] %v1877
                %v1879 = vld [vmem:[%s1767 + $0xdc] sm:%s1760]
                %1880 = vst [vmem:[%s1768 + $0x19c] sm:%s1760] %v1879
                %v1881 = vld [vmem:[%s1767 + $0xe0] sm:%s1760]
                %1882 = vst [vmem:[%s1768 + $0x1a0] sm:%s1760] %v1881
                %v1883 = vld [vmem:[%s1767 + $0xe4] sm:%s1760]
                %1884 = vst [vmem:[%s1768 + $0x1a4] sm:%s1760] %v1883
                %v1885 = vld [vmem:[%s1767 + $0xe8] sm:%s1760]
                %1886 = vst [vmem:[%s1768 + $0x1a8] sm:%s1760] %v1885
                %v1887 = vld [vmem:[%s1767 + $0xec] sm:%s1760]
                %1888 = vst [vmem:[%s1768 + $0x1ac] sm:%s1760] %v1887
                %v1889 = vld [vmem:[%s1767 + $0xf0] sm:%s1760]
                %1890 = vst [vmem:[%s1768 + $0x1b0] sm:%s1760] %v1889
                %v1891 = vld [vmem:[%s1767 + $0xf4] sm:%s1760]
                %1892 = vst [vmem:[%s1768 + $0x1b4] sm:%s1760] %v1891
                %v1893 = vld [vmem:[%s1767 + $0xf8] sm:%s1760]
                %1894 = vst [vmem:[%s1768 + $0x1b8] sm:%s1760] %v1893
                %v1895 = vld [vmem:[%s1767 + $0xfc] sm:%s1760]
                %1896 = vst [vmem:[%s1768 + $0x1bc] sm:%s1760] %v1895
              $region106: #{tpu_custom_call.1} parent=100 // loop_footer
                %s1766 = sadd.s32 1, %s1762
              $region107: #{tpu_custom_call.1} parent=100 // loop_footer_branch
                %1761 = sbr.rel target = $region103
              $region108: #{tpu_custom_call.1} parent=100 // loop_exit
                _
            $region101: #{tpu_custom_call.1} parent=92 // pred_fallthru
              _
          $region93: #{tpu_custom_call.1} parent=88 // pred_fallthru
            _
          %2045 = vnop
        $region89: #{tpu_custom_call.1} parent=31 // pred_fallthru
          _
      $region32: #{tpu_custom_call.1} parent=5 // pred_fallthru
        _
      %p2046 = scmp.le.s32.totalorder 2, %s19
      // Predicated region
      $region127: #{tpu_custom_call.1} parent=5 // pred_check
        %p2047 = pneg %p2046
      $region128: #{tpu_custom_call.1} parent=5 // pred_check_branch
        %2049 = sbr.rel (%p2047) target = $region130
      $region129: #{tpu_custom_call.1} parent=5 // pred_region
        %s2050 = ssub.s32 %s19, 2
        // Predicated region
        $region131: #{tpu_custom_call.1} parent=129 // pred_check
          %p2051 = pneg %p132
        $region132: #{tpu_custom_call.1} parent=129 // pred_check_branch
          %2053 = sbr.rel (%p2051) target = $region134
        $region133: #{tpu_custom_call.1} parent=129 // pred_region
          %s2054 = sand.u32 %s117, 1
          %s2055 = sand.u32 %s117, 1
          %s2056 = smul.addr %s2055, 256
          %s2057 = scalar_lea.vmem [#allocation7], %s2056
        $region134: #{tpu_custom_call.1} parent=129 // pred_fallthru
          _
        // Predicated region
        $region135: #{tpu_custom_call.1} parent=129 // pred_check
          %p2058 = pneg %p160
        $region136: #{tpu_custom_call.1} parent=129 // pred_check_branch
          %2060 = sbr.rel (%p2058) target = $region138
        $region137: #{tpu_custom_call.1} parent=129 // pred_region
          %s2061 = sand.u32 %s145, 1
          %s2062 = scalar_lea.sflag [#allocation4], %s2061
          %s2063 = sand.u32 %s145, 1
          %s2064 = smul.addr %s2063, 64
          %s2065 = scalar_lea.vmem [#allocation8], %s2064
          %2066 = dma.done %s2062, 1024
        $region138: #{tpu_custom_call.1} parent=129 // pred_fallthru
          _
        // Predicated region
        $region139: #{tpu_custom_call.1} parent=129 // pred_check
          %p2067 = pneg %p188
        $region140: #{tpu_custom_call.1} parent=129 // pred_check_branch
          %2069 = sbr.rel (%p2067) target = $region142
        $region141: #{tpu_custom_call.1} parent=129 // pred_region
          %s2070 = sand.u32 %s173, 1
          %s2071 = sand.u32 %s173, 1
          %s2072 = smul.addr %s2071, 256
          %s2073 = scalar_lea.vmem [#allocation9], %s2072
        $region142: #{tpu_custom_call.1} parent=129 // pred_fallthru
          _
      $region130: #{tpu_custom_call.1} parent=5 // pred_fallthru
        _
    $region6: #{tpu_custom_call.1} parent=1 // loop_footer
      %s23 = sadd.s32 1, %s19
    $region7: #{tpu_custom_call.1} parent=1 // loop_footer_branch
      %18 = sbr.rel target = $region3
    $region8: #{tpu_custom_call.1} parent=1 // loop_exit
      _
    %2074 = vsyncpa [#allocation3], 1
    %s2075 = scalar_lea.sflag [#allocation3], 1
    %2076 = vsyncpa %s2075, 1
    %2077 = vsyncpa [#allocation6], 1
    %2078 = vsyncpa [#allocation4], 1
    %s2079 = scalar_lea.sflag [#allocation4], 1
    %2080 = vsyncpa %s2079, 1

</llo_original>
